<compile_context>
chip_gen: v5e
topology: v5e:2x2
jax: 0.10.0
libtpu: 0.0.40
codegen_flags: <defaults>
</compile_context>

<pallas_src>
import jax
import jax.numpy as jnp
import numpy as np
from jax.experimental import pallas as pl
from jax.experimental.pallas import tpu as pltpu

EPS = 1e-5


# --------------------------------------------------------------------------
# in-kernel helpers
# --------------------------------------------------------------------------
def _conv3x3_acc(src_ref, w_ref, H, W, Cp):
    """3x3 conv of one spatially-padded image tile as 9 accumulated matmuls.

    src_ref: (H+2, W+2, Cp) zero-padded input tile (VMEM ref)
    w_ref  : (9, Cp, Cp) per-tap weights, tap order (kh, kw) row-major
    returns: (H*W, Cp) float32 accumulator
    """
    acc = jnp.zeros((H * W, Cp), jnp.float32)
    for kh in range(3):
        for kw in range(3):
            win = src_ref[kh:kh + H, kw:kw + W, :].reshape(H * W, Cp)
            acc = acc + jnp.dot(win, w_ref[3 * kh + kw],
                                preferred_element_type=jnp.float32)
    return acc


def _store_stats(stats_ref, acc):
    # Per-image partial BN statistics: [sum, sum of squares] per channel.
    stats_ref[0:1, :] = jnp.sum(acc, axis=0, keepdims=True)
    stats_ref[1:2, :] = jnp.sum(acc * acc, axis=0, keepdims=True)


def _make_conv1_kernel(H, W, Cp):
    def kernel(xp_ref, w_ref, y_ref, stats_ref):
        acc = _conv3x3_acc(xp_ref, w_ref, H, W, Cp)        # conv1 (no bias: BN cancels it)
        y_ref[...] = acc.reshape(H, W, Cp)
        _store_stats(stats_ref, acc)
    return kernel


def _make_conv2_kernel(H, W, Cp):
    def kernel(y1_ref, s_ref, t_ref, w_ref, y_ref, stats_ref, pad_ref):
        # bn1 folded to scale/shift + ReLU, applied on the fly.
        h = jnp.maximum(y1_ref[...] * s_ref[...] + t_ref[...], 0.0)   # (H, W, Cp)
        # Stage into the zero-halo scratch; interior written exactly once.
        zrow = jnp.zeros((1, W + 2, Cp), jnp.float32)
        zcol = jnp.zeros((H, 1, Cp), jnp.float32)
        pad_ref[0:1, :, :] = zrow
        pad_ref[H + 1:H + 2, :, :] = zrow
        pad_ref[1:H + 1, 0:1, :] = zcol
        pad_ref[1:H + 1, W + 1:W + 2, :] = zcol
        pad_ref[1:H + 1, 1:W + 1, :] = h
        acc = _conv3x3_acc(pad_ref, w_ref, H, W, Cp)        # conv2 (no bias)
        y_ref[...] = acc.reshape(H, W, Cp)
        _store_stats(stats_ref, acc)
    return kernel


def _make_finalize_kernel(H, W, Cp):
    def kernel(y2_ref, xp_ref, s_ref, t_ref, out_ref):
        res = xp_ref[1:H + 1, 1:W + 1, :]                   # residual (interior of padded x)
        out_ref[...] = jnp.maximum(
            y2_ref[...] * s_ref[...] + t_ref[...] + res, 0.0)
    return kernel


# --------------------------------------------------------------------------
# wrapper
# --------------------------------------------------------------------------
def _bn_scale_shift(stats, gamma, beta, count):
    """Fold training-mode BN into per-channel scale/shift from partial sums."""
    total = jnp.sum(stats, axis=0)                          # (2, Cp)
    mean = total[0] / count
    var = jnp.maximum(total[1] / count - mean * mean, 0.0)  # clamp fp cancellation
    scale = gamma * jax.lax.rsqrt(var + EPS)                # (1, Cp)
    shift = beta - mean * scale                             # (1, Cp)
    return scale, shift


@jax.jit
def residual_block_pallas(x_nchw, params):
    """x_nchw: (N, C, H, W) float32. Returns (N, C, H, W) float32."""
    w1, b1, g1, be1, w2, b2, g2, be2 = params
    del b1, b2   # conv biases are exactly cancelled by training-mode BN mean subtraction
    N, C, H, W = x_nchw.shape
    Cp = ((C + 127) // 128) * 128          # lane-dense channels
    count = jnp.float32(N * H * W)

    # glue: NCHW -> NHWC, pad spatially by 1 (conv padding) and channels to Cp.
    # TODO(synk): if the surrounding model can run NHWC end-to-end, drop both
    # transposes and pass the padded layout straight through.
    x_nhwc = jnp.transpose(x_nchw, (0, 2, 3, 1)).astype(jnp.float32)
    x_pad = jnp.pad(x_nhwc, ((0, 0), (1, 1), (1, 1), (0, Cp - C)))

    def pack_w(w):
        # HWIO (3,3,C,C) -> zero-pad channels -> per-tap weights (9, Cp, Cp)
        wp = jnp.pad(w.astype(jnp.float32),
                     ((0, 0), (0, 0), (0, Cp - C), (0, Cp - C)))
        return wp.reshape(9, Cp, Cp)

    def pack_vec(v, fill=0.0):
        return jnp.pad(v.astype(jnp.float32), (0, Cp - C),
                       constant_values=fill).reshape(1, Cp)

    w1p, w2p = pack_w(w1), pack_w(w2)
    g1p, be1p = pack_vec(g1, 1.0), pack_vec(be1)
    g2p, be2p = pack_vec(g2, 1.0), pack_vec(be2)

    # ---- shared specs / compiler params ------------------------------------
    pad_tile = (H + 2) * (W + 2) * Cp * 4
    act_tile = H * W * Cp * 4
    w_bytes = 9 * Cp * Cp * 4
    vmem_limit = int(min(96 << 20, max(32 << 20, 6 * pad_tile + 2 * w_bytes)))
    cparams = pltpu.CompilerParams(dimension_semantics=("parallel",),
                                   vmem_limit_bytes=vmem_limit)
    conv_flops = 2 * N * H * W * 9 * Cp * Cp

    img_pad_spec = pl.BlockSpec((None, H + 2, W + 2, Cp), lambda n: (n, 0, 0, 0))
    img_spec = pl.BlockSpec((None, H, W, Cp), lambda n: (n, 0, 0, 0))
    w_spec = pl.BlockSpec((9, Cp, Cp), lambda n: (0, 0, 0))
    vec_spec = pl.BlockSpec((1, Cp), lambda n: (0, 0))
    stats_spec = pl.BlockSpec((None, 2, Cp), lambda n: (n, 0, 0))
    img_shape = jax.ShapeDtypeStruct((N, H, W, Cp), jnp.float32)
    stats_shape = jax.ShapeDtypeStruct((N, 2, Cp), jnp.float32)

    # ---- pass 1: conv1 + partial BN1 stats ----------------------------------
    y1, stats1 = pl.pallas_call(
        _make_conv1_kernel(H, W, Cp),
        grid=(N,),
        in_specs=[img_pad_spec, w_spec],
        out_specs=[img_spec, stats_spec],
        out_shape=[img_shape, stats_shape],
        compiler_params=cparams,
        cost_estimate=pl.CostEstimate(
            flops=conv_flops, transcendentals=0,
            bytes_accessed=N * (pad_tile + act_tile) + w_bytes),
    )(x_pad, w1p)
    s1, t1 = _bn_scale_shift(stats1, g1p, be1p, count)

    # ---- pass 2: (bn1 + ReLU fused) -> conv2 + partial BN2 stats ------------
    y2, stats2 = pl.pallas_call(
        _make_conv2_kernel(H, W, Cp),
        grid=(N,),
        in_specs=[img_spec, vec_spec, vec_spec, w_spec],
        out_specs=[img_spec, stats_spec],
        out_shape=[img_shape, stats_shape],
        scratch_shapes=[pltpu.VMEM((H + 2, W + 2, Cp), jnp.float32)],
        compiler_params=cparams,
        cost_estimate=pl.CostEstimate(
            flops=conv_flops, transcendentals=0,
            bytes_accessed=N * (2 * act_tile + pad_tile) + w_bytes),
    )(y1, s1, t1, w2p)
    s2, t2 = _bn_scale_shift(stats2, g2p, be2p, count)

    # ---- pass 3: bn2 + residual add + ReLU ----------------------------------
    out = pl.pallas_call(
        _make_finalize_kernel(H, W, Cp),
        grid=(N,),
        in_specs=[img_spec, img_pad_spec, vec_spec, vec_spec],
        out_specs=img_spec,
        out_shape=img_shape,
        compiler_params=cparams,
        cost_estimate=pl.CostEstimate(
            flops=3 * N * H * W * Cp, transcendentals=0,
            bytes_accessed=N * (2 * act_tile + pad_tile)),
    )(y2, x_pad, s2, t2)

    out = out[..., :C]                        # drop channel padding
    return jnp.transpose(out, (0, 3, 1, 2))   # back to NCHW


# --------------------------------------------------------------------------
# pure-JAX reference (training-mode BN, with conv biases) for correctness
# --------------------------------------------------------------------------
def _reference(x_nchw, params):
    w1, b1, g1, be1, w2, b2, g2, be2 = params
    x = jnp.transpose(x_nchw, (0, 2, 3, 1))

    def conv(h, w, b):
        y = jax.lax.conv_general_dilated(
            h, w, window_strides=(1, 1), padding=((1, 1), (1, 1)),
            dimension_numbers=("NHWC", "HWIO", "NHWC"))
        return y + b.reshape(1, 1, 1, -1)

    def bn(h, g, be):
        m = h.mean(axis=(0, 1, 2), keepdims=True)
        v = ((h - m) ** 2).mean(axis=(0, 1, 2), keepdims=True)
        return (h - m) / jnp.sqrt(v + EPS) * g.reshape(1, 1, 1, -1) \
            + be.reshape(1, 1, 1, -1)

    out = jnp.maximum(bn(conv(x, w1, b1), g1, be1), 0.0)
    out = bn(conv(out, w2, b2), g2, be2)
    out = jnp.maximum(out + x, 0.0)
    return jnp.transpose(out, (0, 3, 1, 2))


if __name__ == "__main__":
    N, C, H, W = 2, 4, 16, 16  # in_channels == out_channels, stride=1, residual=True

    key = jax.random.PRNGKey(0)
    kx, kw1, kb1, kg1, kbe1, kw2, kb2, kg2, kbe2 = jax.random.split(key, 9)

    x = jax.random.normal(kx, (N, C, H, W), jnp.float32)

    # conv weights in HWIO layout (3,3,Cin,Cout); biases (C,); BN gamma/beta (C,)
    params = (
        0.2 * jax.random.normal(kw1, (3, 3, C, C), jnp.float32),
        0.1 * jax.random.normal(kb1, (C,), jnp.float32),
        1.0 + 0.1 * jax.random.normal(kg1, (C,), jnp.float32),
        0.1 * jax.random.normal(kbe1, (C,), jnp.float32),
        0.2 * jax.random.normal(kw2, (3, 3, C, C), jnp.float32),
        0.1 * jax.random.normal(kb2, (C,), jnp.float32),
        1.0 + 0.1 * jax.random.normal(kg2, (C,), jnp.float32),
        0.1 * jax.random.normal(kbe2, (C,), jnp.float32),
    )

    out = jax.block_until_ready(residual_block_pallas(x, params))
    ref = jax.block_until_ready(_reference(x, params))
    np.testing.assert_allclose(np.asarray(out), np.asarray(ref),
                               rtol=1e-4, atol=1e-4)
    print("KERNEL_OK")
</pallas_src>

<mosaic_0001>
module attributes {stable_mosaic.version = 11 : i64} {
  func.func @kernel(%arg0: i32, %arg1: memref<1x18x18x128xf32, #tpu.memory_space<vmem>>, %arg2: memref<9x128x128xf32, #tpu.memory_space<vmem>>, %arg3: memref<1x16x16x128xf32, #tpu.memory_space<vmem>>, %arg4: memref<1x2x128xf32, #tpu.memory_space<vmem>>) attributes {dimension_semantics = [#tpu.dimension_semantics<parallel>], iteration_bounds = array<i64: 2>, scalar_prefetch = 0 : i64, scratch_operands = 0 : i64, tpu.core_type = #tpu.core_type<tc>, window_params = [{transform_indices = @transform_0, window_bounds = array<i64: 1, 18, 18, 128>}, {pipeline_mode = #tpu.pipeline_mode<synchronous>, transform_indices = @transform_1, window_bounds = array<i64: 9, 128, 128>}, {transform_indices = @transform_2, window_bounds = array<i64: 1, 16, 16, 128>}, {transform_indices = @transform_3, window_bounds = array<i64: 1, 2, 128>}]} {
    %cst = arith.constant 0.000000e+00 : f32
    %0 = vector.broadcast %cst : f32 to vector<256x128xf32>
    %c0 = arith.constant 0 : index
    %c0_0 = arith.constant 0 : index
    %c0_1 = arith.constant 0 : index
    %c0_2 = arith.constant 0 : index
    %1 = vector.load %arg1[%c0, %c0_0, %c0_1, %c0_2] : memref<1x18x18x128xf32, #tpu.memory_space<vmem>>, vector<1x16x16x128xf32>
    %2 = vector.shape_cast %1 : vector<1x16x16x128xf32> to vector<16x16x128xf32>
    %3 = vector.shape_cast %2 : vector<16x16x128xf32> to vector<256x128xf32>
    %c0_3 = arith.constant 0 : index
    %c0_4 = arith.constant 0 : index
    %c0_5 = arith.constant 0 : index
    %4 = vector.load %arg2[%c0_3, %c0_4, %c0_5] : memref<9x128x128xf32, #tpu.memory_space<vmem>>, vector<1x128x128xf32>
    %5 = vector.shape_cast %4 : vector<1x128x128xf32> to vector<128x128xf32>
    %cst_6 = arith.constant dense<0.000000e+00> : vector<256x128xf32>
    %6 = tpu.matmul %3, %5, %cst_6 {dimension_numbers = #tpu.dot_dimension_numbers<[1], [0], [0], [1], [0, 0, 1, 1], [], []>} : vector<256x128xf32>, vector<128x128xf32>, vector<256x128xf32> -> vector<256x128xf32>
    %7 = arith.addf %0, %6 : vector<256x128xf32>
    %c0_7 = arith.constant 0 : index
    %c0_8 = arith.constant 0 : index
    %c1 = arith.constant 1 : index
    %c0_9 = arith.constant 0 : index
    %8 = vector.load %arg1[%c0_7, %c0_8, %c1, %c0_9] : memref<1x18x18x128xf32, #tpu.memory_space<vmem>>, vector<1x16x16x128xf32>
    %9 = vector.shape_cast %8 : vector<1x16x16x128xf32> to vector<16x16x128xf32>
    %10 = vector.shape_cast %9 : vector<16x16x128xf32> to vector<256x128xf32>
    %c1_10 = arith.constant 1 : index
    %c0_11 = arith.constant 0 : index
    %c0_12 = arith.constant 0 : index
    %11 = vector.load %arg2[%c1_10, %c0_11, %c0_12] : memref<9x128x128xf32, #tpu.memory_space<vmem>>, vector<1x128x128xf32>
    %12 = vector.shape_cast %11 : vector<1x128x128xf32> to vector<128x128xf32>
    %cst_13 = arith.constant dense<0.000000e+00> : vector<256x128xf32>
    %13 = tpu.matmul %10, %12, %cst_13 {dimension_numbers = #tpu.dot_dimension_numbers<[1], [0], [0], [1], [0, 0, 1, 1], [], []>} : vector<256x128xf32>, vector<128x128xf32>, vector<256x128xf32> -> vector<256x128xf32>
    %14 = arith.addf %7, %13 : vector<256x128xf32>
    %c0_14 = arith.constant 0 : index
    %c0_15 = arith.constant 0 : index
    %c2 = arith.constant 2 : index
    %c0_16 = arith.constant 0 : index
    %15 = vector.load %arg1[%c0_14, %c0_15, %c2, %c0_16] : memref<1x18x18x128xf32, #tpu.memory_space<vmem>>, vector<1x16x16x128xf32>
    %16 = vector.shape_cast %15 : vector<1x16x16x128xf32> to vector<16x16x128xf32>
    %17 = vector.shape_cast %16 : vector<16x16x128xf32> to vector<256x128xf32>
    %c2_17 = arith.constant 2 : index
    %c0_18 = arith.constant 0 : index
    %c0_19 = arith.constant 0 : index
    %18 = vector.load %arg2[%c2_17, %c0_18, %c0_19] : memref<9x128x128xf32, #tpu.memory_space<vmem>>, vector<1x128x128xf32>
    %19 = vector.shape_cast %18 : vector<1x128x128xf32> to vector<128x128xf32>
    %cst_20 = arith.constant dense<0.000000e+00> : vector<256x128xf32>
    %20 = tpu.matmul %17, %19, %cst_20 {dimension_numbers = #tpu.dot_dimension_numbers<[1], [0], [0], [1], [0, 0, 1, 1], [], []>} : vector<256x128xf32>, vector<128x128xf32>, vector<256x128xf32> -> vector<256x128xf32>
    %21 = arith.addf %14, %20 : vector<256x128xf32>
    %c0_21 = arith.constant 0 : index
    %c1_22 = arith.constant 1 : index
    %c0_23 = arith.constant 0 : index
    %c0_24 = arith.constant 0 : index
    %22 = vector.load %arg1[%c0_21, %c1_22, %c0_23, %c0_24] : memref<1x18x18x128xf32, #tpu.memory_space<vmem>>, vector<1x16x16x128xf32>
    %23 = vector.shape_cast %22 : vector<1x16x16x128xf32> to vector<16x16x128xf32>
    %24 = vector.shape_cast %23 : vector<16x16x128xf32> to vector<256x128xf32>
    %c3 = arith.constant 3 : index
    %c0_25 = arith.constant 0 : index
    %c0_26 = arith.constant 0 : index
    %25 = vector.load %arg2[%c3, %c0_25, %c0_26] : memref<9x128x128xf32, #tpu.memory_space<vmem>>, vector<1x128x128xf32>
    %26 = vector.shape_cast %25 : vector<1x128x128xf32> to vector<128x128xf32>
    %cst_27 = arith.constant dense<0.000000e+00> : vector<256x128xf32>
    %27 = tpu.matmul %24, %26, %cst_27 {dimension_numbers = #tpu.dot_dimension_numbers<[1], [0], [0], [1], [0, 0, 1, 1], [], []>} : vector<256x128xf32>, vector<128x128xf32>, vector<256x128xf32> -> vector<256x128xf32>
    %28 = arith.addf %21, %27 : vector<256x128xf32>
    %c0_28 = arith.constant 0 : index
    %c1_29 = arith.constant 1 : index
    %c1_30 = arith.constant 1 : index
    %c0_31 = arith.constant 0 : index
    %29 = vector.load %arg1[%c0_28, %c1_29, %c1_30, %c0_31] : memref<1x18x18x128xf32, #tpu.memory_space<vmem>>, vector<1x16x16x128xf32>
    %30 = vector.shape_cast %29 : vector<1x16x16x128xf32> to vector<16x16x128xf32>
    %31 = vector.shape_cast %30 : vector<16x16x128xf32> to vector<256x128xf32>
    %c4 = arith.constant 4 : index
    %c0_32 = arith.constant 0 : index
    %c0_33 = arith.constant 0 : index
    %32 = vector.load %arg2[%c4, %c0_32, %c0_33] : memref<9x128x128xf32, #tpu.memory_space<vmem>>, vector<1x128x128xf32>
    %33 = vector.shape_cast %32 : vector<1x128x128xf32> to vector<128x128xf32>
    %cst_34 = arith.constant dense<0.000000e+00> : vector<256x128xf32>
    %34 = tpu.matmul %31, %33, %cst_34 {dimension_numbers = #tpu.dot_dimension_numbers<[1], [0], [0], [1], [0, 0, 1, 1], [], []>} : vector<256x128xf32>, vector<128x128xf32>, vector<256x128xf32> -> vector<256x128xf32>
    %35 = arith.addf %28, %34 : vector<256x128xf32>
    %c0_35 = arith.constant 0 : index
    %c1_36 = arith.constant 1 : index
    %c2_37 = arith.constant 2 : index
    %c0_38 = arith.constant 0 : index
    %36 = vector.load %arg1[%c0_35, %c1_36, %c2_37, %c0_38] : memref<1x18x18x128xf32, #tpu.memory_space<vmem>>, vector<1x16x16x128xf32>
    %37 = vector.shape_cast %36 : vector<1x16x16x128xf32> to vector<16x16x128xf32>
    %38 = vector.shape_cast %37 : vector<16x16x128xf32> to vector<256x128xf32>
    %c5 = arith.constant 5 : index
    %c0_39 = arith.constant 0 : index
    %c0_40 = arith.constant 0 : index
    %39 = vector.load %arg2[%c5, %c0_39, %c0_40] : memref<9x128x128xf32, #tpu.memory_space<vmem>>, vector<1x128x128xf32>
    %40 = vector.shape_cast %39 : vector<1x128x128xf32> to vector<128x128xf32>
    %cst_41 = arith.constant dense<0.000000e+00> : vector<256x128xf32>
    %41 = tpu.matmul %38, %40, %cst_41 {dimension_numbers = #tpu.dot_dimension_numbers<[1], [0], [0], [1], [0, 0, 1, 1], [], []>} : vector<256x128xf32>, vector<128x128xf32>, vector<256x128xf32> -> vector<256x128xf32>
    %42 = arith.addf %35, %41 : vector<256x128xf32>
    %c0_42 = arith.constant 0 : index
    %c2_43 = arith.constant 2 : index
    %c0_44 = arith.constant 0 : index
    %c0_45 = arith.constant 0 : index
    %43 = vector.load %arg1[%c0_42, %c2_43, %c0_44, %c0_45] : memref<1x18x18x128xf32, #tpu.memory_space<vmem>>, vector<1x16x16x128xf32>
    %44 = vector.shape_cast %43 : vector<1x16x16x128xf32> to vector<16x16x128xf32>
    %45 = vector.shape_cast %44 : vector<16x16x128xf32> to vector<256x128xf32>
    %c6 = arith.constant 6 : index
    %c0_46 = arith.constant 0 : index
    %c0_47 = arith.constant 0 : index
    %46 = vector.load %arg2[%c6, %c0_46, %c0_47] : memref<9x128x128xf32, #tpu.memory_space<vmem>>, vector<1x128x128xf32>
    %47 = vector.shape_cast %46 : vector<1x128x128xf32> to vector<128x128xf32>
    %cst_48 = arith.constant dense<0.000000e+00> : vector<256x128xf32>
    %48 = tpu.matmul %45, %47, %cst_48 {dimension_numbers = #tpu.dot_dimension_numbers<[1], [0], [0], [1], [0, 0, 1, 1], [], []>} : vector<256x128xf32>, vector<128x128xf32>, vector<256x128xf32> -> vector<256x128xf32>
    %49 = arith.addf %42, %48 : vector<256x128xf32>
    %c0_49 = arith.constant 0 : index
    %c2_50 = arith.constant 2 : index
    %c1_51 = arith.constant 1 : index
    %c0_52 = arith.constant 0 : index
    %50 = vector.load %arg1[%c0_49, %c2_50, %c1_51, %c0_52] : memref<1x18x18x128xf32, #tpu.memory_space<vmem>>, vector<1x16x16x128xf32>
    %51 = vector.shape_cast %50 : vector<1x16x16x128xf32> to vector<16x16x128xf32>
    %52 = vector.shape_cast %51 : vector<16x16x128xf32> to vector<256x128xf32>
    %c7 = arith.constant 7 : index
    %c0_53 = arith.constant 0 : index
    %c0_54 = arith.constant 0 : index
    %53 = vector.load %arg2[%c7, %c0_53, %c0_54] : memref<9x128x128xf32, #tpu.memory_space<vmem>>, vector<1x128x128xf32>
    %54 = vector.shape_cast %53 : vector<1x128x128xf32> to vector<128x128xf32>
    %cst_55 = arith.constant dense<0.000000e+00> : vector<256x128xf32>
    %55 = tpu.matmul %52, %54, %cst_55 {dimension_numbers = #tpu.dot_dimension_numbers<[1], [0], [0], [1], [0, 0, 1, 1], [], []>} : vector<256x128xf32>, vector<128x128xf32>, vector<256x128xf32> -> vector<256x128xf32>
    %56 = arith.addf %49, %55 : vector<256x128xf32>
    %c0_56 = arith.constant 0 : index
    %c2_57 = arith.constant 2 : index
    %c2_58 = arith.constant 2 : index
    %c0_59 = arith.constant 0 : index
    %57 = vector.load %arg1[%c0_56, %c2_57, %c2_58, %c0_59] : memref<1x18x18x128xf32, #tpu.memory_space<vmem>>, vector<1x16x16x128xf32>
    %58 = vector.shape_cast %57 : vector<1x16x16x128xf32> to vector<16x16x128xf32>
    %59 = vector.shape_cast %58 : vector<16x16x128xf32> to vector<256x128xf32>
    %c8 = arith.constant 8 : index
    %c0_60 = arith.constant 0 : index
    %c0_61 = arith.constant 0 : index
    %60 = vector.load %arg2[%c8, %c0_60, %c0_61] : memref<9x128x128xf32, #tpu.memory_space<vmem>>, vector<1x128x128xf32>
    %61 = vector.shape_cast %60 : vector<1x128x128xf32> to vector<128x128xf32>
    %cst_62 = arith.constant dense<0.000000e+00> : vector<256x128xf32>
    %62 = tpu.matmul %59, %61, %cst_62 {dimension_numbers = #tpu.dot_dimension_numbers<[1], [0], [0], [1], [0, 0, 1, 1], [], []>} : vector<256x128xf32>, vector<128x128xf32>, vector<256x128xf32> -> vector<256x128xf32>
    %63 = arith.addf %56, %62 : vector<256x128xf32>
    %64 = vector.shape_cast %63 : vector<256x128xf32> to vector<16x16x128xf32>
    %c0_63 = arith.constant 0 : index
    %c0_64 = arith.constant 0 : index
    %c0_65 = arith.constant 0 : index
    %c0_66 = arith.constant 0 : index
    %65 = vector.load %arg3[%c0_63, %c0_64, %c0_65, %c0_66] : memref<1x16x16x128xf32, #tpu.memory_space<vmem>>, vector<1x16x16x128xf32>
    %66 = vector.shape_cast %65 : vector<1x16x16x128xf32> to vector<16x16x128xf32>
    %67 = vector.shape_cast %64 : vector<16x16x128xf32> to vector<1x16x16x128xf32>
    tpu.vector_store %arg3[%c0_63, %c0_64, %c0_65, %c0_66], %67 {strides = array<i32>} : memref<1x16x16x128xf32, #tpu.memory_space<vmem>>, vector<1x16x16x128xf32>,
    %cst_67 = arith.constant dense<0.000000e+00> : vector<128xf32>
    %68 = vector.multi_reduction <add>, %63, %cst_67 [0] : vector<256x128xf32> to vector<128xf32>
    %69 = vector.shape_cast %68 : vector<128xf32> to vector<1x128xf32>
    %c0_68 = arith.constant 0 : index
    %c0_69 = arith.constant 0 : index
    %c0_70 = arith.constant 0 : index
    %70 = vector.load %arg4[%c0_68, %c0_69, %c0_70] : memref<1x2x128xf32, #tpu.memory_space<vmem>>, vector<1x1x128xf32>
    %71 = vector.shape_cast %70 : vector<1x1x128xf32> to vector<1x128xf32>
    %72 = vector.shape_cast %69 : vector<1x128xf32> to vector<1x1x128xf32>
    tpu.vector_store %arg4[%c0_68, %c0_69, %c0_70], %72 {strides = array<i32>} : memref<1x2x128xf32, #tpu.memory_space<vmem>>, vector<1x1x128xf32>,
    %73 = arith.mulf %63, %63 : vector<256x128xf32>
    %cst_71 = arith.constant dense<0.000000e+00> : vector<128xf32>
    %74 = vector.multi_reduction <add>, %73, %cst_71 [0] : vector<256x128xf32> to vector<128xf32>
    %75 = vector.shape_cast %74 : vector<128xf32> to vector<1x128xf32>
    %c0_72 = arith.constant 0 : index
    %c1_73 = arith.constant 1 : index
    %c0_74 = arith.constant 0 : index
    %76 = vector.load %arg4[%c0_72, %c1_73, %c0_74] : memref<1x2x128xf32, #tpu.memory_space<vmem>>, vector<1x1x128xf32>
    %77 = vector.shape_cast %76 : vector<1x1x128xf32> to vector<1x128xf32>
    %78 = vector.shape_cast %75 : vector<1x128xf32> to vector<1x1x128xf32>
    tpu.vector_store %arg4[%c0_72, %c1_73, %c0_74], %78 {strides = array<i32>} : memref<1x2x128xf32, #tpu.memory_space<vmem>>, vector<1x1x128xf32>,
    return
  }
  func.func @transform_0(%arg0: i32) -> (i32, i32, i32, i32) {
    %c0_i32 = arith.constant 0 : i32
    %c0_i32_0 = arith.constant 0 : i32
    %c0_i32_1 = arith.constant 0 : i32
    %c0_i32_2 = arith.constant 0 : i32
    return %arg0, %c0_i32, %c0_i32_0, %c0_i32_1 : i32, i32, i32, i32
  }
  func.func @transform_1(%arg0: i32) -> (i32, i32, i32) {
    %c0_i32 = arith.constant 0 : i32
    %c0_i32_0 = arith.constant 0 : i32
    %c0_i32_1 = arith.constant 0 : i32
    %c0_i32_2 = arith.constant 0 : i32
    return %c0_i32, %c0_i32_0, %c0_i32_1 : i32, i32, i32
  }
  func.func @transform_2(%arg0: i32) -> (i32, i32, i32, i32) {
    %c0_i32 = arith.constant 0 : i32
    %c0_i32_0 = arith.constant 0 : i32
    %c0_i32_1 = arith.constant 0 : i32
    %c0_i32_2 = arith.constant 0 : i32
    return %arg0, %c0_i32, %c0_i32_0, %c0_i32_1 : i32, i32, i32, i32
  }
  func.func @transform_3(%arg0: i32) -> (i32, i32, i32) {
    %c0_i32 = arith.constant 0 : i32
    %c0_i32_0 = arith.constant 0 : i32
    %c0_i32_1 = arith.constant 0 : i32
    return %arg0, %c0_i32, %c0_i32_0 : i32, i32, i32
  }
}

module attributes {stable_mosaic.version = 11 : i64} {
  func.func @kernel(%arg0: i32, %arg1: memref<1x16x16x128xf32, #tpu.memory_space<vmem>>, %arg2: memref<1x18x18x128xf32, #tpu.memory_space<vmem>>, %arg3: memref<1x128xf32, #tpu.memory_space<vmem>>, %arg4: memref<1x128xf32, #tpu.memory_space<vmem>>, %arg5: memref<1x16x16x128xf32, #tpu.memory_space<vmem>>) attributes {dimension_semantics = [#tpu.dimension_semantics<parallel>], iteration_bounds = array<i64: 2>, scalar_prefetch = 0 : i64, scratch_operands = 0 : i64, tpu.core_type = #tpu.core_type<tc>, window_params = [{transform_indices = @transform_0, window_bounds = array<i64: 1, 16, 16, 128>}, {transform_indices = @transform_1, window_bounds = array<i64: 1, 18, 18, 128>}, {pipeline_mode = #tpu.pipeline_mode<synchronous>, transform_indices = @transform_2, window_bounds = array<i64: 1, 128>}, {pipeline_mode = #tpu.pipeline_mode<synchronous>, transform_indices = @transform_3, window_bounds = array<i64: 1, 128>}, {transform_indices = @transform_4, window_bounds = array<i64: 1, 16, 16, 128>}]} {
    %c0 = arith.constant 0 : index
    %c1 = arith.constant 1 : index
    %c1_0 = arith.constant 1 : index
    %c0_1 = arith.constant 0 : index
    %0 = vector.load %arg2[%c0, %c1, %c1_0, %c0_1] : memref<1x18x18x128xf32, #tpu.memory_space<vmem>>, vector<1x16x16x128xf32>
    %1 = vector.shape_cast %0 : vector<1x16x16x128xf32> to vector<16x16x128xf32>
    %c0_2 = arith.constant 0 : index
    %c0_3 = arith.constant 0 : index
    %c0_4 = arith.constant 0 : index
    %c0_5 = arith.constant 0 : index
    %2 = vector.load %arg1[%c0_2, %c0_3, %c0_4, %c0_5] : memref<1x16x16x128xf32, #tpu.memory_space<vmem>>, vector<1x16x16x128xf32>
    %3 = vector.shape_cast %2 : vector<1x16x16x128xf32> to vector<16x16x128xf32>
    %c0_6 = arith.constant 0 : index
    %c0_7 = arith.constant 0 : index
    %4 = vector.load %arg3[%c0_6, %c0_7] : memref<1x128xf32, #tpu.memory_space<vmem>>, vector<1x128xf32>
    %5 = vector.shape_cast %4 : vector<1x128xf32> to vector<1x1x128xf32>
    %6 = vector.broadcast %5 : vector<1x1x128xf32> to vector<16x16x128xf32>
    %7 = arith.mulf %3, %6 : vector<16x16x128xf32>
    %c0_8 = arith.constant 0 : index
    %c0_9 = arith.constant 0 : index
    %8 = vector.load %arg4[%c0_8, %c0_9] : memref<1x128xf32, #tpu.memory_space<vmem>>, vector<1x128xf32>
    %9 = vector.shape_cast %8 : vector<1x128xf32> to vector<1x1x128xf32>
    %10 = vector.broadcast %9 : vector<1x1x128xf32> to vector<16x16x128xf32>
    %11 = arith.addf %7, %10 : vector<16x16x128xf32>
    %12 = arith.addf %11, %1 : vector<16x16x128xf32>
    %cst = arith.constant 0.000000e+00 : f32
    %13 = vector.broadcast %cst : f32 to vector<16x16x128xf32>
    %14 = arith.maximumf %12, %13 : vector<16x16x128xf32>
    %c0_10 = arith.constant 0 : index
    %c0_11 = arith.constant 0 : index
    %c0_12 = arith.constant 0 : index
    %c0_13 = arith.constant 0 : index
    %15 = vector.load %arg5[%c0_10, %c0_11, %c0_12, %c0_13] : memref<1x16x16x128xf32, #tpu.memory_space<vmem>>, vector<1x16x16x128xf32>
    %16 = vector.shape_cast %15 : vector<1x16x16x128xf32> to vector<16x16x128xf32>
    %17 = vector.shape_cast %14 : vector<16x16x128xf32> to vector<1x16x16x128xf32>
    tpu.vector_store %arg5[%c0_10, %c0_11, %c0_12, %c0_13], %17 {strides = array<i32>} : memref<1x16x16x128xf32, #tpu.memory_space<vmem>>, vector<1x16x16x128xf32>,
    return
  }
  func.func @transform_0(%arg0: i32) -> (i32, i32, i32, i32) {
    %c0_i32 = arith.constant 0 : i32
    %c0_i32_0 = arith.constant 0 : i32
    %c0_i32_1 = arith.constant 0 : i32
    %c0_i32_2 = arith.constant 0 : i32
    return %arg0, %c0_i32, %c0_i32_0, %c0_i32_1 : i32, i32, i32, i32
  }
  func.func @transform_1(%arg0: i32) -> (i32, i32, i32, i32) {
    %c0_i32 = arith.constant 0 : i32
    %c0_i32_0 = arith.constant 0 : i32
    %c0_i32_1 = arith.constant 0 : i32
    %c0_i32_2 = arith.constant 0 : i32
    return %arg0, %c0_i32, %c0_i32_0, %c0_i32_1 : i32, i32, i32, i32
  }
  func.func @transform_2(%arg0: i32) -> (i32, i32) {
    %c0_i32 = arith.constant 0 : i32
    %c0_i32_0 = arith.constant 0 : i32
    %c0_i32_1 = arith.constant 0 : i32
    return %c0_i32, %c0_i32_0 : i32, i32
  }
  func.func @transform_3(%arg0: i32) -> (i32, i32) {
    %c0_i32 = arith.constant 0 : i32
    %c0_i32_0 = arith.constant 0 : i32
    %c0_i32_1 = arith.constant 0 : i32
    return %c0_i32, %c0_i32_0 : i32, i32
  }
  func.func @transform_4(%arg0: i32) -> (i32, i32, i32, i32) {
    %c0_i32 = arith.constant 0 : i32
    %c0_i32_0 = arith.constant 0 : i32
    %c0_i32_1 = arith.constant 0 : i32
    %c0_i32_2 = arith.constant 0 : i32
    return %arg0, %c0_i32, %c0_i32_0, %c0_i32_1 : i32, i32, i32, i32
  }
}

module attributes {stable_mosaic.version = 11 : i64} {
  func.func @kernel(%arg0: i32, %arg1: memref<1x16x16x128xf32, #tpu.memory_space<vmem>>, %arg2: memref<1x128xf32, #tpu.memory_space<vmem>>, %arg3: memref<1x128xf32, #tpu.memory_space<vmem>>, %arg4: memref<9x128x128xf32, #tpu.memory_space<vmem>>, %arg5: memref<1x16x16x128xf32, #tpu.memory_space<vmem>>, %arg6: memref<1x2x128xf32, #tpu.memory_space<vmem>>, %arg7: memref<18x18x128xf32, #tpu.memory_space<vmem>>) attributes {dimension_semantics = [#tpu.dimension_semantics<parallel>], iteration_bounds = array<i64: 2>, scalar_prefetch = 0 : i64, scratch_operands = 1 : i64, tpu.core_type = #tpu.core_type<tc>, window_params = [{transform_indices = @transform_0, window_bounds = array<i64: 1, 16, 16, 128>}, {pipeline_mode = #tpu.pipeline_mode<synchronous>, transform_indices = @transform_1, window_bounds = array<i64: 1, 128>}, {pipeline_mode = #tpu.pipeline_mode<synchronous>, transform_indices = @transform_2, window_bounds = array<i64: 1, 128>}, {pipeline_mode = #tpu.pipeline_mode<synchronous>, transform_indices = @transform_3, window_bounds = array<i64: 9, 128, 128>}, {transform_indices = @transform_4, window_bounds = array<i64: 1, 16, 16, 128>}, {transform_indices = @transform_5, window_bounds = array<i64: 1, 2, 128>}]} {
    %c0 = arith.constant 0 : index
    %c0_0 = arith.constant 0 : index
    %c0_1 = arith.constant 0 : index
    %c0_2 = arith.constant 0 : index
    %0 = vector.load %arg1[%c0, %c0_0, %c0_1, %c0_2] : memref<1x16x16x128xf32, #tpu.memory_space<vmem>>, vector<1x16x16x128xf32>
    %1 = vector.shape_cast %0 : vector<1x16x16x128xf32> to vector<16x16x128xf32>
    %c0_3 = arith.constant 0 : index
    %c0_4 = arith.constant 0 : index
    %2 = vector.load %arg2[%c0_3, %c0_4] : memref<1x128xf32, #tpu.memory_space<vmem>>, vector<1x128xf32>
    %3 = vector.shape_cast %2 : vector<1x128xf32> to vector<1x1x128xf32>
    %4 = vector.broadcast %3 : vector<1x1x128xf32> to vector<16x16x128xf32>
    %5 = arith.mulf %1, %4 : vector<16x16x128xf32>
    %c0_5 = arith.constant 0 : index
    %c0_6 = arith.constant 0 : index
    %6 = vector.load %arg3[%c0_5, %c0_6] : memref<1x128xf32, #tpu.memory_space<vmem>>, vector<1x128xf32>
    %7 = vector.shape_cast %6 : vector<1x128xf32> to vector<1x1x128xf32>
    %8 = vector.broadcast %7 : vector<1x1x128xf32> to vector<16x16x128xf32>
    %9 = arith.addf %5, %8 : vector<16x16x128xf32>
    %cst = arith.constant 0.000000e+00 : f32
    %10 = vector.broadcast %cst : f32 to vector<16x16x128xf32>
    %11 = arith.maximumf %9, %10 : vector<16x16x128xf32>
    %cst_7 = arith.constant 0.000000e+00 : f32
    %12 = vector.broadcast %cst_7 : f32 to vector<1x18x128xf32>
    %cst_8 = arith.constant 0.000000e+00 : f32
    %13 = vector.broadcast %cst_8 : f32 to vector<16x1x128xf32>
    %c0_9 = arith.constant 0 : index
    %c0_10 = arith.constant 0 : index
    %c0_11 = arith.constant 0 : index
    %14 = vector.load %arg7[%c0_9, %c0_10, %c0_11] : memref<18x18x128xf32, #tpu.memory_space<vmem>>, vector<1x18x128xf32>
    tpu.vector_store %arg7[%c0_9, %c0_10, %c0_11], %12 {strides = array<i32>} : memref<18x18x128xf32, #tpu.memory_space<vmem>>, vector<1x18x128xf32>,
    %c17 = arith.constant 17 : index
    %c0_12 = arith.constant 0 : index
    %c0_13 = arith.constant 0 : index
    %15 = vector.load %arg7[%c17, %c0_12, %c0_13] : memref<18x18x128xf32, #tpu.memory_space<vmem>>, vector<1x18x128xf32>
    tpu.vector_store %arg7[%c17, %c0_12, %c0_13], %12 {strides = array<i32>} : memref<18x18x128xf32, #tpu.memory_space<vmem>>, vector<1x18x128xf32>,
    %c1 = arith.constant 1 : index
    %c0_14 = arith.constant 0 : index
    %c0_15 = arith.constant 0 : index
    %16 = vector.load %arg7[%c1, %c0_14, %c0_15] : memref<18x18x128xf32, #tpu.memory_space<vmem>>, vector<16x1x128xf32>
    tpu.vector_store %arg7[%c1, %c0_14, %c0_15], %13 {strides = array<i32>} : memref<18x18x128xf32, #tpu.memory_space<vmem>>, vector<16x1x128xf32>,
    %c1_16 = arith.constant 1 : index
    %c17_17 = arith.constant 17 : index
    %c0_18 = arith.constant 0 : index
    %17 = vector.load %arg7[%c1_16, %c17_17, %c0_18] : memref<18x18x128xf32, #tpu.memory_space<vmem>>, vector<16x1x128xf32>
    tpu.vector_store %arg7[%c1_16, %c17_17, %c0_18], %13 {strides = array<i32>} : memref<18x18x128xf32, #tpu.memory_space<vmem>>, vector<16x1x128xf32>,
    %c1_19 = arith.constant 1 : index
    %c1_20 = arith.constant 1 : index
    %c0_21 = arith.constant 0 : index
    %18 = vector.load %arg7[%c1_19, %c1_20, %c0_21] : memref<18x18x128xf32, #tpu.memory_space<vmem>>, vector<16x16x128xf32>
    tpu.vector_store %arg7[%c1_19, %c1_20, %c0_21], %11 {strides = array<i32>} : memref<18x18x128xf32, #tpu.memory_space<vmem>>, vector<16x16x128xf32>,
    %cst_22 = arith.constant 0.000000e+00 : f32
    %19 = vector.broadcast %cst_22 : f32 to vector<256x128xf32>
    %c0_23 = arith.constant 0 : index
    %c0_24 = arith.constant 0 : index
    %c0_25 = arith.constant 0 : index
    %20 = vector.load %arg7[%c0_23, %c0_24, %c0_25] : memref<18x18x128xf32, #tpu.memory_space<vmem>>, vector<16x16x128xf32>
    %21 = vector.shape_cast %20 : vector<16x16x128xf32> to vector<256x128xf32>
    %c0_26 = arith.constant 0 : index
    %c0_27 = arith.constant 0 : index
    %c0_28 = arith.constant 0 : index
    %22 = vector.load %arg4[%c0_26, %c0_27, %c0_28] : memref<9x128x128xf32, #tpu.memory_space<vmem>>, vector<1x128x128xf32>
    %23 = vector.shape_cast %22 : vector<1x128x128xf32> to vector<128x128xf32>
    %cst_29 = arith.constant dense<0.000000e+00> : vector<256x128xf32>
    %24 = tpu.matmul %21, %23, %cst_29 {dimension_numbers = #tpu.dot_dimension_numbers<[1], [0], [0], [1], [0, 0, 1, 1], [], []>} : vector<256x128xf32>, vector<128x128xf32>, vector<256x128xf32> -> vector<256x128xf32>
    %25 = arith.addf %19, %24 : vector<256x128xf32>
    %c0_30 = arith.constant 0 : index
    %c1_31 = arith.constant 1 : index
    %c0_32 = arith.constant 0 : index
    %26 = vector.load %arg7[%c0_30, %c1_31, %c0_32] : memref<18x18x128xf32, #tpu.memory_space<vmem>>, vector<16x16x128xf32>
    %27 = vector.shape_cast %26 : vector<16x16x128xf32> to vector<256x128xf32>
    %c1_33 = arith.constant 1 : index
    %c0_34 = arith.constant 0 : index
    %c0_35 = arith.constant 0 : index
    %28 = vector.load %arg4[%c1_33, %c0_34, %c0_35] : memref<9x128x128xf32, #tpu.memory_space<vmem>>, vector<1x128x128xf32>
    %29 = vector.shape_cast %28 : vector<1x128x128xf32> to vector<128x128xf32>
    %cst_36 = arith.constant dense<0.000000e+00> : vector<256x128xf32>
    %30 = tpu.matmul %27, %29, %cst_36 {dimension_numbers = #tpu.dot_dimension_numbers<[1], [0], [0], [1], [0, 0, 1, 1], [], []>} : vector<256x128xf32>, vector<128x128xf32>, vector<256x128xf32> -> vector<256x128xf32>
    %31 = arith.addf %25, %30 : vector<256x128xf32>
    %c0_37 = arith.constant 0 : index
    %c2 = arith.constant 2 : index
    %c0_38 = arith.constant 0 : index
    %32 = vector.load %arg7[%c0_37, %c2, %c0_38] : memref<18x18x128xf32, #tpu.memory_space<vmem>>, vector<16x16x128xf32>
    %33 = vector.shape_cast %32 : vector<16x16x128xf32> to vector<256x128xf32>
    %c2_39 = arith.constant 2 : index
    %c0_40 = arith.constant 0 : index
    %c0_41 = arith.constant 0 : index
    %34 = vector.load %arg4[%c2_39, %c0_40, %c0_41] : memref<9x128x128xf32, #tpu.memory_space<vmem>>, vector<1x128x128xf32>
    %35 = vector.shape_cast %34 : vector<1x128x128xf32> to vector<128x128xf32>
    %cst_42 = arith.constant dense<0.000000e+00> : vector<256x128xf32>
    %36 = tpu.matmul %33, %35, %cst_42 {dimension_numbers = #tpu.dot_dimension_numbers<[1], [0], [0], [1], [0, 0, 1, 1], [], []>} : vector<256x128xf32>, vector<128x128xf32>, vector<256x128xf32> -> vector<256x128xf32>
    %37 = arith.addf %31, %36 : vector<256x128xf32>
    %c1_43 = arith.constant 1 : index
    %c0_44 = arith.constant 0 : index
    %c0_45 = arith.constant 0 : index
    %38 = vector.load %arg7[%c1_43, %c0_44, %c0_45] : memref<18x18x128xf32, #tpu.memory_space<vmem>>, vector<16x16x128xf32>
    %39 = vector.shape_cast %38 : vector<16x16x128xf32> to vector<256x128xf32>
    %c3 = arith.constant 3 : index
    %c0_46 = arith.constant 0 : index
    %c0_47 = arith.constant 0 : index
    %40 = vector.load %arg4[%c3, %c0_46, %c0_47] : memref<9x128x128xf32, #tpu.memory_space<vmem>>, vector<1x128x128xf32>
    %41 = vector.shape_cast %40 : vector<1x128x128xf32> to vector<128x128xf32>
    %cst_48 = arith.constant dense<0.000000e+00> : vector<256x128xf32>
    %42 = tpu.matmul %39, %41, %cst_48 {dimension_numbers = #tpu.dot_dimension_numbers<[1], [0], [0], [1], [0, 0, 1, 1], [], []>} : vector<256x128xf32>, vector<128x128xf32>, vector<256x128xf32> -> vector<256x128xf32>
    %43 = arith.addf %37, %42 : vector<256x128xf32>
    %c1_49 = arith.constant 1 : index
    %c1_50 = arith.constant 1 : index
    %c0_51 = arith.constant 0 : index
    %44 = vector.load %arg7[%c1_49, %c1_50, %c0_51] : memref<18x18x128xf32, #tpu.memory_space<vmem>>, vector<16x16x128xf32>
    %45 = vector.shape_cast %44 : vector<16x16x128xf32> to vector<256x128xf32>
    %c4 = arith.constant 4 : index
    %c0_52 = arith.constant 0 : index
    %c0_53 = arith.constant 0 : index
    %46 = vector.load %arg4[%c4, %c0_52, %c0_53] : memref<9x128x128xf32, #tpu.memory_space<vmem>>, vector<1x128x128xf32>
    %47 = vector.shape_cast %46 : vector<1x128x128xf32> to vector<128x128xf32>
    %cst_54 = arith.constant dense<0.000000e+00> : vector<256x128xf32>
    %48 = tpu.matmul %45, %47, %cst_54 {dimension_numbers = #tpu.dot_dimension_numbers<[1], [0], [0], [1], [0, 0, 1, 1], [], []>} : vector<256x128xf32>, vector<128x128xf32>, vector<256x128xf32> -> vector<256x128xf32>
    %49 = arith.addf %43, %48 : vector<256x128xf32>
    %c1_55 = arith.constant 1 : index
    %c2_56 = arith.constant 2 : index
    %c0_57 = arith.constant 0 : index
    %50 = vector.load %arg7[%c1_55, %c2_56, %c0_57] : memref<18x18x128xf32, #tpu.memory_space<vmem>>, vector<16x16x128xf32>
    %51 = vector.shape_cast %50 : vector<16x16x128xf32> to vector<256x128xf32>
    %c5 = arith.constant 5 : index
    %c0_58 = arith.constant 0 : index
    %c0_59 = arith.constant 0 : index
    %52 = vector.load %arg4[%c5, %c0_58, %c0_59] : memref<9x128x128xf32, #tpu.memory_space<vmem>>, vector<1x128x128xf32>
    %53 = vector.shape_cast %52 : vector<1x128x128xf32> to vector<128x128xf32>
    %cst_60 = arith.constant dense<0.000000e+00> : vector<256x128xf32>
    %54 = tpu.matmul %51, %53, %cst_60 {dimension_numbers = #tpu.dot_dimension_numbers<[1], [0], [0], [1], [0, 0, 1, 1], [], []>} : vector<256x128xf32>, vector<128x128xf32>, vector<256x128xf32> -> vector<256x128xf32>
    %55 = arith.addf %49, %54 : vector<256x128xf32>
    %c2_61 = arith.constant 2 : index
    %c0_62 = arith.constant 0 : index
    %c0_63 = arith.constant 0 : index
    %56 = vector.load %arg7[%c2_61, %c0_62, %c0_63] : memref<18x18x128xf32, #tpu.memory_space<vmem>>, vector<16x16x128xf32>
    %57 = vector.shape_cast %56 : vector<16x16x128xf32> to vector<256x128xf32>
    %c6 = arith.constant 6 : index
    %c0_64 = arith.constant 0 : index
    %c0_65 = arith.constant 0 : index
    %58 = vector.load %arg4[%c6, %c0_64, %c0_65] : memref<9x128x128xf32, #tpu.memory_space<vmem>>, vector<1x128x128xf32>
    %59 = vector.shape_cast %58 : vector<1x128x128xf32> to vector<128x128xf32>
    %cst_66 = arith.constant dense<0.000000e+00> : vector<256x128xf32>
    %60 = tpu.matmul %57, %59, %cst_66 {dimension_numbers = #tpu.dot_dimension_numbers<[1], [0], [0], [1], [0, 0, 1, 1], [], []>} : vector<256x128xf32>, vector<128x128xf32>, vector<256x128xf32> -> vector<256x128xf32>
    %61 = arith.addf %55, %60 : vector<256x128xf32>
    %c2_67 = arith.constant 2 : index
    %c1_68 = arith.constant 1 : index
    %c0_69 = arith.constant 0 : index
    %62 = vector.load %arg7[%c2_67, %c1_68, %c0_69] : memref<18x18x128xf32, #tpu.memory_space<vmem>>, vector<16x16x128xf32>
    %63 = vector.shape_cast %62 : vector<16x16x128xf32> to vector<256x128xf32>
    %c7 = arith.constant 7 : index
    %c0_70 = arith.constant 0 : index
    %c0_71 = arith.constant 0 : index
    %64 = vector.load %arg4[%c7, %c0_70, %c0_71] : memref<9x128x128xf32, #tpu.memory_space<vmem>>, vector<1x128x128xf32>
    %65 = vector.shape_cast %64 : vector<1x128x128xf32> to vector<128x128xf32>
    %cst_72 = arith.constant dense<0.000000e+00> : vector<256x128xf32>
    %66 = tpu.matmul %63, %65, %cst_72 {dimension_numbers = #tpu.dot_dimension_numbers<[1], [0], [0], [1], [0, 0, 1, 1], [], []>} : vector<256x128xf32>, vector<128x128xf32>, vector<256x128xf32> -> vector<256x128xf32>
    %67 = arith.addf %61, %66 : vector<256x128xf32>
    %c2_73 = arith.constant 2 : index
    %c2_74 = arith.constant 2 : index
    %c0_75 = arith.constant 0 : index
    %68 = vector.load %arg7[%c2_73, %c2_74, %c0_75] : memref<18x18x128xf32, #tpu.memory_space<vmem>>, vector<16x16x128xf32>
    %69 = vector.shape_cast %68 : vector<16x16x128xf32> to vector<256x128xf32>
    %c8 = arith.constant 8 : index
    %c0_76 = arith.constant 0 : index
    %c0_77 = arith.constant 0 : index
    %70 = vector.load %arg4[%c8, %c0_76, %c0_77] : memref<9x128x128xf32, #tpu.memory_space<vmem>>, vector<1x128x128xf32>
    %71 = vector.shape_cast %70 : vector<1x128x128xf32> to vector<128x128xf32>
    %cst_78 = arith.constant dense<0.000000e+00> : vector<256x128xf32>
    %72 = tpu.matmul %69, %71, %cst_78 {dimension_numbers = #tpu.dot_dimension_numbers<[1], [0], [0], [1], [0, 0, 1, 1], [], []>} : vector<256x128xf32>, vector<128x128xf32>, vector<256x128xf32> -> vector<256x128xf32>
    %73 = arith.addf %67, %72 : vector<256x128xf32>
    %74 = vector.shape_cast %73 : vector<256x128xf32> to vector<16x16x128xf32>
    %c0_79 = arith.constant 0 : index
    %c0_80 = arith.constant 0 : index
    %c0_81 = arith.constant 0 : index
    %c0_82 = arith.constant 0 : index
    %75 = vector.load %arg5[%c0_79, %c0_80, %c0_81, %c0_82] : memref<1x16x16x128xf32, #tpu.memory_space<vmem>>, vector<1x16x16x128xf32>
    %76 = vector.shape_cast %75 : vector<1x16x16x128xf32> to vector<16x16x128xf32>
    %77 = vector.shape_cast %74 : vector<16x16x128xf32> to vector<1x16x16x128xf32>
    tpu.vector_store %arg5[%c0_79, %c0_80, %c0_81, %c0_82], %77 {strides = array<i32>} : memref<1x16x16x128xf32, #tpu.memory_space<vmem>>, vector<1x16x16x128xf32>,
    %cst_83 = arith.constant dense<0.000000e+00> : vector<128xf32>
    %78 = vector.multi_reduction <add>, %73, %cst_83 [0] : vector<256x128xf32> to vector<128xf32>
    %79 = vector.shape_cast %78 : vector<128xf32> to vector<1x128xf32>
    %c0_84 = arith.constant 0 : index
    %c0_85 = arith.constant 0 : index
    %c0_86 = arith.constant 0 : index
    %80 = vector.load %arg6[%c0_84, %c0_85, %c0_86] : memref<1x2x128xf32, #tpu.memory_space<vmem>>, vector<1x1x128xf32>
    %81 = vector.shape_cast %80 : vector<1x1x128xf32> to vector<1x128xf32>
    %82 = vector.shape_cast %79 : vector<1x128xf32> to vector<1x1x128xf32>
    tpu.vector_store %arg6[%c0_84, %c0_85, %c0_86], %82 {strides = array<i32>} : memref<1x2x128xf32, #tpu.memory_space<vmem>>, vector<1x1x128xf32>,
    %83 = arith.mulf %73, %73 : vector<256x128xf32>
    %cst_87 = arith.constant dense<0.000000e+00> : vector<128xf32>
    %84 = vector.multi_reduction <add>, %83, %cst_87 [0] : vector<256x128xf32> to vector<128xf32>
    %85 = vector.shape_cast %84 : vector<128xf32> to vector<1x128xf32>
    %c0_88 = arith.constant 0 : index
    %c1_89 = arith.constant 1 : index
    %c0_90 = arith.constant 0 : index
    %86 = vector.load %arg6[%c0_88, %c1_89, %c0_90] : memref<1x2x128xf32, #tpu.memory_space<vmem>>, vector<1x1x128xf32>
    %87 = vector.shape_cast %86 : vector<1x1x128xf32> to vector<1x128xf32>
    %88 = vector.shape_cast %85 : vector<1x128xf32> to vector<1x1x128xf32>
    tpu.vector_store %arg6[%c0_88, %c1_89, %c0_90], %88 {strides = array<i32>} : memref<1x2x128xf32, #tpu.memory_space<vmem>>, vector<1x1x128xf32>,
    return
  }
  func.func @transform_0(%arg0: i32) -> (i32, i32, i32, i32) {
    %c0_i32 = arith.constant 0 : i32
    %c0_i32_0 = arith.constant 0 : i32
    %c0_i32_1 = arith.constant 0 : i32
    %c0_i32_2 = arith.constant 0 : i32
    return %arg0, %c0_i32, %c0_i32_0, %c0_i32_1 : i32, i32, i32, i32
  }
  func.func @transform_1(%arg0: i32) -> (i32, i32) {
    %c0_i32 = arith.constant 0 : i32
    %c0_i32_0 = arith.constant 0 : i32
    %c0_i32_1 = arith.constant 0 : i32
    return %c0_i32, %c0_i32_0 : i32, i32
  }
  func.func @transform_2(%arg0: i32) -> (i32, i32) {
    %c0_i32 = arith.constant 0 : i32
    %c0_i32_0 = arith.constant 0 : i32
    %c0_i32_1 = arith.constant 0 : i32
    return %c0_i32, %c0_i32_0 : i32, i32
  }
  func.func @transform_3(%arg0: i32) -> (i32, i32, i32) {
    %c0_i32 = arith.constant 0 : i32
    %c0_i32_0 = arith.constant 0 : i32
    %c0_i32_1 = arith.constant 0 : i32
    %c0_i32_2 = arith.constant 0 : i32
    return %c0_i32, %c0_i32_0, %c0_i32_1 : i32, i32, i32
  }
  func.func @transform_4(%arg0: i32) -> (i32, i32, i32, i32) {
    %c0_i32 = arith.constant 0 : i32
    %c0_i32_0 = arith.constant 0 : i32
    %c0_i32_1 = arith.constant 0 : i32
    %c0_i32_2 = arith.constant 0 : i32
    return %arg0, %c0_i32, %c0_i32_0, %c0_i32_1 : i32, i32, i32, i32
  }
  func.func @transform_5(%arg0: i32) -> (i32, i32, i32) {
    %c0_i32 = arith.constant 0 : i32
    %c0_i32_0 = arith.constant 0 : i32
    %c0_i32_1 = arith.constant 0 : i32
    return %arg0, %c0_i32, %c0_i32_0 : i32, i32, i32
  }
}

</mosaic_0001>

<llo_original>
// kernel: residual_block_pallas.5
$region0: #{residual_block_pallas.5}
  #allocation0 [shape = 'u32[]', space=smem, size = 0x4, offset = 0x4, fixed_abs, tag = 'smem constant byte address 0x4 - core index']
  #allocation1 [shape = 'u32[72,128]{1,0:T(1,128)}', space=vmem, size = 0x9000, scoped, tag = 'internal scratch']
  %s0 = inlined_call_operand.vmem [shape: f32[2,16,16,128], index: 0, kind: input, shape index: {}]
  %s1 = inlined_call_operand.vmem [shape: f32[2,18,18,128], index: 1, kind: input, shape index: {}]
  %s2 = inlined_call_operand.vmem [shape: f32[1,128], index: 2, kind: input, shape index: {}]
  %s3 = inlined_call_operand.vmem [shape: f32[1,128], index: 3, kind: input, shape index: {}]
  %s4 = inlined_call_operand.vmem [shape: f32[2,16,16,128], index: 4, kind: output, shape index: {}]
  %s5 = sld [smem:[#allocation0]]
  $region49: #{residual_block_pallas.5} parent=0
    _
  %s7 = ssub.s32 1, %s5
  %s8 = scalar_select 0, %s7, %s5
  loop: start=0, step=1, limit=4
  $region2: #{residual_block_pallas.5} parent=0 // loop_pre_header
    _
  $region3: #{residual_block_pallas.5} parent=0 // loop_header
    %s10 = sphi 0, %s14
    %p11 = scmp.ge.s32.totalorder %s10, 4
    %s20 = sphi 0, %s22
    %s23 = sphi 0, %s20
    %s24 = sphi 0, %s23
    %s40 = sphi 0, %s24
    %s46 = sphi 0, %s48
    %s49 = sphi 0, %s46
    %s50 = sphi 0, %s49
    %s66 = sphi 0, %s50
    %s70 = sphi 0, %s70
    %s72 = sphi 0, %s70
    %s73 = sphi 0, %s72
    %s87 = sphi 0, %s73
    %s91 = sphi 0, %s91
    %s93 = sphi 0, %s91
    %s94 = sphi 0, %s93
    %s108 = sphi 0, %s94
    %s114 = sphi 0, %s116
    %s117 = sphi 0, %s114
    %s118 = sphi 0, %s117
    %s134 = sphi 0, %s118
  $region4: #{residual_block_pallas.5} parent=0 // loop_header_branch
    %13 = sbr.rel (%p11) target = $region8
  $region5: #{residual_block_pallas.5} parent=0 // loop_body
    %s15 = ssub.s32 %s10, 1
    %s16 = ssub.s32 %s10, 2
    %s17 = sadd.s32 %s10, 1
    %s18 = ssub.s32 %s10, %s17
    %p19 = scmp.eq.s32.totalorder %s18, 0
    %s21 = sadd.s32 %s20, 1
    %s22 = scalar_select %p19, %s20, %s21
    %p25 = pneg %p19
    %p26 = scmp.eq.s32.totalorder %s10, 1
    %p27 = por %p25, %p26
    %p28 = scmp.ne.s32.totalorder %s20, %s23
    %p29 = scmp.eq.s32.totalorder %s10, 0
    %p30 = por %p28, %p29
    %p31 = scmp.ne.s32.totalorder %s20, %s23
    %p32 = scmp.eq.s32.totalorder %s15, 1
    %p33 = por %p31, %p32
    %p34 = scmp.ne.s32.totalorder %s23, %s24
    %p35 = scmp.eq.s32.totalorder %s15, 0
    %p36 = por %p34, %p35
    %p37 = scmp.ne.s32.totalorder %s23, %s24
    %p38 = scmp.eq.s32.totalorder %s16, 1
    %p39 = por %p37, %p38
    %p41 = scmp.ne.s32.totalorder %s24, %s40
    %p42 = scmp.eq.s32.totalorder %s16, 0
    %p43 = por %p41, %p42
    %s44 = ssub.s32 %s10, %s17
    %p45 = scmp.eq.s32.totalorder %s44, 0
    %s47 = sadd.s32 %s46, 1
    %s48 = scalar_select %p45, %s46, %s47
    %p51 = pneg %p45
    %p52 = scmp.eq.s32.totalorder %s10, 1
    %p53 = por %p51, %p52
    %p54 = scmp.ne.s32.totalorder %s46, %s49
    %p55 = scmp.eq.s32.totalorder %s10, 0
    %p56 = por %p54, %p55
    %p57 = scmp.ne.s32.totalorder %s46, %s49
    %p58 = scmp.eq.s32.totalorder %s15, 1
    %p59 = por %p57, %p58
    %p60 = scmp.ne.s32.totalorder %s49, %s50
    %p61 = scmp.eq.s32.totalorder %s15, 0
    %p62 = por %p60, %p61
    %p63 = scmp.ne.s32.totalorder %s49, %s50
    %p64 = scmp.eq.s32.totalorder %s16, 1
    %p65 = por %p63, %p64
    %p67 = scmp.ne.s32.totalorder %s50, %s66
    %p68 = scmp.eq.s32.totalorder %s16, 0
    %p69 = por %p67, %p68
    %s71 = sadd.s32 %s70, 1
    %p74 = scmp.eq.s32.totalorder %s10, 1
    %p75 = scmp.ne.s32.totalorder %s70, %s72
    %p76 = scmp.eq.s32.totalorder %s10, 0
    %p77 = por %p75, %p76
    %p78 = scmp.ne.s32.totalorder %s70, %s72
    %p79 = scmp.eq.s32.totalorder %s15, 1
    %p80 = por %p78, %p79
    %p81 = scmp.ne.s32.totalorder %s72, %s73
    %p82 = scmp.eq.s32.totalorder %s15, 0
    %p83 = por %p81, %p82
    %p84 = scmp.ne.s32.totalorder %s72, %s73
    %p85 = scmp.eq.s32.totalorder %s16, 1
    %p86 = por %p84, %p85
    %p88 = scmp.ne.s32.totalorder %s73, %s87
    %p89 = scmp.eq.s32.totalorder %s16, 0
    %p90 = por %p88, %p89
    %s92 = sadd.s32 %s91, 1
    %p95 = scmp.eq.s32.totalorder %s10, 1
    %p96 = scmp.ne.s32.totalorder %s91, %s93
    %p97 = scmp.eq.s32.totalorder %s10, 0
    %p98 = por %p96, %p97
    %p99 = scmp.ne.s32.totalorder %s91, %s93
    %p100 = scmp.eq.s32.totalorder %s15, 1
    %p101 = por %p99, %p100
    %p102 = scmp.ne.s32.totalorder %s93, %s94
    %p103 = scmp.eq.s32.totalorder %s15, 0
    %p104 = por %p102, %p103
    %p105 = scmp.ne.s32.totalorder %s93, %s94
    %p106 = scmp.eq.s32.totalorder %s16, 1
    %p107 = por %p105, %p106
    %p109 = scmp.ne.s32.totalorder %s94, %s108
    %p110 = scmp.eq.s32.totalorder %s16, 0
    %p111 = por %p109, %p110
    %s112 = ssub.s32 %s10, %s17
    %p113 = scmp.eq.s32.totalorder %s112, 0
    %s115 = sadd.s32 %s114, 1
    %s116 = scalar_select %p113, %s114, %s115
    %p119 = pneg %p113
    %p120 = scmp.eq.s32.totalorder %s10, 1
    %p121 = por %p119, %p120
    %p122 = scmp.ne.s32.totalorder %s114, %s117
    %p123 = scmp.eq.s32.totalorder %s10, 0
    %p124 = por %p122, %p123
    %p125 = scmp.ne.s32.totalorder %s114, %s117
    %p126 = scmp.eq.s32.totalorder %s15, 1
    %p127 = por %p125, %p126
    %p128 = scmp.ne.s32.totalorder %s117, %s118
    %p129 = scmp.eq.s32.totalorder %s15, 0
    %p130 = por %p128, %p129
    %p131 = scmp.ne.s32.totalorder %s117, %s118
    %p132 = scmp.eq.s32.totalorder %s16, 1
    %p133 = por %p131, %p132
    %p135 = scmp.ne.s32.totalorder %s118, %s134
    %p136 = scmp.eq.s32.totalorder %s16, 0
    %p137 = por %p135, %p136
    %p138 = scmp.le.s32.totalorder 1, %s10
    %p139 = scmp.lt.s32.totalorder %s10, 3
    %p140 = pnand %p138, %p139
    %p141 = pneg %p140
    // Predicated region
    $region9: #{residual_block_pallas.5} parent=5 // pred_check
      _
    $region10: #{residual_block_pallas.5} parent=5 // pred_check_branch
      %143 = sbr.rel (%p140) target = $region12
    $region11: #{residual_block_pallas.5} parent=5 // pred_region
      %s144 = ssub.s32 %s10, 1
      // Predicated region
      $region13: #{residual_block_pallas.5} parent=11 // pred_check
        %p145 = pneg %p83
      $region14: #{residual_block_pallas.5} parent=11 // pred_check_branch
        %147 = sbr.rel (%p145) target = $region16
      $region15: #{residual_block_pallas.5} parent=11 // pred_region
        _
      $region16: #{residual_block_pallas.5} parent=11 // pred_fallthru
        _
      // Predicated region
      $region17: #{residual_block_pallas.5} parent=11 // pred_check
        %p148 = pneg %p104
      $region18: #{residual_block_pallas.5} parent=11 // pred_check_branch
        %150 = sbr.rel (%p148) target = $region20
      $region19: #{residual_block_pallas.5} parent=11 // pred_region
        _
      $region20: #{residual_block_pallas.5} parent=11 // pred_fallthru
        _
    $region12: #{residual_block_pallas.5} parent=5 // pred_fallthru
      _
    %p151 = scmp.lt.s32.totalorder %s10, 2
    // Predicated region
    $region21: #{residual_block_pallas.5} parent=5 // pred_check
      %p152 = pneg %p151
    $region22: #{residual_block_pallas.5} parent=5 // pred_check_branch
      %154 = sbr.rel (%p152) target = $region24
    $region23: #{residual_block_pallas.5} parent=5 // pred_region
      // Predicated region
      $region25: #{residual_block_pallas.5} parent=23 // pred_check
        %p155 = pneg %p30
      $region26: #{residual_block_pallas.5} parent=23 // pred_check_branch
        %157 = sbr.rel (%p155) target = $region28
      $region27: #{residual_block_pallas.5} parent=23 // pred_region
        %p158 = scmp.lt.s32.totalorder %s10, 1
        %s159 = scalar_select %p158, %s10, 1
        %s160 = smul.addr %s159, 32
        %s161 = smul.addr %s160, 8
        %s162 = scalar_lea.vmem %s0, %s161
      $region28: #{residual_block_pallas.5} parent=23 // pred_fallthru
        _
      // Predicated region
      $region29: #{residual_block_pallas.5} parent=23 // pred_check
        %p163 = pneg %p56
      $region30: #{residual_block_pallas.5} parent=23 // pred_check_branch
        %165 = sbr.rel (%p163) target = $region32
      $region31: #{residual_block_pallas.5} parent=23 // pred_region
        %p166 = scmp.lt.s32.totalorder %s10, 1
        %s167 = scalar_select %p166, %s10, 1
        %s168 = smul.addr %s167, 54
        %s169 = smul.addr %s168, 8
        %s170 = scalar_lea.vmem %s1, %s169
      $region32: #{residual_block_pallas.5} parent=23 // pred_fallthru
        _
    $region24: #{residual_block_pallas.5} parent=5 // pred_fallthru
      _
    %p171 = scmp.le.s32.totalorder 1, %s10
    %p172 = scmp.lt.s32.totalorder %s10, 3
    %p173 = pnand %p171, %p172
    %p174 = pneg %p173
    // Predicated region
    $region33: #{residual_block_pallas.5} parent=5 // pred_check
      _
    $region34: #{residual_block_pallas.5} parent=5 // pred_check_branch
      %176 = sbr.rel (%p173) target = $region36
    $region35: #{residual_block_pallas.5} parent=5 // pred_region
      %s177 = ssub.s32 %s10, 1
      %p178 = scmp.lt.s32.totalorder %s15, 1
      %s179 = scalar_select %p178, %s15, 1
      %s180 = smul.addr %s179, 32
      %s181 = smul.addr %s180, 8
      %s182 = scalar_lea.vmem %s0, %s181
      %p183 = pneg %p36
      %p184 = pneg %p33
      %p185 = scmp.lt.s32.totalorder %s15, 1
      %s186 = scalar_select %p185, %s15, 1
      %s187 = smul.addr %s186, 54
      %s188 = smul.addr %s187, 8
      %s189 = scalar_lea.vmem %s1, %s188
      %p190 = pneg %p62
      %p191 = pneg %p59
      %p192 = pneg %p83
      %p193 = pneg %p80
      %p194 = pneg %p104
      %p195 = pneg %p101
      %p196 = pneg %p130
      %p197 = pneg %p127
      %p198 = scmp.lt.s32.totalorder %s15, 1
      %s199 = scalar_select %p198, %s15, 1
      %s200 = smul.addr %s199, 32
      %s201 = smul.addr %s200, 8
      %s202 = scalar_lea.vmem %s4, %s201
      %p203 = scmp.lt.s32.totalorder %s15, 1
      %s204 = scalar_select %p203, %s15, 1
      %s205 = smul.addr %s204, 32
      %s206 = smul.addr %s205, 8
      %s207 = scalar_lea.vmem %s0, %s206
      %p208 = scmp.lt.s32.totalorder %s15, 1
      %s209 = scalar_select %p208, %s15, 1
      %s210 = smul.addr %s209, 54
      %s211 = smul.addr %s210, 8
      %s212 = scalar_lea.vmem %s1, %s211
      %p213 = scmp.lt.s32.totalorder %s15, 1
      %s214 = scalar_select %p213, %s15, 1
      %s215 = smul.addr %s214, 32
      %s216 = smul.addr %s215, 8
      %s217 = scalar_lea.vmem %s4, %s216
      %s218 = scalar_lea.vmem %s212, 24
      %v219 = vld [vmem:[%s218 + $0x1] sm:$0xff]
      %v220 = vld [vmem:[%s218 + $0x9] sm:$0xff]
      %v221 = vld [vmem:[%s218 + $0x19] sm:$0xff]
      %v222 = vld [vmem:[%s218 + $0x21] sm:$0xff]
      %v223 = vld [vmem:[%s218 + $0x31] sm:$0xff]
      %v224 = vld [vmem:[%s218 + $0x39] sm:$0xff]
      %v225 = vld [vmem:[%s218 + $0x49] sm:$0xff]
      %v226 = vld [vmem:[%s218 + $0x51] sm:$0xff]
      %v227 = vld [vmem:[%s218 + $0x61] sm:$0xff]
      %v228 = vld [vmem:[%s218 + $0x69] sm:$0xff]
      %v229 = vld [vmem:[%s218 + $0x79] sm:$0xff]
      %v230 = vld [vmem:[%s218 + $0x81] sm:$0xff]
      %v231 = vld [vmem:[%s218 + $0x91] sm:$0xff]
      %v232 = vld [vmem:[%s218 + $0x99] sm:$0xff]
      %v233 = vld [vmem:[%s218 + $0xa9] sm:$0xff]
      %v234 = vld [vmem:[%s218 + $0xb1] sm:$0xff]
      %v235 = vld [vmem:[%s218 + $0xc1] sm:$0xff]
      %v236 = vld [vmem:[%s218 + $0xc9] sm:$0xff]
      %v237 = vld [vmem:[%s218 + $0xd9] sm:$0xff]
      %v238 = vld [vmem:[%s218 + $0xe1] sm:$0xff]
      %v239 = vld [vmem:[%s218 + $0xf1] sm:$0xff]
      %v240 = vld [vmem:[%s218 + $0xf9] sm:$0xff]
      %v241 = vld [vmem:[%s218 + $0x109] sm:$0xff]
      %v242 = vld [vmem:[%s218 + $0x111] sm:$0xff]
      %v243 = vld [vmem:[%s218 + $0x121] sm:$0xff]
      %v244 = vld [vmem:[%s218 + $0x129] sm:$0xff]
      %v245 = vld [vmem:[%s218 + $0x139] sm:$0xff]
      %v246 = vld [vmem:[%s218 + $0x141] sm:$0xff]
      %v247 = vld [vmem:[%s218 + $0x151] sm:$0xff]
      %v248 = vld [vmem:[%s218 + $0x159] sm:$0xff]
      %v249 = vld [vmem:[%s218 + $0x169] sm:$0xff]
      %v250 = vld [vmem:[%s218 + $0x171] sm:$0xff]
      %v251 = vld [vmem:[%s207] sm:$0xff]
      %v252 = vld [vmem:[%s207 + $0x8] sm:$0xff]
      %v253 = vld [vmem:[%s207 + $0x10] sm:$0xff]
      %v254 = vld [vmem:[%s207 + $0x18] sm:$0xff]
      %v255 = vld [vmem:[%s207 + $0x20] sm:$0xff]
      %v256 = vld [vmem:[%s207 + $0x28] sm:$0xff]
      %v257 = vld [vmem:[%s207 + $0x30] sm:$0xff]
      %v258 = vld [vmem:[%s207 + $0x38] sm:$0xff]
      %v259 = vld [vmem:[%s207 + $0x40] sm:$0xff]
      %v260 = vld [vmem:[%s207 + $0x48] sm:$0xff]
      %v261 = vld [vmem:[%s207 + $0x50] sm:$0xff]
      %v262 = vld [vmem:[%s207 + $0x58] sm:$0xff]
      %v263 = vld [vmem:[%s207 + $0x60] sm:$0xff]
      %v264 = vld [vmem:[%s207 + $0x68] sm:$0xff]
      %v265 = vld [vmem:[%s207 + $0x70] sm:$0xff]
      %v266 = vld [vmem:[%s207 + $0x78] sm:$0xff]
      %v267 = vld [vmem:[%s207 + $0x80] sm:$0xff]
      %v268 = vld [vmem:[%s207 + $0x88] sm:$0xff]
      %v269 = vld [vmem:[%s207 + $0x90] sm:$0xff]
      %v270 = vld [vmem:[%s207 + $0x98] sm:$0xff]
      %v271 = vld [vmem:[%s207 + $0xa0] sm:$0xff]
      %v272 = vld [vmem:[%s207 + $0xa8] sm:$0xff]
      %v273 = vld [vmem:[%s207 + $0xb0] sm:$0xff]
      %v274 = vld [vmem:[%s207 + $0xb8] sm:$0xff]
      %v275 = vld [vmem:[%s207 + $0xc0] sm:$0xff]
      %v276 = vld [vmem:[%s207 + $0xc8] sm:$0xff]
      %v277 = vld [vmem:[%s207 + $0xd0] sm:$0xff]
      %v278 = vld [vmem:[%s207 + $0xd8] sm:$0xff]
      %v279 = vld [vmem:[%s207 + $0xe0] sm:$0xff]
      %v280 = vld [vmem:[%s207 + $0xe8] sm:$0xff]
      %v281 = vld [vmem:[%s207 + $0xf0] sm:$0xff]
      %v282 = vld [vmem:[%s207 + $0xf8] sm:$0xff]
      %v283 = vld [vmem:[%s2] sm:$0x1]
      %v285 = vperm.slane %v283, 0
      %v287 = vmul.f32 %v251, %v285
      %v288 = vmul.f32 %v252, %v285
      %v289 = vmul.f32 %v253, %v285
      %v290 = vmul.f32 %v254, %v285
      %v291 = vmul.f32 %v255, %v285
      %v292 = vmul.f32 %v256, %v285
      %v293 = vmul.f32 %v257, %v285
      %v294 = vmul.f32 %v258, %v285
      %v295 = vmul.f32 %v259, %v285
      %v296 = vmul.f32 %v260, %v285
      %v297 = vmul.f32 %v261, %v285
      %v298 = vmul.f32 %v262, %v285
      %v299 = vmul.f32 %v263, %v285
      %v300 = vmul.f32 %v264, %v285
      %v301 = vmul.f32 %v265, %v285
      %v302 = vmul.f32 %v266, %v285
      %v303 = vmul.f32 %v267, %v285
      %v304 = vmul.f32 %v268, %v285
      %v305 = vmul.f32 %v269, %v285
      %v306 = vmul.f32 %v270, %v285
      %v307 = vmul.f32 %v271, %v285
      %v308 = vmul.f32 %v272, %v285
      %v309 = vmul.f32 %v273, %v285
      %v310 = vmul.f32 %v274, %v285
      %v311 = vmul.f32 %v275, %v285
      %v312 = vmul.f32 %v276, %v285
      %v313 = vmul.f32 %v277, %v285
      %v314 = vmul.f32 %v278, %v285
      %v315 = vmul.f32 %v279, %v285
      %v316 = vmul.f32 %v280, %v285
      %v317 = vmul.f32 %v281, %v285
      %v318 = vmul.f32 %v282, %v285
      %v319 = vld [vmem:[%s3] sm:$0x1]
      %v321 = vperm.slane %v319, 0
      %v323 = vadd.f32 %v287, %v321
      %v324 = vadd.f32 %v288, %v321
      %v325 = vadd.f32 %v289, %v321
      %v326 = vadd.f32 %v290, %v321
      %v327 = vadd.f32 %v291, %v321
      %v328 = vadd.f32 %v292, %v321
      %v329 = vadd.f32 %v293, %v321
      %v330 = vadd.f32 %v294, %v321
      %v331 = vadd.f32 %v295, %v321
      %v332 = vadd.f32 %v296, %v321
      %v333 = vadd.f32 %v297, %v321
      %v334 = vadd.f32 %v298, %v321
      %v335 = vadd.f32 %v299, %v321
      %v336 = vadd.f32 %v300, %v321
      %v337 = vadd.f32 %v301, %v321
      %v338 = vadd.f32 %v302, %v321
      %v339 = vadd.f32 %v303, %v321
      %v340 = vadd.f32 %v304, %v321
      %v341 = vadd.f32 %v305, %v321
      %v342 = vadd.f32 %v306, %v321
      %v343 = vadd.f32 %v307, %v321
      %v344 = vadd.f32 %v308, %v321
      %v345 = vadd.f32 %v309, %v321
      %v346 = vadd.f32 %v310, %v321
      %v347 = vadd.f32 %v311, %v321
      %v348 = vadd.f32 %v312, %v321
      %v349 = vadd.f32 %v313, %v321
      %v350 = vadd.f32 %v314, %v321
      %v351 = vadd.f32 %v315, %v321
      %v352 = vadd.f32 %v316, %v321
      %v353 = vadd.f32 %v317, %v321
      %v354 = vadd.f32 %v318, %v321
      %v355 = vadd.f32 %v323, %v219
      %v356 = vadd.f32 %v324, %v220
      %v357 = vadd.f32 %v325, %v221
      %v358 = vadd.f32 %v326, %v222
      %v359 = vadd.f32 %v327, %v223
      %v360 = vadd.f32 %v328, %v224
      %v361 = vadd.f32 %v329, %v225
      %v362 = vadd.f32 %v330, %v226
      %v363 = vadd.f32 %v331, %v227
      %v364 = vadd.f32 %v332, %v228
      %v365 = vadd.f32 %v333, %v229
      %v366 = vadd.f32 %v334, %v230
      %v367 = vadd.f32 %v335, %v231
      %v368 = vadd.f32 %v336, %v232
      %v369 = vadd.f32 %v337, %v233
      %v370 = vadd.f32 %v338, %v234
      %v371 = vadd.f32 %v339, %v235
      %v372 = vadd.f32 %v340, %v236
      %v373 = vadd.f32 %v341, %v237
      %v374 = vadd.f32 %v342, %v238
      %v375 = vadd.f32 %v343, %v239
      %v376 = vadd.f32 %v344, %v240
      %v377 = vadd.f32 %v345, %v241
      %v378 = vadd.f32 %v346, %v242
      %v379 = vadd.f32 %v347, %v243
      %v380 = vadd.f32 %v348, %v244
      %v381 = vadd.f32 %v349, %v245
      %v382 = vadd.f32 %v350, %v246
      %v383 = vadd.f32 %v351, %v247
      %v384 = vadd.f32 %v352, %v248
      %v385 = vadd.f32 %v353, %v249
      %v386 = vadd.f32 %v354, %v250
      %v387 = vmax.f32 %v355, 0.0
      %v388 = vmax.f32 %v356, 0.0
      %v389 = vmax.f32 %v357, 0.0
      %v390 = vmax.f32 %v358, 0.0
      %v391 = vmax.f32 %v359, 0.0
      %v392 = vmax.f32 %v360, 0.0
      %v393 = vmax.f32 %v361, 0.0
      %v394 = vmax.f32 %v362, 0.0
      %v395 = vmax.f32 %v363, 0.0
      %v396 = vmax.f32 %v364, 0.0
      %v397 = vmax.f32 %v365, 0.0
      %v398 = vmax.f32 %v366, 0.0
      %v399 = vmax.f32 %v367, 0.0
      %v400 = vmax.f32 %v368, 0.0
      %v401 = vmax.f32 %v369, 0.0
      %v402 = vmax.f32 %v370, 0.0
      %v403 = vmax.f32 %v371, 0.0
      %v404 = vmax.f32 %v372, 0.0
      %v405 = vmax.f32 %v373, 0.0
      %v406 = vmax.f32 %v374, 0.0
      %v407 = vmax.f32 %v375, 0.0
      %v408 = vmax.f32 %v376, 0.0
      %v409 = vmax.f32 %v377, 0.0
      %v410 = vmax.f32 %v378, 0.0
      %v411 = vmax.f32 %v379, 0.0
      %v412 = vmax.f32 %v380, 0.0
      %v413 = vmax.f32 %v381, 0.0
      %v414 = vmax.f32 %v382, 0.0
      %v415 = vmax.f32 %v383, 0.0
      %v416 = vmax.f32 %v384, 0.0
      %v417 = vmax.f32 %v385, 0.0
      %v418 = vmax.f32 %v386, 0.0
      %419 = vst [vmem:[%s217] sm:$0xff] %v387
      %420 = vst [vmem:[%s217 + $0x8] sm:$0xff] %v388
      %421 = vst [vmem:[%s217 + $0x10] sm:$0xff] %v389
      %422 = vst [vmem:[%s217 + $0x18] sm:$0xff] %v390
      %423 = vst [vmem:[%s217 + $0x20] sm:$0xff] %v391
      %424 = vst [vmem:[%s217 + $0x28] sm:$0xff] %v392
      %425 = vst [vmem:[%s217 + $0x30] sm:$0xff] %v393
      %426 = vst [vmem:[%s217 + $0x38] sm:$0xff] %v394
      %427 = vst [vmem:[%s217 + $0x40] sm:$0xff] %v395
      %428 = vst [vmem:[%s217 + $0x48] sm:$0xff] %v396
      %429 = vst [vmem:[%s217 + $0x50] sm:$0xff] %v397
      %430 = vst [vmem:[%s217 + $0x58] sm:$0xff] %v398
      %431 = vst [vmem:[%s217 + $0x60] sm:$0xff] %v399
      %432 = vst [vmem:[%s217 + $0x68] sm:$0xff] %v400
      %433 = vst [vmem:[%s217 + $0x70] sm:$0xff] %v401
      %434 = vst [vmem:[%s217 + $0x78] sm:$0xff] %v402
      %435 = vst [vmem:[%s217 + $0x80] sm:$0xff] %v403
      %436 = vst [vmem:[%s217 + $0x88] sm:$0xff] %v404
      %437 = vst [vmem:[%s217 + $0x90] sm:$0xff] %v405
      %438 = vst [vmem:[%s217 + $0x98] sm:$0xff] %v406
      %439 = vst [vmem:[%s217 + $0xa0] sm:$0xff] %v407
      %440 = vst [vmem:[%s217 + $0xa8] sm:$0xff] %v408
      %441 = vst [vmem:[%s217 + $0xb0] sm:$0xff] %v409
      %442 = vst [vmem:[%s217 + $0xb8] sm:$0xff] %v410
      %443 = vst [vmem:[%s217 + $0xc0] sm:$0xff] %v411
      %444 = vst [vmem:[%s217 + $0xc8] sm:$0xff] %v412
      %445 = vst [vmem:[%s217 + $0xd0] sm:$0xff] %v413
      %446 = vst [vmem:[%s217 + $0xd8] sm:$0xff] %v414
      %447 = vst [vmem:[%s217 + $0xe0] sm:$0xff] %v415
      %448 = vst [vmem:[%s217 + $0xe8] sm:$0xff] %v416
      %449 = vst [vmem:[%s217 + $0xf0] sm:$0xff] %v417
      %450 = vst [vmem:[%s217 + $0xf8] sm:$0xff] %v418
      %p451 = scmp.lt.s32.totalorder %s15, 1
      %s452 = scalar_select %p451, %s15, 1
      %s453 = smul.addr %s452, 32
      %s454 = smul.addr %s453, 8
      %s455 = scalar_lea.vmem %s4, %s454
      // Predicated region
      $region37: #{residual_block_pallas.5} parent=35 // pred_check
        %p456 = pneg %p127
      $region38: #{residual_block_pallas.5} parent=35 // pred_check_branch
        %458 = sbr.rel (%p456) target = $region40
      $region39: #{residual_block_pallas.5} parent=35 // pred_region
        _
      $region40: #{residual_block_pallas.5} parent=35 // pred_fallthru
        _
    $region36: #{residual_block_pallas.5} parent=5 // pred_fallthru
      _
    %p459 = scmp.le.s32.totalorder 2, %s10
    // Predicated region
    $region41: #{residual_block_pallas.5} parent=5 // pred_check
      %p460 = pneg %p459
    $region42: #{residual_block_pallas.5} parent=5 // pred_check_branch
      %462 = sbr.rel (%p460) target = $region44
    $region43: #{residual_block_pallas.5} parent=5 // pred_region
      %s463 = ssub.s32 %s10, 2
      // Predicated region
      $region45: #{residual_block_pallas.5} parent=43 // pred_check
        %p464 = pneg %p133
      $region46: #{residual_block_pallas.5} parent=43 // pred_check_branch
        %466 = sbr.rel (%p464) target = $region48
      $region47: #{residual_block_pallas.5} parent=43 // pred_region
        %p467 = scmp.lt.s32.totalorder %s16, 1
        %s468 = scalar_select %p467, %s16, 1
        %s469 = smul.addr %s468, 32
        %s470 = smul.addr %s469, 8
        %s471 = scalar_lea.vmem %s4, %s470
      $region48: #{residual_block_pallas.5} parent=43 // pred_fallthru
        _
    $region44: #{residual_block_pallas.5} parent=5 // pred_fallthru
      _
  $region6: #{residual_block_pallas.5} parent=0 // loop_footer
    %s14 = sadd.s32 1, %s10
  $region7: #{residual_block_pallas.5} parent=0 // loop_footer_branch
    %9 = sbr.rel target = $region3
  $region8: #{residual_block_pallas.5} parent=0 // loop_exit
    _

// kernel: residual_block_pallas.3
$region0: #{residual_block_pallas.3}
  #allocation0 [shape = 'u32[]', space=smem, size = 0x4, offset = 0x4, fixed_abs, tag = 'smem constant byte address 0x4 - core index']
  #allocation1 [shape = 'u32[72,128]{1,0:T(1,128)}', space=vmem, size = 0x9000, scoped, tag = 'internal scratch']
  %s0 = inlined_call_operand.vmem [shape: f32[2,18,18,128], index: 0, kind: input, shape index: {}]
  %s1 = inlined_call_operand.vmem [shape: f32[9,128,128], index: 1, kind: input, shape index: {}]
  %s2 = inlined_call_operand.vmem [shape: f32[2,16,16,128], index: 2, kind: output, shape index: {0}]
  %s3 = inlined_call_operand.vmem [shape: f32[2,2,128], index: 3, kind: output, shape index: {1}]
  %4 = xla_tuple %s2, %s3
  %s5 = sld [smem:[#allocation0]]
  $region49: #{residual_block_pallas.3} parent=0
    _
  %s7 = ssub.s32 1, %s5
  %s8 = scalar_select 0, %s7, %s5
  loop: start=0, step=1, limit=4
  $region2: #{residual_block_pallas.3} parent=0 // loop_pre_header
    _
  $region3: #{residual_block_pallas.3} parent=0 // loop_header
    %s10 = sphi 0, %s14
    %p11 = scmp.ge.s32.totalorder %s10, 4
    %s20 = sphi 0, %s22
    %s23 = sphi 0, %s20
    %s24 = sphi 0, %s23
    %s40 = sphi 0, %s24
    %s44 = sphi 0, %s44
    %s46 = sphi 0, %s44
    %s47 = sphi 0, %s46
    %s61 = sphi 0, %s47
    %s67 = sphi 0, %s69
    %s70 = sphi 0, %s67
    %s71 = sphi 0, %s70
    %s87 = sphi 0, %s71
    %s93 = sphi 0, %s95
    %s96 = sphi 0, %s93
    %s97 = sphi 0, %s96
    %s113 = sphi 0, %s97
  $region4: #{residual_block_pallas.3} parent=0 // loop_header_branch
    %13 = sbr.rel (%p11) target = $region8
  $region5: #{residual_block_pallas.3} parent=0 // loop_body
    %s15 = ssub.s32 %s10, 1
    %s16 = ssub.s32 %s10, 2
    %s17 = sadd.s32 %s10, 1
    %s18 = ssub.s32 %s10, %s17
    %p19 = scmp.eq.s32.totalorder %s18, 0
    %s21 = sadd.s32 %s20, 1
    %s22 = scalar_select %p19, %s20, %s21
    %p25 = pneg %p19
    %p26 = scmp.eq.s32.totalorder %s10, 1
    %p27 = por %p25, %p26
    %p28 = scmp.ne.s32.totalorder %s20, %s23
    %p29 = scmp.eq.s32.totalorder %s10, 0
    %p30 = por %p28, %p29
    %p31 = scmp.ne.s32.totalorder %s20, %s23
    %p32 = scmp.eq.s32.totalorder %s15, 1
    %p33 = por %p31, %p32
    %p34 = scmp.ne.s32.totalorder %s23, %s24
    %p35 = scmp.eq.s32.totalorder %s15, 0
    %p36 = por %p34, %p35
    %p37 = scmp.ne.s32.totalorder %s23, %s24
    %p38 = scmp.eq.s32.totalorder %s16, 1
    %p39 = por %p37, %p38
    %p41 = scmp.ne.s32.totalorder %s24, %s40
    %p42 = scmp.eq.s32.totalorder %s16, 0
    %p43 = por %p41, %p42
    %s45 = sadd.s32 %s44, 1
    %p48 = scmp.eq.s32.totalorder %s10, 1
    %p49 = scmp.ne.s32.totalorder %s44, %s46
    %p50 = scmp.eq.s32.totalorder %s10, 0
    %p51 = por %p49, %p50
    %p52 = scmp.ne.s32.totalorder %s44, %s46
    %p53 = scmp.eq.s32.totalorder %s15, 1
    %p54 = por %p52, %p53
    %p55 = scmp.ne.s32.totalorder %s46, %s47
    %p56 = scmp.eq.s32.totalorder %s15, 0
    %p57 = por %p55, %p56
    %p58 = scmp.ne.s32.totalorder %s46, %s47
    %p59 = scmp.eq.s32.totalorder %s16, 1
    %p60 = por %p58, %p59
    %p62 = scmp.ne.s32.totalorder %s47, %s61
    %p63 = scmp.eq.s32.totalorder %s16, 0
    %p64 = por %p62, %p63
    %s65 = ssub.s32 %s10, %s17
    %p66 = scmp.eq.s32.totalorder %s65, 0
    %s68 = sadd.s32 %s67, 1
    %s69 = scalar_select %p66, %s67, %s68
    %p72 = pneg %p66
    %p73 = scmp.eq.s32.totalorder %s10, 1
    %p74 = por %p72, %p73
    %p75 = scmp.ne.s32.totalorder %s67, %s70
    %p76 = scmp.eq.s32.totalorder %s10, 0
    %p77 = por %p75, %p76
    %p78 = scmp.ne.s32.totalorder %s67, %s70
    %p79 = scmp.eq.s32.totalorder %s15, 1
    %p80 = por %p78, %p79
    %p81 = scmp.ne.s32.totalorder %s70, %s71
    %p82 = scmp.eq.s32.totalorder %s15, 0
    %p83 = por %p81, %p82
    %p84 = scmp.ne.s32.totalorder %s70, %s71
    %p85 = scmp.eq.s32.totalorder %s16, 1
    %p86 = por %p84, %p85
    %p88 = scmp.ne.s32.totalorder %s71, %s87
    %p89 = scmp.eq.s32.totalorder %s16, 0
    %p90 = por %p88, %p89
    %s91 = ssub.s32 %s10, %s17
    %p92 = scmp.eq.s32.totalorder %s91, 0
    %s94 = sadd.s32 %s93, 1
    %s95 = scalar_select %p92, %s93, %s94
    %p98 = pneg %p92
    %p99 = scmp.eq.s32.totalorder %s10, 1
    %p100 = por %p98, %p99
    %p101 = scmp.ne.s32.totalorder %s93, %s96
    %p102 = scmp.eq.s32.totalorder %s10, 0
    %p103 = por %p101, %p102
    %p104 = scmp.ne.s32.totalorder %s93, %s96
    %p105 = scmp.eq.s32.totalorder %s15, 1
    %p106 = por %p104, %p105
    %p107 = scmp.ne.s32.totalorder %s96, %s97
    %p108 = scmp.eq.s32.totalorder %s15, 0
    %p109 = por %p107, %p108
    %p110 = scmp.ne.s32.totalorder %s96, %s97
    %p111 = scmp.eq.s32.totalorder %s16, 1
    %p112 = por %p110, %p111
    %p114 = scmp.ne.s32.totalorder %s97, %s113
    %p115 = scmp.eq.s32.totalorder %s16, 0
    %p116 = por %p114, %p115
    %p117 = scmp.le.s32.totalorder 1, %s10
    %p118 = scmp.lt.s32.totalorder %s10, 3
    %p119 = pnand %p117, %p118
    %p120 = pneg %p119
    // Predicated region
    $region9: #{residual_block_pallas.3} parent=5 // pred_check
      _
    $region10: #{residual_block_pallas.3} parent=5 // pred_check_branch
      %122 = sbr.rel (%p119) target = $region12
    $region11: #{residual_block_pallas.3} parent=5 // pred_region
      %s123 = ssub.s32 %s10, 1
      // Predicated region
      $region13: #{residual_block_pallas.3} parent=11 // pred_check
        %p124 = pneg %p57
      $region14: #{residual_block_pallas.3} parent=11 // pred_check_branch
        %126 = sbr.rel (%p124) target = $region16
      $region15: #{residual_block_pallas.3} parent=11 // pred_region
        _
      $region16: #{residual_block_pallas.3} parent=11 // pred_fallthru
        _
    $region12: #{residual_block_pallas.3} parent=5 // pred_fallthru
      _
    %p127 = scmp.lt.s32.totalorder %s10, 2
    // Predicated region
    $region17: #{residual_block_pallas.3} parent=5 // pred_check
      %p128 = pneg %p127
    $region18: #{residual_block_pallas.3} parent=5 // pred_check_branch
      %130 = sbr.rel (%p128) target = $region20
    $region19: #{residual_block_pallas.3} parent=5 // pred_region
      // Predicated region
      $region21: #{residual_block_pallas.3} parent=19 // pred_check
        %p131 = pneg %p30
      $region22: #{residual_block_pallas.3} parent=19 // pred_check_branch
        %133 = sbr.rel (%p131) target = $region24
      $region23: #{residual_block_pallas.3} parent=19 // pred_region
        %p134 = scmp.lt.s32.totalorder %s10, 1
        %s135 = scalar_select %p134, %s10, 1
        %s136 = smul.addr %s135, 54
        %s137 = smul.addr %s136, 8
        %s138 = scalar_lea.vmem %s0, %s137
      $region24: #{residual_block_pallas.3} parent=19 // pred_fallthru
        _
    $region20: #{residual_block_pallas.3} parent=5 // pred_fallthru
      _
    %p139 = scmp.le.s32.totalorder 1, %s10
    %p140 = scmp.lt.s32.totalorder %s10, 3
    %p141 = pnand %p139, %p140
    %p142 = pneg %p141
    // Predicated region
    $region25: #{residual_block_pallas.3} parent=5 // pred_check
      _
    $region26: #{residual_block_pallas.3} parent=5 // pred_check_branch
      %144 = sbr.rel (%p141) target = $region28
    $region27: #{residual_block_pallas.3} parent=5 // pred_region
      %s145 = ssub.s32 %s10, 1
      %p146 = scmp.lt.s32.totalorder %s15, 1
      %s147 = scalar_select %p146, %s15, 1
      %s148 = smul.addr %s147, 54
      %s149 = smul.addr %s148, 8
      %s150 = scalar_lea.vmem %s0, %s149
      %p151 = pneg %p36
      %p152 = pneg %p33
      %p153 = pneg %p57
      %p154 = pneg %p54
      %p155 = pneg %p83
      %p156 = pneg %p80
      %p157 = scmp.lt.s32.totalorder %s15, 1
      %s158 = scalar_select %p157, %s15, 1
      %s159 = smul.addr %s158, 32
      %s160 = smul.addr %s159, 8
      %s161 = scalar_lea.vmem %s2, %s160
      %p162 = pneg %p109
      %p163 = pneg %p106
      %p164 = scmp.lt.s32.totalorder %s15, 1
      %s165 = scalar_select %p164, %s15, 1
      %s166 = smul.addr %s165, 2
      %s167 = scalar_lea.vmem %s3, %s166
      %p168 = scmp.lt.s32.totalorder %s15, 1
      %s169 = scalar_select %p168, %s15, 1
      %s170 = smul.addr %s169, 54
      %s171 = smul.addr %s170, 8
      %s172 = scalar_lea.vmem %s0, %s171
      %p173 = scmp.lt.s32.totalorder %s15, 1
      %s174 = scalar_select %p173, %s15, 1
      %s175 = smul.addr %s174, 32
      %s176 = smul.addr %s175, 8
      %s177 = scalar_lea.vmem %s2, %s176
      %p178 = scmp.lt.s32.totalorder %s15, 1
      %s179 = scalar_select %p178, %s15, 1
      %s180 = smul.addr %s179, 2
      %s181 = scalar_lea.vmem %s3, %s180
      %v182 = vld [vmem:[%s172] sm:$0xff]
      %v183 = vld [vmem:[%s172 + $0x8] sm:$0xff]
      %v184 = vld [vmem:[%s172 + $0x18] sm:$0xff]
      %v185 = vld [vmem:[%s172 + $0x20] sm:$0xff]
      %v186 = vld [vmem:[%s172 + $0x30] sm:$0xff]
      %v187 = vld [vmem:[%s172 + $0x38] sm:$0xff]
      %v188 = vld [vmem:[%s172 + $0x48] sm:$0xff]
      %v189 = vld [vmem:[%s172 + $0x50] sm:$0xff]
      %v190 = vld [vmem:[%s172 + $0x60] sm:$0xff]
      %v191 = vld [vmem:[%s172 + $0x68] sm:$0xff]
      %v192 = vld [vmem:[%s172 + $0x78] sm:$0xff]
      %v193 = vld [vmem:[%s172 + $0x80] sm:$0xff]
      %v194 = vld [vmem:[%s172 + $0x90] sm:$0xff]
      %v195 = vld [vmem:[%s172 + $0x98] sm:$0xff]
      %v196 = vld [vmem:[%s172 + $0xa8] sm:$0xff]
      %v197 = vld [vmem:[%s172 + $0xb0] sm:$0xff]
      %v198 = vld [vmem:[%s172 + $0xc0] sm:$0xff]
      %v199 = vld [vmem:[%s172 + $0xc8] sm:$0xff]
      %v200 = vld [vmem:[%s172 + $0xd8] sm:$0xff]
      %v201 = vld [vmem:[%s172 + $0xe0] sm:$0xff]
      %v202 = vld [vmem:[%s172 + $0xf0] sm:$0xff]
      %v203 = vld [vmem:[%s172 + $0xf8] sm:$0xff]
      %v204 = vld [vmem:[%s172 + $0x108] sm:$0xff]
      %v205 = vld [vmem:[%s172 + $0x110] sm:$0xff]
      %v206 = vld [vmem:[%s172 + $0x120] sm:$0xff]
      %v207 = vld [vmem:[%s172 + $0x128] sm:$0xff]
      %v208 = vld [vmem:[%s172 + $0x138] sm:$0xff]
      %v209 = vld [vmem:[%s172 + $0x140] sm:$0xff]
      %v210 = vld [vmem:[%s172 + $0x150] sm:$0xff]
      %v211 = vld [vmem:[%s172 + $0x158] sm:$0xff]
      %v212 = vld [vmem:[%s172 + $0x168] sm:$0xff]
      %v213 = vld [vmem:[%s172 + $0x170] sm:$0xff]
      %v214 = vld [vmem:[%s1] sm:$0xff]
      %v215 = vld [vmem:[%s1 + $0x8] sm:$0xff]
      %v216 = vld [vmem:[%s1 + $0x10] sm:$0xff]
      %v217 = vld [vmem:[%s1 + $0x18] sm:$0xff]
      %v218 = vld [vmem:[%s1 + $0x20] sm:$0xff]
      %v219 = vld [vmem:[%s1 + $0x28] sm:$0xff]
      %v220 = vld [vmem:[%s1 + $0x30] sm:$0xff]
      %v221 = vld [vmem:[%s1 + $0x38] sm:$0xff]
      %v222 = vld [vmem:[%s1 + $0x40] sm:$0xff]
      %v223 = vld [vmem:[%s1 + $0x48] sm:$0xff]
      %v224 = vld [vmem:[%s1 + $0x50] sm:$0xff]
      %v225 = vld [vmem:[%s1 + $0x58] sm:$0xff]
      %v226 = vld [vmem:[%s1 + $0x60] sm:$0xff]
      %v227 = vld [vmem:[%s1 + $0x68] sm:$0xff]
      %v228 = vld [vmem:[%s1 + $0x70] sm:$0xff]
      %v229 = vld [vmem:[%s1 + $0x78] sm:$0xff]
      %v230 = vld [vmem:[%s172 + $0x1] sm:$0xff]
      %v231 = vld [vmem:[%s172 + $0x9] sm:$0xff]
      %v232 = vld [vmem:[%s172 + $0x19] sm:$0xff]
      %v233 = vld [vmem:[%s172 + $0x21] sm:$0xff]
      %v234 = vld [vmem:[%s172 + $0x31] sm:$0xff]
      %v235 = vld [vmem:[%s172 + $0x39] sm:$0xff]
      %v236 = vld [vmem:[%s172 + $0x49] sm:$0xff]
      %v237 = vld [vmem:[%s172 + $0x51] sm:$0xff]
      %v238 = vld [vmem:[%s172 + $0x61] sm:$0xff]
      %v239 = vld [vmem:[%s172 + $0x69] sm:$0xff]
      %v240 = vld [vmem:[%s172 + $0x79] sm:$0xff]
      %v241 = vld [vmem:[%s172 + $0x81] sm:$0xff]
      %v242 = vld [vmem:[%s172 + $0x91] sm:$0xff]
      %v243 = vld [vmem:[%s172 + $0x99] sm:$0xff]
      %v244 = vld [vmem:[%s172 + $0xa9] sm:$0xff]
      %v245 = vld [vmem:[%s172 + $0xb1] sm:$0xff]
      %v246 = vld [vmem:[%s172 + $0xc1] sm:$0xff]
      %v247 = vld [vmem:[%s172 + $0xc9] sm:$0xff]
      %v248 = vld [vmem:[%s172 + $0xd9] sm:$0xff]
      %v249 = vld [vmem:[%s172 + $0xe1] sm:$0xff]
      %v250 = vld [vmem:[%s172 + $0xf1] sm:$0xff]
      %v251 = vld [vmem:[%s172 + $0xf9] sm:$0xff]
      %v252 = vld [vmem:[%s172 + $0x109] sm:$0xff]
      %v253 = vld [vmem:[%s172 + $0x111] sm:$0xff]
      %v254 = vld [vmem:[%s172 + $0x121] sm:$0xff]
      %v255 = vld [vmem:[%s172 + $0x129] sm:$0xff]
      %v256 = vld [vmem:[%s172 + $0x139] sm:$0xff]
      %v257 = vld [vmem:[%s172 + $0x141] sm:$0xff]
      %v258 = vld [vmem:[%s172 + $0x151] sm:$0xff]
      %v259 = vld [vmem:[%s172 + $0x159] sm:$0xff]
      %v260 = vld [vmem:[%s172 + $0x169] sm:$0xff]
      %v261 = vld [vmem:[%s172 + $0x171] sm:$0xff]
      %s262 = scalar_lea.vmem %s1, 128
      %v263 = vld [vmem:[%s262] sm:$0xff]
      %v264 = vld [vmem:[%s262 + $0x8] sm:$0xff]
      %v265 = vld [vmem:[%s262 + $0x10] sm:$0xff]
      %v266 = vld [vmem:[%s262 + $0x18] sm:$0xff]
      %v267 = vld [vmem:[%s262 + $0x20] sm:$0xff]
      %v268 = vld [vmem:[%s262 + $0x28] sm:$0xff]
      %v269 = vld [vmem:[%s262 + $0x30] sm:$0xff]
      %v270 = vld [vmem:[%s262 + $0x38] sm:$0xff]
      %v271 = vld [vmem:[%s262 + $0x40] sm:$0xff]
      %v272 = vld [vmem:[%s262 + $0x48] sm:$0xff]
      %v273 = vld [vmem:[%s262 + $0x50] sm:$0xff]
      %v274 = vld [vmem:[%s262 + $0x58] sm:$0xff]
      %v275 = vld [vmem:[%s262 + $0x60] sm:$0xff]
      %v276 = vld [vmem:[%s262 + $0x68] sm:$0xff]
      %v277 = vld [vmem:[%s262 + $0x70] sm:$0xff]
      %v278 = vld [vmem:[%s262 + $0x78] sm:$0xff]
      %279 = vmatpush.msra.mxu0 %v278
      %280 = vmatpush.msra.mxu0 %v277
      %281 = vmatpush.msra.mxu0 %v276
      %282 = vmatpush.msra.mxu0 %v275
      %283 = vmatpush.msra.mxu0 %v274
      %284 = vmatpush.msra.mxu0 %v273
      %285 = vmatpush.msra.mxu0 %v272
      %286 = vmatpush.msra.mxu0 %v271
      %287 = vmatpush.msra.mxu0 %v270
      %288 = vmatpush.msra.mxu0 %v269
      %289 = vmatpush.msra.mxu0 %v268
      %290 = vmatpush.msra.mxu0 %v267
      %291 = vmatpush.msra.mxu0 %v266
      %292 = vmatpush.msra.mxu0 %v265
      %293 = vmatpush.msra.mxu0 %v264
      %294 = vmatpush.msra.mxu0 %v263
      %295 = vmatmul.f32.gmra.mxu0 %v230
      %v296 = vpop.f32.mrf.mxu0
      %v297 = vadd.f32 0.0, %v296
      %298 = vmatmul.f32.gmra.mxu0 %v231
      %v299 = vpop.f32.mrf.mxu0
      %v300 = vadd.f32 0.0, %v299
      %301 = vmatmul.f32.gmra.mxu0 %v232
      %v302 = vpop.f32.mrf.mxu0
      %v303 = vadd.f32 0.0, %v302
      %304 = vmatmul.f32.gmra.mxu0 %v233
      %v305 = vpop.f32.mrf.mxu0
      %v306 = vadd.f32 0.0, %v305
      %307 = vmatmul.f32.gmra.mxu0 %v234
      %v308 = vpop.f32.mrf.mxu0
      %v309 = vadd.f32 0.0, %v308
      %310 = vmatmul.f32.gmra.mxu0 %v235
      %v311 = vpop.f32.mrf.mxu0
      %v312 = vadd.f32 0.0, %v311
      %313 = vmatmul.f32.gmra.mxu0 %v236
      %v314 = vpop.f32.mrf.mxu0
      %v315 = vadd.f32 0.0, %v314
      %316 = vmatmul.f32.gmra.mxu0 %v237
      %v317 = vpop.f32.mrf.mxu0
      %v318 = vadd.f32 0.0, %v317
      %319 = vmatmul.f32.gmra.mxu0 %v238
      %v320 = vpop.f32.mrf.mxu0
      %v321 = vadd.f32 0.0, %v320
      %322 = vmatmul.f32.gmra.mxu0 %v239
      %v323 = vpop.f32.mrf.mxu0
      %v324 = vadd.f32 0.0, %v323
      %325 = vmatmul.f32.gmra.mxu0 %v240
      %v326 = vpop.f32.mrf.mxu0
      %v327 = vadd.f32 0.0, %v326
      %328 = vmatmul.f32.gmra.mxu0 %v241
      %v329 = vpop.f32.mrf.mxu0
      %v330 = vadd.f32 0.0, %v329
      %331 = vmatmul.f32.gmra.mxu0 %v242
      %v332 = vpop.f32.mrf.mxu0
      %v333 = vadd.f32 0.0, %v332
      %334 = vmatmul.f32.gmra.mxu0 %v243
      %v335 = vpop.f32.mrf.mxu0
      %v336 = vadd.f32 0.0, %v335
      %337 = vmatmul.f32.gmra.mxu0 %v244
      %v338 = vpop.f32.mrf.mxu0
      %v339 = vadd.f32 0.0, %v338
      %340 = vmatmul.f32.gmra.mxu0 %v245
      %v341 = vpop.f32.mrf.mxu0
      %v342 = vadd.f32 0.0, %v341
      %343 = vmatmul.f32.gmra.mxu0 %v246
      %v344 = vpop.f32.mrf.mxu0
      %v345 = vadd.f32 0.0, %v344
      %346 = vmatmul.f32.gmra.mxu0 %v247
      %v347 = vpop.f32.mrf.mxu0
      %v348 = vadd.f32 0.0, %v347
      %349 = vmatmul.f32.gmra.mxu0 %v248
      %v350 = vpop.f32.mrf.mxu0
      %v351 = vadd.f32 0.0, %v350
      %352 = vmatmul.f32.gmra.mxu0 %v249
      %v353 = vpop.f32.mrf.mxu0
      %v354 = vadd.f32 0.0, %v353
      %355 = vmatmul.f32.gmra.mxu0 %v250
      %v356 = vpop.f32.mrf.mxu0
      %v357 = vadd.f32 0.0, %v356
      %358 = vmatmul.f32.gmra.mxu0 %v251
      %v359 = vpop.f32.mrf.mxu0
      %v360 = vadd.f32 0.0, %v359
      %361 = vmatmul.f32.gmra.mxu0 %v252
      %v362 = vpop.f32.mrf.mxu0
      %v363 = vadd.f32 0.0, %v362
      %364 = vmatmul.f32.gmra.mxu0 %v253
      %v365 = vpop.f32.mrf.mxu0
      %v366 = vadd.f32 0.0, %v365
      %367 = vmatmul.f32.gmra.mxu0 %v254
      %v368 = vpop.f32.mrf.mxu0
      %v369 = vadd.f32 0.0, %v368
      %370 = vmatmul.f32.gmra.mxu0 %v255
      %v371 = vpop.f32.mrf.mxu0
      %v372 = vadd.f32 0.0, %v371
      %373 = vmatmul.f32.gmra.mxu0 %v256
      %v374 = vpop.f32.mrf.mxu0
      %v375 = vadd.f32 0.0, %v374
      %376 = vmatmul.f32.gmra.mxu0 %v257
      %v377 = vpop.f32.mrf.mxu0
      %v378 = vadd.f32 0.0, %v377
      %379 = vmatmul.f32.gmra.mxu0 %v258
      %v380 = vpop.f32.mrf.mxu0
      %v381 = vadd.f32 0.0, %v380
      %382 = vmatmul.f32.gmra.mxu0 %v259
      %v383 = vpop.f32.mrf.mxu0
      %v384 = vadd.f32 0.0, %v383
      %385 = vmatmul.f32.gmra.mxu0 %v260
      %v386 = vpop.f32.mrf.mxu0
      %v387 = vadd.f32 0.0, %v386
      %388 = vmatmul.f32.gmra.mxu0 %v261
      %v389 = vpop.f32.mrf.mxu0
      %v390 = vadd.f32 0.0, %v389
      %391 = vdwg.mxu0
      %392 = vmatpush.msra.mxu0 %v229
      %393 = vmatpush.msra.mxu0 %v228
      %394 = vmatpush.msra.mxu0 %v227
      %395 = vmatpush.msra.mxu0 %v226
      %396 = vmatpush.msra.mxu0 %v225
      %397 = vmatpush.msra.mxu0 %v224
      %398 = vmatpush.msra.mxu0 %v223
      %399 = vmatpush.msra.mxu0 %v222
      %400 = vmatpush.msra.mxu0 %v221
      %401 = vmatpush.msra.mxu0 %v220
      %402 = vmatpush.msra.mxu0 %v219
      %403 = vmatpush.msra.mxu0 %v218
      %404 = vmatpush.msra.mxu0 %v217
      %405 = vmatpush.msra.mxu0 %v216
      %406 = vmatpush.msra.mxu0 %v215
      %407 = vmatpush.msra.mxu0 %v214
      %408 = vmatmul.f32.gmra.mxu0 %v182
      %v409 = vpop.f32.mrf.mxu0
      %v410 = vadd.f32 %v297, %v409
      %411 = vmatmul.f32.gmra.mxu0 %v183
      %v412 = vpop.f32.mrf.mxu0
      %v413 = vadd.f32 %v300, %v412
      %414 = vmatmul.f32.gmra.mxu0 %v184
      %v415 = vpop.f32.mrf.mxu0
      %v416 = vadd.f32 %v303, %v415
      %417 = vmatmul.f32.gmra.mxu0 %v185
      %v418 = vpop.f32.mrf.mxu0
      %v419 = vadd.f32 %v306, %v418
      %420 = vmatmul.f32.gmra.mxu0 %v186
      %v421 = vpop.f32.mrf.mxu0
      %v422 = vadd.f32 %v309, %v421
      %423 = vmatmul.f32.gmra.mxu0 %v187
      %v424 = vpop.f32.mrf.mxu0
      %v425 = vadd.f32 %v312, %v424
      %426 = vmatmul.f32.gmra.mxu0 %v188
      %v427 = vpop.f32.mrf.mxu0
      %v428 = vadd.f32 %v315, %v427
      %429 = vmatmul.f32.gmra.mxu0 %v189
      %v430 = vpop.f32.mrf.mxu0
      %v431 = vadd.f32 %v318, %v430
      %432 = vmatmul.f32.gmra.mxu0 %v190
      %v433 = vpop.f32.mrf.mxu0
      %v434 = vadd.f32 %v321, %v433
      %435 = vmatmul.f32.gmra.mxu0 %v191
      %v436 = vpop.f32.mrf.mxu0
      %v437 = vadd.f32 %v324, %v436
      %438 = vmatmul.f32.gmra.mxu0 %v192
      %v439 = vpop.f32.mrf.mxu0
      %v440 = vadd.f32 %v327, %v439
      %441 = vmatmul.f32.gmra.mxu0 %v193
      %v442 = vpop.f32.mrf.mxu0
      %v443 = vadd.f32 %v330, %v442
      %444 = vmatmul.f32.gmra.mxu0 %v194
      %v445 = vpop.f32.mrf.mxu0
      %v446 = vadd.f32 %v333, %v445
      %447 = vmatmul.f32.gmra.mxu0 %v195
      %v448 = vpop.f32.mrf.mxu0
      %v449 = vadd.f32 %v336, %v448
      %450 = vmatmul.f32.gmra.mxu0 %v196
      %v451 = vpop.f32.mrf.mxu0
      %v452 = vadd.f32 %v339, %v451
      %453 = vmatmul.f32.gmra.mxu0 %v197
      %v454 = vpop.f32.mrf.mxu0
      %v455 = vadd.f32 %v342, %v454
      %456 = vmatmul.f32.gmra.mxu0 %v198
      %v457 = vpop.f32.mrf.mxu0
      %v458 = vadd.f32 %v345, %v457
      %459 = vmatmul.f32.gmra.mxu0 %v199
      %v460 = vpop.f32.mrf.mxu0
      %v461 = vadd.f32 %v348, %v460
      %462 = vmatmul.f32.gmra.mxu0 %v200
      %v463 = vpop.f32.mrf.mxu0
      %v464 = vadd.f32 %v351, %v463
      %465 = vmatmul.f32.gmra.mxu0 %v201
      %v466 = vpop.f32.mrf.mxu0
      %v467 = vadd.f32 %v354, %v466
      %468 = vmatmul.f32.gmra.mxu0 %v202
      %v469 = vpop.f32.mrf.mxu0
      %v470 = vadd.f32 %v357, %v469
      %471 = vmatmul.f32.gmra.mxu0 %v203
      %v472 = vpop.f32.mrf.mxu0
      %v473 = vadd.f32 %v360, %v472
      %474 = vmatmul.f32.gmra.mxu0 %v204
      %v475 = vpop.f32.mrf.mxu0
      %v476 = vadd.f32 %v363, %v475
      %477 = vmatmul.f32.gmra.mxu0 %v205
      %v478 = vpop.f32.mrf.mxu0
      %v479 = vadd.f32 %v366, %v478
      %480 = vmatmul.f32.gmra.mxu0 %v206
      %v481 = vpop.f32.mrf.mxu0
      %v482 = vadd.f32 %v369, %v481
      %483 = vmatmul.f32.gmra.mxu0 %v207
      %v484 = vpop.f32.mrf.mxu0
      %v485 = vadd.f32 %v372, %v484
      %486 = vmatmul.f32.gmra.mxu0 %v208
      %v487 = vpop.f32.mrf.mxu0
      %v488 = vadd.f32 %v375, %v487
      %489 = vmatmul.f32.gmra.mxu0 %v209
      %v490 = vpop.f32.mrf.mxu0
      %v491 = vadd.f32 %v378, %v490
      %492 = vmatmul.f32.gmra.mxu0 %v210
      %v493 = vpop.f32.mrf.mxu0
      %v494 = vadd.f32 %v381, %v493
      %495 = vmatmul.f32.gmra.mxu0 %v211
      %v496 = vpop.f32.mrf.mxu0
      %v497 = vadd.f32 %v384, %v496
      %498 = vmatmul.f32.gmra.mxu0 %v212
      %v499 = vpop.f32.mrf.mxu0
      %v500 = vadd.f32 %v387, %v499
      %501 = vmatmul.f32.gmra.mxu0 %v213
      %v502 = vpop.f32.mrf.mxu0
      %v503 = vadd.f32 %v390, %v502
      %504 = vdwg.mxu0
      %v505 = vld [vmem:[%s172 + $0x2] sm:$0xff]
      %v506 = vld [vmem:[%s172 + $0xa] sm:$0xff]
      %v507 = vld [vmem:[%s172 + $0x1a] sm:$0xff]
      %v508 = vld [vmem:[%s172 + $0x22] sm:$0xff]
      %v509 = vld [vmem:[%s172 + $0x32] sm:$0xff]
      %v510 = vld [vmem:[%s172 + $0x3a] sm:$0xff]
      %v511 = vld [vmem:[%s172 + $0x4a] sm:$0xff]
      %v512 = vld [vmem:[%s172 + $0x52] sm:$0xff]
      %v513 = vld [vmem:[%s172 + $0x62] sm:$0xff]
      %v514 = vld [vmem:[%s172 + $0x6a] sm:$0xff]
      %v515 = vld [vmem:[%s172 + $0x7a] sm:$0xff]
      %v516 = vld [vmem:[%s172 + $0x82] sm:$0xff]
      %v517 = vld [vmem:[%s172 + $0x92] sm:$0xff]
      %v518 = vld [vmem:[%s172 + $0x9a] sm:$0xff]
      %v519 = vld [vmem:[%s172 + $0xaa] sm:$0xff]
      %v520 = vld [vmem:[%s172 + $0xb2] sm:$0xff]
      %v521 = vld [vmem:[%s172 + $0xc2] sm:$0xff]
      %v522 = vld [vmem:[%s172 + $0xca] sm:$0xff]
      %v523 = vld [vmem:[%s172 + $0xda] sm:$0xff]
      %v524 = vld [vmem:[%s172 + $0xe2] sm:$0xff]
      %v525 = vld [vmem:[%s172 + $0xf2] sm:$0xff]
      %v526 = vld [vmem:[%s172 + $0xfa] sm:$0xff]
      %v527 = vld [vmem:[%s172 + $0x10a] sm:$0xff]
      %v528 = vld [vmem:[%s172 + $0x112] sm:$0xff]
      %v529 = vld [vmem:[%s172 + $0x122] sm:$0xff]
      %v530 = vld [vmem:[%s172 + $0x12a] sm:$0xff]
      %v531 = vld [vmem:[%s172 + $0x13a] sm:$0xff]
      %v532 = vld [vmem:[%s172 + $0x142] sm:$0xff]
      %v533 = vld [vmem:[%s172 + $0x152] sm:$0xff]
      %v534 = vld [vmem:[%s172 + $0x15a] sm:$0xff]
      %v535 = vld [vmem:[%s172 + $0x16a] sm:$0xff]
      %v536 = vld [vmem:[%s172 + $0x172] sm:$0xff]
      %s537 = scalar_lea.vmem %s1, 256
      %v538 = vld [vmem:[%s537] sm:$0xff]
      %v539 = vld [vmem:[%s537 + $0x8] sm:$0xff]
      %v540 = vld [vmem:[%s537 + $0x10] sm:$0xff]
      %v541 = vld [vmem:[%s537 + $0x18] sm:$0xff]
      %v542 = vld [vmem:[%s537 + $0x20] sm:$0xff]
      %v543 = vld [vmem:[%s537 + $0x28] sm:$0xff]
      %v544 = vld [vmem:[%s537 + $0x30] sm:$0xff]
      %v545 = vld [vmem:[%s537 + $0x38] sm:$0xff]
      %v546 = vld [vmem:[%s537 + $0x40] sm:$0xff]
      %v547 = vld [vmem:[%s537 + $0x48] sm:$0xff]
      %v548 = vld [vmem:[%s537 + $0x50] sm:$0xff]
      %v549 = vld [vmem:[%s537 + $0x58] sm:$0xff]
      %v550 = vld [vmem:[%s537 + $0x60] sm:$0xff]
      %v551 = vld [vmem:[%s537 + $0x68] sm:$0xff]
      %v552 = vld [vmem:[%s537 + $0x70] sm:$0xff]
      %v553 = vld [vmem:[%s537 + $0x78] sm:$0xff]
      %554 = vmatpush.msra.mxu0 %v553
      %555 = vmatpush.msra.mxu0 %v552
      %556 = vmatpush.msra.mxu0 %v551
      %557 = vmatpush.msra.mxu0 %v550
      %558 = vmatpush.msra.mxu0 %v549
      %559 = vmatpush.msra.mxu0 %v548
      %560 = vmatpush.msra.mxu0 %v547
      %561 = vmatpush.msra.mxu0 %v546
      %562 = vmatpush.msra.mxu0 %v545
      %563 = vmatpush.msra.mxu0 %v544
      %564 = vmatpush.msra.mxu0 %v543
      %565 = vmatpush.msra.mxu0 %v542
      %566 = vmatpush.msra.mxu0 %v541
      %567 = vmatpush.msra.mxu0 %v540
      %568 = vmatpush.msra.mxu0 %v539
      %569 = vmatpush.msra.mxu0 %v538
      %570 = vmatmul.f32.gmra.mxu0 %v505
      %v571 = vpop.f32.mrf.mxu0
      %v572 = vadd.f32 0.0, %v571
      %573 = vmatmul.f32.gmra.mxu0 %v506
      %v574 = vpop.f32.mrf.mxu0
      %v575 = vadd.f32 0.0, %v574
      %576 = vmatmul.f32.gmra.mxu0 %v507
      %v577 = vpop.f32.mrf.mxu0
      %v578 = vadd.f32 0.0, %v577
      %579 = vmatmul.f32.gmra.mxu0 %v508
      %v580 = vpop.f32.mrf.mxu0
      %v581 = vadd.f32 0.0, %v580
      %582 = vmatmul.f32.gmra.mxu0 %v509
      %v583 = vpop.f32.mrf.mxu0
      %v584 = vadd.f32 0.0, %v583
      %585 = vmatmul.f32.gmra.mxu0 %v510
      %v586 = vpop.f32.mrf.mxu0
      %v587 = vadd.f32 0.0, %v586
      %588 = vmatmul.f32.gmra.mxu0 %v511
      %v589 = vpop.f32.mrf.mxu0
      %v590 = vadd.f32 0.0, %v589
      %591 = vmatmul.f32.gmra.mxu0 %v512
      %v592 = vpop.f32.mrf.mxu0
      %v593 = vadd.f32 0.0, %v592
      %594 = vmatmul.f32.gmra.mxu0 %v513
      %v595 = vpop.f32.mrf.mxu0
      %v596 = vadd.f32 0.0, %v595
      %597 = vmatmul.f32.gmra.mxu0 %v514
      %v598 = vpop.f32.mrf.mxu0
      %v599 = vadd.f32 0.0, %v598
      %600 = vmatmul.f32.gmra.mxu0 %v515
      %v601 = vpop.f32.mrf.mxu0
      %v602 = vadd.f32 0.0, %v601
      %603 = vmatmul.f32.gmra.mxu0 %v516
      %v604 = vpop.f32.mrf.mxu0
      %v605 = vadd.f32 0.0, %v604
      %606 = vmatmul.f32.gmra.mxu0 %v517
      %v607 = vpop.f32.mrf.mxu0
      %v608 = vadd.f32 0.0, %v607
      %609 = vmatmul.f32.gmra.mxu0 %v518
      %v610 = vpop.f32.mrf.mxu0
      %v611 = vadd.f32 0.0, %v610
      %612 = vmatmul.f32.gmra.mxu0 %v519
      %v613 = vpop.f32.mrf.mxu0
      %v614 = vadd.f32 0.0, %v613
      %615 = vmatmul.f32.gmra.mxu0 %v520
      %v616 = vpop.f32.mrf.mxu0
      %v617 = vadd.f32 0.0, %v616
      %618 = vmatmul.f32.gmra.mxu0 %v521
      %v619 = vpop.f32.mrf.mxu0
      %v620 = vadd.f32 0.0, %v619
      %621 = vmatmul.f32.gmra.mxu0 %v522
      %v622 = vpop.f32.mrf.mxu0
      %v623 = vadd.f32 0.0, %v622
      %624 = vmatmul.f32.gmra.mxu0 %v523
      %v625 = vpop.f32.mrf.mxu0
      %v626 = vadd.f32 0.0, %v625
      %627 = vmatmul.f32.gmra.mxu0 %v524
      %v628 = vpop.f32.mrf.mxu0
      %v629 = vadd.f32 0.0, %v628
      %630 = vmatmul.f32.gmra.mxu0 %v525
      %v631 = vpop.f32.mrf.mxu0
      %v632 = vadd.f32 0.0, %v631
      %633 = vmatmul.f32.gmra.mxu0 %v526
      %v634 = vpop.f32.mrf.mxu0
      %v635 = vadd.f32 0.0, %v634
      %636 = vmatmul.f32.gmra.mxu0 %v527
      %v637 = vpop.f32.mrf.mxu0
      %v638 = vadd.f32 0.0, %v637
      %639 = vmatmul.f32.gmra.mxu0 %v528
      %v640 = vpop.f32.mrf.mxu0
      %v641 = vadd.f32 0.0, %v640
      %642 = vmatmul.f32.gmra.mxu0 %v529
      %v643 = vpop.f32.mrf.mxu0
      %v644 = vadd.f32 0.0, %v643
      %645 = vmatmul.f32.gmra.mxu0 %v530
      %v646 = vpop.f32.mrf.mxu0
      %v647 = vadd.f32 0.0, %v646
      %648 = vmatmul.f32.gmra.mxu0 %v531
      %v649 = vpop.f32.mrf.mxu0
      %v650 = vadd.f32 0.0, %v649
      %651 = vmatmul.f32.gmra.mxu0 %v532
      %v652 = vpop.f32.mrf.mxu0
      %v653 = vadd.f32 0.0, %v652
      %654 = vmatmul.f32.gmra.mxu0 %v533
      %v655 = vpop.f32.mrf.mxu0
      %v656 = vadd.f32 0.0, %v655
      %657 = vmatmul.f32.gmra.mxu0 %v534
      %v658 = vpop.f32.mrf.mxu0
      %v659 = vadd.f32 0.0, %v658
      %660 = vmatmul.f32.gmra.mxu0 %v535
      %v661 = vpop.f32.mrf.mxu0
      %v662 = vadd.f32 0.0, %v661
      %663 = vmatmul.f32.gmra.mxu0 %v536
      %v664 = vpop.f32.mrf.mxu0
      %v665 = vadd.f32 0.0, %v664
      %666 = vdwg.mxu0
      %v667 = vadd.f32 %v410, %v572
      %v668 = vadd.f32 %v413, %v575
      %v669 = vadd.f32 %v416, %v578
      %v670 = vadd.f32 %v419, %v581
      %v671 = vadd.f32 %v422, %v584
      %v672 = vadd.f32 %v425, %v587
      %v673 = vadd.f32 %v428, %v590
      %v674 = vadd.f32 %v431, %v593
      %v675 = vadd.f32 %v434, %v596
      %v676 = vadd.f32 %v437, %v599
      %v677 = vadd.f32 %v440, %v602
      %v678 = vadd.f32 %v443, %v605
      %v679 = vadd.f32 %v446, %v608
      %v680 = vadd.f32 %v449, %v611
      %v681 = vadd.f32 %v452, %v614
      %v682 = vadd.f32 %v455, %v617
      %v683 = vadd.f32 %v458, %v620
      %v684 = vadd.f32 %v461, %v623
      %v685 = vadd.f32 %v464, %v626
      %v686 = vadd.f32 %v467, %v629
      %v687 = vadd.f32 %v470, %v632
      %v688 = vadd.f32 %v473, %v635
      %v689 = vadd.f32 %v476, %v638
      %v690 = vadd.f32 %v479, %v641
      %v691 = vadd.f32 %v482, %v644
      %v692 = vadd.f32 %v485, %v647
      %v693 = vadd.f32 %v488, %v650
      %v694 = vadd.f32 %v491, %v653
      %v695 = vadd.f32 %v494, %v656
      %v696 = vadd.f32 %v497, %v659
      %v697 = vadd.f32 %v500, %v662
      %v698 = vadd.f32 %v503, %v665
      %s699 = scalar_lea.vmem %s172, 24
      %v700 = vld [vmem:[%s699] sm:$0xff]
      %v701 = vld [vmem:[%s699 + $0x8] sm:$0xff]
      %v702 = vld [vmem:[%s699 + $0x18] sm:$0xff]
      %v703 = vld [vmem:[%s699 + $0x20] sm:$0xff]
      %v704 = vld [vmem:[%s699 + $0x30] sm:$0xff]
      %v705 = vld [vmem:[%s699 + $0x38] sm:$0xff]
      %v706 = vld [vmem:[%s699 + $0x48] sm:$0xff]
      %v707 = vld [vmem:[%s699 + $0x50] sm:$0xff]
      %v708 = vld [vmem:[%s699 + $0x60] sm:$0xff]
      %v709 = vld [vmem:[%s699 + $0x68] sm:$0xff]
      %v710 = vld [vmem:[%s699 + $0x78] sm:$0xff]
      %v711 = vld [vmem:[%s699 + $0x80] sm:$0xff]
      %v712 = vld [vmem:[%s699 + $0x90] sm:$0xff]
      %v713 = vld [vmem:[%s699 + $0x98] sm:$0xff]
      %v714 = vld [vmem:[%s699 + $0xa8] sm:$0xff]
      %v715 = vld [vmem:[%s699 + $0xb0] sm:$0xff]
      %v716 = vld [vmem:[%s699 + $0xc0] sm:$0xff]
      %v717 = vld [vmem:[%s699 + $0xc8] sm:$0xff]
      %v718 = vld [vmem:[%s699 + $0xd8] sm:$0xff]
      %v719 = vld [vmem:[%s699 + $0xe0] sm:$0xff]
      %v720 = vld [vmem:[%s699 + $0xf0] sm:$0xff]
      %v721 = vld [vmem:[%s699 + $0xf8] sm:$0xff]
      %v722 = vld [vmem:[%s699 + $0x108] sm:$0xff]
      %v723 = vld [vmem:[%s699 + $0x110] sm:$0xff]
      %v724 = vld [vmem:[%s699 + $0x120] sm:$0xff]
      %v725 = vld [vmem:[%s699 + $0x128] sm:$0xff]
      %v726 = vld [vmem:[%s699 + $0x138] sm:$0xff]
      %v727 = vld [vmem:[%s699 + $0x140] sm:$0xff]
      %v728 = vld [vmem:[%s699 + $0x150] sm:$0xff]
      %v729 = vld [vmem:[%s699 + $0x158] sm:$0xff]
      %v730 = vld [vmem:[%s699 + $0x168] sm:$0xff]
      %v731 = vld [vmem:[%s699 + $0x170] sm:$0xff]
      %s732 = scalar_lea.vmem %s1, 384
      %v733 = vld [vmem:[%s732] sm:$0xff]
      %v734 = vld [vmem:[%s732 + $0x8] sm:$0xff]
      %v735 = vld [vmem:[%s732 + $0x10] sm:$0xff]
      %v736 = vld [vmem:[%s732 + $0x18] sm:$0xff]
      %v737 = vld [vmem:[%s732 + $0x20] sm:$0xff]
      %v738 = vld [vmem:[%s732 + $0x28] sm:$0xff]
      %v739 = vld [vmem:[%s732 + $0x30] sm:$0xff]
      %v740 = vld [vmem:[%s732 + $0x38] sm:$0xff]
      %v741 = vld [vmem:[%s732 + $0x40] sm:$0xff]
      %v742 = vld [vmem:[%s732 + $0x48] sm:$0xff]
      %v743 = vld [vmem:[%s732 + $0x50] sm:$0xff]
      %v744 = vld [vmem:[%s732 + $0x58] sm:$0xff]
      %v745 = vld [vmem:[%s732 + $0x60] sm:$0xff]
      %v746 = vld [vmem:[%s732 + $0x68] sm:$0xff]
      %v747 = vld [vmem:[%s732 + $0x70] sm:$0xff]
      %v748 = vld [vmem:[%s732 + $0x78] sm:$0xff]
      %749 = vmatpush.msra.mxu0 %v748
      %750 = vmatpush.msra.mxu0 %v747
      %751 = vmatpush.msra.mxu0 %v746
      %752 = vmatpush.msra.mxu0 %v745
      %753 = vmatpush.msra.mxu0 %v744
      %754 = vmatpush.msra.mxu0 %v743
      %755 = vmatpush.msra.mxu0 %v742
      %756 = vmatpush.msra.mxu0 %v741
      %757 = vmatpush.msra.mxu0 %v740
      %758 = vmatpush.msra.mxu0 %v739
      %759 = vmatpush.msra.mxu0 %v738
      %760 = vmatpush.msra.mxu0 %v737
      %761 = vmatpush.msra.mxu0 %v736
      %762 = vmatpush.msra.mxu0 %v735
      %763 = vmatpush.msra.mxu0 %v734
      %764 = vmatpush.msra.mxu0 %v733
      %765 = vmatmul.f32.gmra.mxu0 %v700
      %v766 = vpop.f32.mrf.mxu0
      %v767 = vadd.f32 0.0, %v766
      %768 = vmatmul.f32.gmra.mxu0 %v701
      %v769 = vpop.f32.mrf.mxu0
      %v770 = vadd.f32 0.0, %v769
      %771 = vmatmul.f32.gmra.mxu0 %v702
      %v772 = vpop.f32.mrf.mxu0
      %v773 = vadd.f32 0.0, %v772
      %774 = vmatmul.f32.gmra.mxu0 %v703
      %v775 = vpop.f32.mrf.mxu0
      %v776 = vadd.f32 0.0, %v775
      %777 = vmatmul.f32.gmra.mxu0 %v704
      %v778 = vpop.f32.mrf.mxu0
      %v779 = vadd.f32 0.0, %v778
      %780 = vmatmul.f32.gmra.mxu0 %v705
      %v781 = vpop.f32.mrf.mxu0
      %v782 = vadd.f32 0.0, %v781
      %783 = vmatmul.f32.gmra.mxu0 %v706
      %v784 = vpop.f32.mrf.mxu0
      %v785 = vadd.f32 0.0, %v784
      %786 = vmatmul.f32.gmra.mxu0 %v707
      %v787 = vpop.f32.mrf.mxu0
      %v788 = vadd.f32 0.0, %v787
      %789 = vmatmul.f32.gmra.mxu0 %v708
      %v790 = vpop.f32.mrf.mxu0
      %v791 = vadd.f32 0.0, %v790
      %792 = vmatmul.f32.gmra.mxu0 %v709
      %v793 = vpop.f32.mrf.mxu0
      %v794 = vadd.f32 0.0, %v793
      %795 = vmatmul.f32.gmra.mxu0 %v710
      %v796 = vpop.f32.mrf.mxu0
      %v797 = vadd.f32 0.0, %v796
      %798 = vmatmul.f32.gmra.mxu0 %v711
      %v799 = vpop.f32.mrf.mxu0
      %v800 = vadd.f32 0.0, %v799
      %801 = vmatmul.f32.gmra.mxu0 %v712
      %v802 = vpop.f32.mrf.mxu0
      %v803 = vadd.f32 0.0, %v802
      %804 = vmatmul.f32.gmra.mxu0 %v713
      %v805 = vpop.f32.mrf.mxu0
      %v806 = vadd.f32 0.0, %v805
      %807 = vmatmul.f32.gmra.mxu0 %v714
      %v808 = vpop.f32.mrf.mxu0
      %v809 = vadd.f32 0.0, %v808
      %810 = vmatmul.f32.gmra.mxu0 %v715
      %v811 = vpop.f32.mrf.mxu0
      %v812 = vadd.f32 0.0, %v811
      %813 = vmatmul.f32.gmra.mxu0 %v716
      %v814 = vpop.f32.mrf.mxu0
      %v815 = vadd.f32 0.0, %v814
      %816 = vmatmul.f32.gmra.mxu0 %v717
      %v817 = vpop.f32.mrf.mxu0
      %v818 = vadd.f32 0.0, %v817
      %819 = vmatmul.f32.gmra.mxu0 %v718
      %v820 = vpop.f32.mrf.mxu0
      %v821 = vadd.f32 0.0, %v820
      %822 = vmatmul.f32.gmra.mxu0 %v719
      %v823 = vpop.f32.mrf.mxu0
      %v824 = vadd.f32 0.0, %v823
      %825 = vmatmul.f32.gmra.mxu0 %v720
      %v826 = vpop.f32.mrf.mxu0
      %v827 = vadd.f32 0.0, %v826
      %828 = vmatmul.f32.gmra.mxu0 %v721
      %v829 = vpop.f32.mrf.mxu0
      %v830 = vadd.f32 0.0, %v829
      %831 = vmatmul.f32.gmra.mxu0 %v722
      %v832 = vpop.f32.mrf.mxu0
      %v833 = vadd.f32 0.0, %v832
      %834 = vmatmul.f32.gmra.mxu0 %v723
      %v835 = vpop.f32.mrf.mxu0
      %v836 = vadd.f32 0.0, %v835
      %837 = vmatmul.f32.gmra.mxu0 %v724
      %v838 = vpop.f32.mrf.mxu0
      %v839 = vadd.f32 0.0, %v838
      %840 = vmatmul.f32.gmra.mxu0 %v725
      %v841 = vpop.f32.mrf.mxu0
      %v842 = vadd.f32 0.0, %v841
      %843 = vmatmul.f32.gmra.mxu0 %v726
      %v844 = vpop.f32.mrf.mxu0
      %v845 = vadd.f32 0.0, %v844
      %846 = vmatmul.f32.gmra.mxu0 %v727
      %v847 = vpop.f32.mrf.mxu0
      %v848 = vadd.f32 0.0, %v847
      %849 = vmatmul.f32.gmra.mxu0 %v728
      %v850 = vpop.f32.mrf.mxu0
      %v851 = vadd.f32 0.0, %v850
      %852 = vmatmul.f32.gmra.mxu0 %v729
      %v853 = vpop.f32.mrf.mxu0
      %v854 = vadd.f32 0.0, %v853
      %855 = vmatmul.f32.gmra.mxu0 %v730
      %v856 = vpop.f32.mrf.mxu0
      %v857 = vadd.f32 0.0, %v856
      %858 = vmatmul.f32.gmra.mxu0 %v731
      %v859 = vpop.f32.mrf.mxu0
      %v860 = vadd.f32 0.0, %v859
      %861 = vdwg.mxu0
      %v862 = vadd.f32 %v667, %v767
      %v863 = vadd.f32 %v668, %v770
      %v864 = vadd.f32 %v669, %v773
      %v865 = vadd.f32 %v670, %v776
      %v866 = vadd.f32 %v671, %v779
      %v867 = vadd.f32 %v672, %v782
      %v868 = vadd.f32 %v673, %v785
      %v869 = vadd.f32 %v674, %v788
      %v870 = vadd.f32 %v675, %v791
      %v871 = vadd.f32 %v676, %v794
      %v872 = vadd.f32 %v677, %v797
      %v873 = vadd.f32 %v678, %v800
      %v874 = vadd.f32 %v679, %v803
      %v875 = vadd.f32 %v680, %v806
      %v876 = vadd.f32 %v681, %v809
      %v877 = vadd.f32 %v682, %v812
      %v878 = vadd.f32 %v683, %v815
      %v879 = vadd.f32 %v684, %v818
      %v880 = vadd.f32 %v685, %v821
      %v881 = vadd.f32 %v686, %v824
      %v882 = vadd.f32 %v687, %v827
      %v883 = vadd.f32 %v688, %v830
      %v884 = vadd.f32 %v689, %v833
      %v885 = vadd.f32 %v690, %v836
      %v886 = vadd.f32 %v691, %v839
      %v887 = vadd.f32 %v692, %v842
      %v888 = vadd.f32 %v693, %v845
      %v889 = vadd.f32 %v694, %v848
      %v890 = vadd.f32 %v695, %v851
      %v891 = vadd.f32 %v696, %v854
      %v892 = vadd.f32 %v697, %v857
      %v893 = vadd.f32 %v698, %v860
      %v894 = vld [vmem:[%s699 + $0x1] sm:$0xff]
      %v895 = vld [vmem:[%s699 + $0x9] sm:$0xff]
      %v896 = vld [vmem:[%s699 + $0x19] sm:$0xff]
      %v897 = vld [vmem:[%s699 + $0x21] sm:$0xff]
      %v898 = vld [vmem:[%s699 + $0x31] sm:$0xff]
      %v899 = vld [vmem:[%s699 + $0x39] sm:$0xff]
      %v900 = vld [vmem:[%s699 + $0x49] sm:$0xff]
      %v901 = vld [vmem:[%s699 + $0x51] sm:$0xff]
      %v902 = vld [vmem:[%s699 + $0x61] sm:$0xff]
      %v903 = vld [vmem:[%s699 + $0x69] sm:$0xff]
      %v904 = vld [vmem:[%s699 + $0x79] sm:$0xff]
      %v905 = vld [vmem:[%s699 + $0x81] sm:$0xff]
      %v906 = vld [vmem:[%s699 + $0x91] sm:$0xff]
      %v907 = vld [vmem:[%s699 + $0x99] sm:$0xff]
      %v908 = vld [vmem:[%s699 + $0xa9] sm:$0xff]
      %v909 = vld [vmem:[%s699 + $0xb1] sm:$0xff]
      %v910 = vld [vmem:[%s699 + $0xc1] sm:$0xff]
      %v911 = vld [vmem:[%s699 + $0xc9] sm:$0xff]
      %v912 = vld [vmem:[%s699 + $0xd9] sm:$0xff]
      %v913 = vld [vmem:[%s699 + $0xe1] sm:$0xff]
      %v914 = vld [vmem:[%s699 + $0xf1] sm:$0xff]
      %v915 = vld [vmem:[%s699 + $0xf9] sm:$0xff]
      %v916 = vld [vmem:[%s699 + $0x109] sm:$0xff]
      %v917 = vld [vmem:[%s699 + $0x111] sm:$0xff]
      %v918 = vld [vmem:[%s699 + $0x121] sm:$0xff]
      %v919 = vld [vmem:[%s699 + $0x129] sm:$0xff]
      %v920 = vld [vmem:[%s699 + $0x139] sm:$0xff]
      %v921 = vld [vmem:[%s699 + $0x141] sm:$0xff]
      %v922 = vld [vmem:[%s699 + $0x151] sm:$0xff]
      %v923 = vld [vmem:[%s699 + $0x159] sm:$0xff]
      %v924 = vld [vmem:[%s699 + $0x169] sm:$0xff]
      %v925 = vld [vmem:[%s699 + $0x171] sm:$0xff]
      %s926 = scalar_lea.vmem %s1, 512
      %v927 = vld [vmem:[%s926] sm:$0xff]
      %v928 = vld [vmem:[%s926 + $0x8] sm:$0xff]
      %v929 = vld [vmem:[%s926 + $0x10] sm:$0xff]
      %v930 = vld [vmem:[%s926 + $0x18] sm:$0xff]
      %v931 = vld [vmem:[%s926 + $0x20] sm:$0xff]
      %v932 = vld [vmem:[%s926 + $0x28] sm:$0xff]
      %v933 = vld [vmem:[%s926 + $0x30] sm:$0xff]
      %v934 = vld [vmem:[%s926 + $0x38] sm:$0xff]
      %v935 = vld [vmem:[%s926 + $0x40] sm:$0xff]
      %v936 = vld [vmem:[%s926 + $0x48] sm:$0xff]
      %v937 = vld [vmem:[%s926 + $0x50] sm:$0xff]
      %v938 = vld [vmem:[%s926 + $0x58] sm:$0xff]
      %v939 = vld [vmem:[%s926 + $0x60] sm:$0xff]
      %v940 = vld [vmem:[%s926 + $0x68] sm:$0xff]
      %v941 = vld [vmem:[%s926 + $0x70] sm:$0xff]
      %v942 = vld [vmem:[%s926 + $0x78] sm:$0xff]
      %943 = vmatpush.msra.mxu0 %v942
      %944 = vmatpush.msra.mxu0 %v941
      %945 = vmatpush.msra.mxu0 %v940
      %946 = vmatpush.msra.mxu0 %v939
      %947 = vmatpush.msra.mxu0 %v938
      %948 = vmatpush.msra.mxu0 %v937
      %949 = vmatpush.msra.mxu0 %v936
      %950 = vmatpush.msra.mxu0 %v935
      %951 = vmatpush.msra.mxu0 %v934
      %952 = vmatpush.msra.mxu0 %v933
      %953 = vmatpush.msra.mxu0 %v932
      %954 = vmatpush.msra.mxu0 %v931
      %955 = vmatpush.msra.mxu0 %v930
      %956 = vmatpush.msra.mxu0 %v929
      %957 = vmatpush.msra.mxu0 %v928
      %958 = vmatpush.msra.mxu0 %v927
      %959 = vmatmul.f32.gmra.mxu0 %v894
      %v960 = vpop.f32.mrf.mxu0
      %v961 = vadd.f32 0.0, %v960
      %962 = vmatmul.f32.gmra.mxu0 %v895
      %v963 = vpop.f32.mrf.mxu0
      %v964 = vadd.f32 0.0, %v963
      %965 = vmatmul.f32.gmra.mxu0 %v896
      %v966 = vpop.f32.mrf.mxu0
      %v967 = vadd.f32 0.0, %v966
      %968 = vmatmul.f32.gmra.mxu0 %v897
      %v969 = vpop.f32.mrf.mxu0
      %v970 = vadd.f32 0.0, %v969
      %971 = vmatmul.f32.gmra.mxu0 %v898
      %v972 = vpop.f32.mrf.mxu0
      %v973 = vadd.f32 0.0, %v972
      %974 = vmatmul.f32.gmra.mxu0 %v899
      %v975 = vpop.f32.mrf.mxu0
      %v976 = vadd.f32 0.0, %v975
      %977 = vmatmul.f32.gmra.mxu0 %v900
      %v978 = vpop.f32.mrf.mxu0
      %v979 = vadd.f32 0.0, %v978
      %980 = vmatmul.f32.gmra.mxu0 %v901
      %v981 = vpop.f32.mrf.mxu0
      %v982 = vadd.f32 0.0, %v981
      %983 = vmatmul.f32.gmra.mxu0 %v902
      %v984 = vpop.f32.mrf.mxu0
      %v985 = vadd.f32 0.0, %v984
      %986 = vmatmul.f32.gmra.mxu0 %v903
      %v987 = vpop.f32.mrf.mxu0
      %v988 = vadd.f32 0.0, %v987
      %989 = vmatmul.f32.gmra.mxu0 %v904
      %v990 = vpop.f32.mrf.mxu0
      %v991 = vadd.f32 0.0, %v990
      %992 = vmatmul.f32.gmra.mxu0 %v905
      %v993 = vpop.f32.mrf.mxu0
      %v994 = vadd.f32 0.0, %v993
      %995 = vmatmul.f32.gmra.mxu0 %v906
      %v996 = vpop.f32.mrf.mxu0
      %v997 = vadd.f32 0.0, %v996
      %998 = vmatmul.f32.gmra.mxu0 %v907
      %v999 = vpop.f32.mrf.mxu0
      %v1000 = vadd.f32 0.0, %v999
      %1001 = vmatmul.f32.gmra.mxu0 %v908
      %v1002 = vpop.f32.mrf.mxu0
      %v1003 = vadd.f32 0.0, %v1002
      %1004 = vmatmul.f32.gmra.mxu0 %v909
      %v1005 = vpop.f32.mrf.mxu0
      %v1006 = vadd.f32 0.0, %v1005
      %1007 = vmatmul.f32.gmra.mxu0 %v910
      %v1008 = vpop.f32.mrf.mxu0
      %v1009 = vadd.f32 0.0, %v1008
      %1010 = vmatmul.f32.gmra.mxu0 %v911
      %v1011 = vpop.f32.mrf.mxu0
      %v1012 = vadd.f32 0.0, %v1011
      %1013 = vmatmul.f32.gmra.mxu0 %v912
      %v1014 = vpop.f32.mrf.mxu0
      %v1015 = vadd.f32 0.0, %v1014
      %1016 = vmatmul.f32.gmra.mxu0 %v913
      %v1017 = vpop.f32.mrf.mxu0
      %v1018 = vadd.f32 0.0, %v1017
      %1019 = vmatmul.f32.gmra.mxu0 %v914
      %v1020 = vpop.f32.mrf.mxu0
      %v1021 = vadd.f32 0.0, %v1020
      %1022 = vmatmul.f32.gmra.mxu0 %v915
      %v1023 = vpop.f32.mrf.mxu0
      %v1024 = vadd.f32 0.0, %v1023
      %1025 = vmatmul.f32.gmra.mxu0 %v916
      %v1026 = vpop.f32.mrf.mxu0
      %v1027 = vadd.f32 0.0, %v1026
      %1028 = vmatmul.f32.gmra.mxu0 %v917
      %v1029 = vpop.f32.mrf.mxu0
      %v1030 = vadd.f32 0.0, %v1029
      %1031 = vmatmul.f32.gmra.mxu0 %v918
      %v1032 = vpop.f32.mrf.mxu0
      %v1033 = vadd.f32 0.0, %v1032
      %1034 = vmatmul.f32.gmra.mxu0 %v919
      %v1035 = vpop.f32.mrf.mxu0
      %v1036 = vadd.f32 0.0, %v1035
      %1037 = vmatmul.f32.gmra.mxu0 %v920
      %v1038 = vpop.f32.mrf.mxu0
      %v1039 = vadd.f32 0.0, %v1038
      %1040 = vmatmul.f32.gmra.mxu0 %v921
      %v1041 = vpop.f32.mrf.mxu0
      %v1042 = vadd.f32 0.0, %v1041
      %1043 = vmatmul.f32.gmra.mxu0 %v922
      %v1044 = vpop.f32.mrf.mxu0
      %v1045 = vadd.f32 0.0, %v1044
      %1046 = vmatmul.f32.gmra.mxu0 %v923
      %v1047 = vpop.f32.mrf.mxu0
      %v1048 = vadd.f32 0.0, %v1047
      %1049 = vmatmul.f32.gmra.mxu0 %v924
      %v1050 = vpop.f32.mrf.mxu0
      %v1051 = vadd.f32 0.0, %v1050
      %1052 = vmatmul.f32.gmra.mxu0 %v925
      %v1053 = vpop.f32.mrf.mxu0
      %v1054 = vadd.f32 0.0, %v1053
      %1055 = vdwg.mxu0
      %v1056 = vadd.f32 %v862, %v961
      %v1057 = vadd.f32 %v863, %v964
      %v1058 = vadd.f32 %v864, %v967
      %v1059 = vadd.f32 %v865, %v970
      %v1060 = vadd.f32 %v866, %v973
      %v1061 = vadd.f32 %v867, %v976
      %v1062 = vadd.f32 %v868, %v979
      %v1063 = vadd.f32 %v869, %v982
      %v1064 = vadd.f32 %v870, %v985
      %v1065 = vadd.f32 %v871, %v988
      %v1066 = vadd.f32 %v872, %v991
      %v1067 = vadd.f32 %v873, %v994
      %v1068 = vadd.f32 %v874, %v997
      %v1069 = vadd.f32 %v875, %v1000
      %v1070 = vadd.f32 %v876, %v1003
      %v1071 = vadd.f32 %v877, %v1006
      %v1072 = vadd.f32 %v878, %v1009
      %v1073 = vadd.f32 %v879, %v1012
      %v1074 = vadd.f32 %v880, %v1015
      %v1075 = vadd.f32 %v881, %v1018
      %v1076 = vadd.f32 %v882, %v1021
      %v1077 = vadd.f32 %v883, %v1024
      %v1078 = vadd.f32 %v884, %v1027
      %v1079 = vadd.f32 %v885, %v1030
      %v1080 = vadd.f32 %v886, %v1033
      %v1081 = vadd.f32 %v887, %v1036
      %v1082 = vadd.f32 %v888, %v1039
      %v1083 = vadd.f32 %v889, %v1042
      %v1084 = vadd.f32 %v890, %v1045
      %v1085 = vadd.f32 %v891, %v1048
      %v1086 = vadd.f32 %v892, %v1051
      %v1087 = vadd.f32 %v893, %v1054
      %v1088 = vld [vmem:[%s699 + $0x2] sm:$0xff]
      %v1089 = vld [vmem:[%s699 + $0xa] sm:$0xff]
      %v1090 = vld [vmem:[%s699 + $0x1a] sm:$0xff]
      %v1091 = vld [vmem:[%s699 + $0x22] sm:$0xff]
      %v1092 = vld [vmem:[%s699 + $0x32] sm:$0xff]
      %v1093 = vld [vmem:[%s699 + $0x3a] sm:$0xff]
      %v1094 = vld [vmem:[%s699 + $0x4a] sm:$0xff]
      %v1095 = vld [vmem:[%s699 + $0x52] sm:$0xff]
      %v1096 = vld [vmem:[%s699 + $0x62] sm:$0xff]
      %v1097 = vld [vmem:[%s699 + $0x6a] sm:$0xff]
      %v1098 = vld [vmem:[%s699 + $0x7a] sm:$0xff]
      %v1099 = vld [vmem:[%s699 + $0x82] sm:$0xff]
      %v1100 = vld [vmem:[%s699 + $0x92] sm:$0xff]
      %v1101 = vld [vmem:[%s699 + $0x9a] sm:$0xff]
      %v1102 = vld [vmem:[%s699 + $0xaa] sm:$0xff]
      %v1103 = vld [vmem:[%s699 + $0xb2] sm:$0xff]
      %v1104 = vld [vmem:[%s699 + $0xc2] sm:$0xff]
      %v1105 = vld [vmem:[%s699 + $0xca] sm:$0xff]
      %v1106 = vld [vmem:[%s699 + $0xda] sm:$0xff]
      %v1107 = vld [vmem:[%s699 + $0xe2] sm:$0xff]
      %v1108 = vld [vmem:[%s699 + $0xf2] sm:$0xff]
      %v1109 = vld [vmem:[%s699 + $0xfa] sm:$0xff]
      %v1110 = vld [vmem:[%s699 + $0x10a] sm:$0xff]
      %v1111 = vld [vmem:[%s699 + $0x112] sm:$0xff]
      %v1112 = vld [vmem:[%s699 + $0x122] sm:$0xff]
      %v1113 = vld [vmem:[%s699 + $0x12a] sm:$0xff]
      %v1114 = vld [vmem:[%s699 + $0x13a] sm:$0xff]
      %v1115 = vld [vmem:[%s699 + $0x142] sm:$0xff]
      %v1116 = vld [vmem:[%s699 + $0x152] sm:$0xff]
      %v1117 = vld [vmem:[%s699 + $0x15a] sm:$0xff]
      %v1118 = vld [vmem:[%s699 + $0x16a] sm:$0xff]
      %v1119 = vld [vmem:[%s699 + $0x172] sm:$0xff]
      %s1120 = scalar_lea.vmem %s1, 640
      %v1121 = vld [vmem:[%s1120] sm:$0xff]
      %v1122 = vld [vmem:[%s1120 + $0x8] sm:$0xff]
      %v1123 = vld [vmem:[%s1120 + $0x10] sm:$0xff]
      %v1124 = vld [vmem:[%s1120 + $0x18] sm:$0xff]
      %v1125 = vld [vmem:[%s1120 + $0x20] sm:$0xff]
      %v1126 = vld [vmem:[%s1120 + $0x28] sm:$0xff]
      %v1127 = vld [vmem:[%s1120 + $0x30] sm:$0xff]
      %v1128 = vld [vmem:[%s1120 + $0x38] sm:$0xff]
      %v1129 = vld [vmem:[%s1120 + $0x40] sm:$0xff]
      %v1130 = vld [vmem:[%s1120 + $0x48] sm:$0xff]
      %v1131 = vld [vmem:[%s1120 + $0x50] sm:$0xff]
      %v1132 = vld [vmem:[%s1120 + $0x58] sm:$0xff]
      %v1133 = vld [vmem:[%s1120 + $0x60] sm:$0xff]
      %v1134 = vld [vmem:[%s1120 + $0x68] sm:$0xff]
      %v1135 = vld [vmem:[%s1120 + $0x70] sm:$0xff]
      %v1136 = vld [vmem:[%s1120 + $0x78] sm:$0xff]
      %1137 = vmatpush.msra.mxu0 %v1136
      %1138 = vmatpush.msra.mxu0 %v1135
      %1139 = vmatpush.msra.mxu0 %v1134
      %1140 = vmatpush.msra.mxu0 %v1133
      %1141 = vmatpush.msra.mxu0 %v1132
      %1142 = vmatpush.msra.mxu0 %v1131
      %1143 = vmatpush.msra.mxu0 %v1130
      %1144 = vmatpush.msra.mxu0 %v1129
      %1145 = vmatpush.msra.mxu0 %v1128
      %1146 = vmatpush.msra.mxu0 %v1127
      %1147 = vmatpush.msra.mxu0 %v1126
      %1148 = vmatpush.msra.mxu0 %v1125
      %1149 = vmatpush.msra.mxu0 %v1124
      %1150 = vmatpush.msra.mxu0 %v1123
      %1151 = vmatpush.msra.mxu0 %v1122
      %1152 = vmatpush.msra.mxu0 %v1121
      %1153 = vmatmul.f32.gmra.mxu0 %v1088
      %v1154 = vpop.f32.mrf.mxu0
      %v1155 = vadd.f32 0.0, %v1154
      %1156 = vmatmul.f32.gmra.mxu0 %v1089
      %v1157 = vpop.f32.mrf.mxu0
      %v1158 = vadd.f32 0.0, %v1157
      %1159 = vmatmul.f32.gmra.mxu0 %v1090
      %v1160 = vpop.f32.mrf.mxu0
      %v1161 = vadd.f32 0.0, %v1160
      %1162 = vmatmul.f32.gmra.mxu0 %v1091
      %v1163 = vpop.f32.mrf.mxu0
      %v1164 = vadd.f32 0.0, %v1163
      %1165 = vmatmul.f32.gmra.mxu0 %v1092
      %v1166 = vpop.f32.mrf.mxu0
      %v1167 = vadd.f32 0.0, %v1166
      %1168 = vmatmul.f32.gmra.mxu0 %v1093
      %v1169 = vpop.f32.mrf.mxu0
      %v1170 = vadd.f32 0.0, %v1169
      %1171 = vmatmul.f32.gmra.mxu0 %v1094
      %v1172 = vpop.f32.mrf.mxu0
      %v1173 = vadd.f32 0.0, %v1172
      %1174 = vmatmul.f32.gmra.mxu0 %v1095
      %v1175 = vpop.f32.mrf.mxu0
      %v1176 = vadd.f32 0.0, %v1175
      %1177 = vmatmul.f32.gmra.mxu0 %v1096
      %v1178 = vpop.f32.mrf.mxu0
      %v1179 = vadd.f32 0.0, %v1178
      %1180 = vmatmul.f32.gmra.mxu0 %v1097
      %v1181 = vpop.f32.mrf.mxu0
      %v1182 = vadd.f32 0.0, %v1181
      %1183 = vmatmul.f32.gmra.mxu0 %v1098
      %v1184 = vpop.f32.mrf.mxu0
      %v1185 = vadd.f32 0.0, %v1184
      %1186 = vmatmul.f32.gmra.mxu0 %v1099
      %v1187 = vpop.f32.mrf.mxu0
      %v1188 = vadd.f32 0.0, %v1187
      %1189 = vmatmul.f32.gmra.mxu0 %v1100
      %v1190 = vpop.f32.mrf.mxu0
      %v1191 = vadd.f32 0.0, %v1190
      %1192 = vmatmul.f32.gmra.mxu0 %v1101
      %v1193 = vpop.f32.mrf.mxu0
      %v1194 = vadd.f32 0.0, %v1193
      %1195 = vmatmul.f32.gmra.mxu0 %v1102
      %v1196 = vpop.f32.mrf.mxu0
      %v1197 = vadd.f32 0.0, %v1196
      %1198 = vmatmul.f32.gmra.mxu0 %v1103
      %v1199 = vpop.f32.mrf.mxu0
      %v1200 = vadd.f32 0.0, %v1199
      %1201 = vmatmul.f32.gmra.mxu0 %v1104
      %v1202 = vpop.f32.mrf.mxu0
      %v1203 = vadd.f32 0.0, %v1202
      %1204 = vmatmul.f32.gmra.mxu0 %v1105
      %v1205 = vpop.f32.mrf.mxu0
      %v1206 = vadd.f32 0.0, %v1205
      %1207 = vmatmul.f32.gmra.mxu0 %v1106
      %v1208 = vpop.f32.mrf.mxu0
      %v1209 = vadd.f32 0.0, %v1208
      %1210 = vmatmul.f32.gmra.mxu0 %v1107
      %v1211 = vpop.f32.mrf.mxu0
      %v1212 = vadd.f32 0.0, %v1211
      %1213 = vmatmul.f32.gmra.mxu0 %v1108
      %v1214 = vpop.f32.mrf.mxu0
      %v1215 = vadd.f32 0.0, %v1214
      %1216 = vmatmul.f32.gmra.mxu0 %v1109
      %v1217 = vpop.f32.mrf.mxu0
      %v1218 = vadd.f32 0.0, %v1217
      %1219 = vmatmul.f32.gmra.mxu0 %v1110
      %v1220 = vpop.f32.mrf.mxu0
      %v1221 = vadd.f32 0.0, %v1220
      %1222 = vmatmul.f32.gmra.mxu0 %v1111
      %v1223 = vpop.f32.mrf.mxu0
      %v1224 = vadd.f32 0.0, %v1223
      %1225 = vmatmul.f32.gmra.mxu0 %v1112
      %v1226 = vpop.f32.mrf.mxu0
      %v1227 = vadd.f32 0.0, %v1226
      %1228 = vmatmul.f32.gmra.mxu0 %v1113
      %v1229 = vpop.f32.mrf.mxu0
      %v1230 = vadd.f32 0.0, %v1229
      %1231 = vmatmul.f32.gmra.mxu0 %v1114
      %v1232 = vpop.f32.mrf.mxu0
      %v1233 = vadd.f32 0.0, %v1232
      %1234 = vmatmul.f32.gmra.mxu0 %v1115
      %v1235 = vpop.f32.mrf.mxu0
      %v1236 = vadd.f32 0.0, %v1235
      %1237 = vmatmul.f32.gmra.mxu0 %v1116
      %v1238 = vpop.f32.mrf.mxu0
      %v1239 = vadd.f32 0.0, %v1238
      %1240 = vmatmul.f32.gmra.mxu0 %v1117
      %v1241 = vpop.f32.mrf.mxu0
      %v1242 = vadd.f32 0.0, %v1241
      %1243 = vmatmul.f32.gmra.mxu0 %v1118
      %v1244 = vpop.f32.mrf.mxu0
      %v1245 = vadd.f32 0.0, %v1244
      %1246 = vmatmul.f32.gmra.mxu0 %v1119
      %v1247 = vpop.f32.mrf.mxu0
      %v1248 = vadd.f32 0.0, %v1247
      %1249 = vdwg.mxu0
      %v1250 = vadd.f32 %v1056, %v1155
      %v1251 = vadd.f32 %v1057, %v1158
      %v1252 = vadd.f32 %v1058, %v1161
      %v1253 = vadd.f32 %v1059, %v1164
      %v1254 = vadd.f32 %v1060, %v1167
      %v1255 = vadd.f32 %v1061, %v1170
      %v1256 = vadd.f32 %v1062, %v1173
      %v1257 = vadd.f32 %v1063, %v1176
      %v1258 = vadd.f32 %v1064, %v1179
      %v1259 = vadd.f32 %v1065, %v1182
      %v1260 = vadd.f32 %v1066, %v1185
      %v1261 = vadd.f32 %v1067, %v1188
      %v1262 = vadd.f32 %v1068, %v1191
      %v1263 = vadd.f32 %v1069, %v1194
      %v1264 = vadd.f32 %v1070, %v1197
      %v1265 = vadd.f32 %v1071, %v1200
      %v1266 = vadd.f32 %v1072, %v1203
      %v1267 = vadd.f32 %v1073, %v1206
      %v1268 = vadd.f32 %v1074, %v1209
      %v1269 = vadd.f32 %v1075, %v1212
      %v1270 = vadd.f32 %v1076, %v1215
      %v1271 = vadd.f32 %v1077, %v1218
      %v1272 = vadd.f32 %v1078, %v1221
      %v1273 = vadd.f32 %v1079, %v1224
      %v1274 = vadd.f32 %v1080, %v1227
      %v1275 = vadd.f32 %v1081, %v1230
      %v1276 = vadd.f32 %v1082, %v1233
      %v1277 = vadd.f32 %v1083, %v1236
      %v1278 = vadd.f32 %v1084, %v1239
      %v1279 = vadd.f32 %v1085, %v1242
      %v1280 = vadd.f32 %v1086, %v1245
      %v1281 = vadd.f32 %v1087, %v1248
      %s1282 = scalar_lea.vmem %s172, 48
      %v1283 = vld [vmem:[%s1282] sm:$0xff]
      %v1284 = vld [vmem:[%s1282 + $0x8] sm:$0xff]
      %v1285 = vld [vmem:[%s1282 + $0x18] sm:$0xff]
      %v1286 = vld [vmem:[%s1282 + $0x20] sm:$0xff]
      %v1287 = vld [vmem:[%s1282 + $0x30] sm:$0xff]
      %v1288 = vld [vmem:[%s1282 + $0x38] sm:$0xff]
      %v1289 = vld [vmem:[%s1282 + $0x48] sm:$0xff]
      %v1290 = vld [vmem:[%s1282 + $0x50] sm:$0xff]
      %v1291 = vld [vmem:[%s1282 + $0x60] sm:$0xff]
      %v1292 = vld [vmem:[%s1282 + $0x68] sm:$0xff]
      %v1293 = vld [vmem:[%s1282 + $0x78] sm:$0xff]
      %v1294 = vld [vmem:[%s1282 + $0x80] sm:$0xff]
      %v1295 = vld [vmem:[%s1282 + $0x90] sm:$0xff]
      %v1296 = vld [vmem:[%s1282 + $0x98] sm:$0xff]
      %v1297 = vld [vmem:[%s1282 + $0xa8] sm:$0xff]
      %v1298 = vld [vmem:[%s1282 + $0xb0] sm:$0xff]
      %v1299 = vld [vmem:[%s1282 + $0xc0] sm:$0xff]
      %v1300 = vld [vmem:[%s1282 + $0xc8] sm:$0xff]
      %v1301 = vld [vmem:[%s1282 + $0xd8] sm:$0xff]
      %v1302 = vld [vmem:[%s1282 + $0xe0] sm:$0xff]
      %v1303 = vld [vmem:[%s1282 + $0xf0] sm:$0xff]
      %v1304 = vld [vmem:[%s1282 + $0xf8] sm:$0xff]
      %v1305 = vld [vmem:[%s1282 + $0x108] sm:$0xff]
      %v1306 = vld [vmem:[%s1282 + $0x110] sm:$0xff]
      %v1307 = vld [vmem:[%s1282 + $0x120] sm:$0xff]
      %v1308 = vld [vmem:[%s1282 + $0x128] sm:$0xff]
      %v1309 = vld [vmem:[%s1282 + $0x138] sm:$0xff]
      %v1310 = vld [vmem:[%s1282 + $0x140] sm:$0xff]
      %v1311 = vld [vmem:[%s1282 + $0x150] sm:$0xff]
      %v1312 = vld [vmem:[%s1282 + $0x158] sm:$0xff]
      %v1313 = vld [vmem:[%s1282 + $0x168] sm:$0xff]
      %v1314 = vld [vmem:[%s1282 + $0x170] sm:$0xff]
      %s1315 = scalar_lea.vmem %s1, 768
      %v1316 = vld [vmem:[%s1315] sm:$0xff]
      %v1317 = vld [vmem:[%s1315 + $0x8] sm:$0xff]
      %v1318 = vld [vmem:[%s1315 + $0x10] sm:$0xff]
      %v1319 = vld [vmem:[%s1315 + $0x18] sm:$0xff]
      %v1320 = vld [vmem:[%s1315 + $0x20] sm:$0xff]
      %v1321 = vld [vmem:[%s1315 + $0x28] sm:$0xff]
      %v1322 = vld [vmem:[%s1315 + $0x30] sm:$0xff]
      %v1323 = vld [vmem:[%s1315 + $0x38] sm:$0xff]
      %v1324 = vld [vmem:[%s1315 + $0x40] sm:$0xff]
      %v1325 = vld [vmem:[%s1315 + $0x48] sm:$0xff]
      %v1326 = vld [vmem:[%s1315 + $0x50] sm:$0xff]
      %v1327 = vld [vmem:[%s1315 + $0x58] sm:$0xff]
      %v1328 = vld [vmem:[%s1315 + $0x60] sm:$0xff]
      %v1329 = vld [vmem:[%s1315 + $0x68] sm:$0xff]
      %v1330 = vld [vmem:[%s1315 + $0x70] sm:$0xff]
      %v1331 = vld [vmem:[%s1315 + $0x78] sm:$0xff]
      %1332 = vmatpush.msra.mxu0 %v1331
      %1333 = vmatpush.msra.mxu0 %v1330
      %1334 = vmatpush.msra.mxu0 %v1329
      %1335 = vmatpush.msra.mxu0 %v1328
      %1336 = vmatpush.msra.mxu0 %v1327
      %1337 = vmatpush.msra.mxu0 %v1326
      %1338 = vmatpush.msra.mxu0 %v1325
      %1339 = vmatpush.msra.mxu0 %v1324
      %1340 = vmatpush.msra.mxu0 %v1323
      %1341 = vmatpush.msra.mxu0 %v1322
      %1342 = vmatpush.msra.mxu0 %v1321
      %1343 = vmatpush.msra.mxu0 %v1320
      %1344 = vmatpush.msra.mxu0 %v1319
      %1345 = vmatpush.msra.mxu0 %v1318
      %1346 = vmatpush.msra.mxu0 %v1317
      %1347 = vmatpush.msra.mxu0 %v1316
      %1348 = vmatmul.f32.gmra.mxu0 %v1283
      %v1349 = vpop.f32.mrf.mxu0
      %v1350 = vadd.f32 0.0, %v1349
      %1351 = vmatmul.f32.gmra.mxu0 %v1284
      %v1352 = vpop.f32.mrf.mxu0
      %v1353 = vadd.f32 0.0, %v1352
      %1354 = vmatmul.f32.gmra.mxu0 %v1285
      %v1355 = vpop.f32.mrf.mxu0
      %v1356 = vadd.f32 0.0, %v1355
      %1357 = vmatmul.f32.gmra.mxu0 %v1286
      %v1358 = vpop.f32.mrf.mxu0
      %v1359 = vadd.f32 0.0, %v1358
      %1360 = vmatmul.f32.gmra.mxu0 %v1287
      %v1361 = vpop.f32.mrf.mxu0
      %v1362 = vadd.f32 0.0, %v1361
      %1363 = vmatmul.f32.gmra.mxu0 %v1288
      %v1364 = vpop.f32.mrf.mxu0
      %v1365 = vadd.f32 0.0, %v1364
      %1366 = vmatmul.f32.gmra.mxu0 %v1289
      %v1367 = vpop.f32.mrf.mxu0
      %v1368 = vadd.f32 0.0, %v1367
      %1369 = vmatmul.f32.gmra.mxu0 %v1290
      %v1370 = vpop.f32.mrf.mxu0
      %v1371 = vadd.f32 0.0, %v1370
      %1372 = vmatmul.f32.gmra.mxu0 %v1291
      %v1373 = vpop.f32.mrf.mxu0
      %v1374 = vadd.f32 0.0, %v1373
      %1375 = vmatmul.f32.gmra.mxu0 %v1292
      %v1376 = vpop.f32.mrf.mxu0
      %v1377 = vadd.f32 0.0, %v1376
      %1378 = vmatmul.f32.gmra.mxu0 %v1293
      %v1379 = vpop.f32.mrf.mxu0
      %v1380 = vadd.f32 0.0, %v1379
      %1381 = vmatmul.f32.gmra.mxu0 %v1294
      %v1382 = vpop.f32.mrf.mxu0
      %v1383 = vadd.f32 0.0, %v1382
      %1384 = vmatmul.f32.gmra.mxu0 %v1295
      %v1385 = vpop.f32.mrf.mxu0
      %v1386 = vadd.f32 0.0, %v1385
      %1387 = vmatmul.f32.gmra.mxu0 %v1296
      %v1388 = vpop.f32.mrf.mxu0
      %v1389 = vadd.f32 0.0, %v1388
      %1390 = vmatmul.f32.gmra.mxu0 %v1297
      %v1391 = vpop.f32.mrf.mxu0
      %v1392 = vadd.f32 0.0, %v1391
      %1393 = vmatmul.f32.gmra.mxu0 %v1298
      %v1394 = vpop.f32.mrf.mxu0
      %v1395 = vadd.f32 0.0, %v1394
      %1396 = vmatmul.f32.gmra.mxu0 %v1299
      %v1397 = vpop.f32.mrf.mxu0
      %v1398 = vadd.f32 0.0, %v1397
      %1399 = vmatmul.f32.gmra.mxu0 %v1300
      %v1400 = vpop.f32.mrf.mxu0
      %v1401 = vadd.f32 0.0, %v1400
      %1402 = vmatmul.f32.gmra.mxu0 %v1301
      %v1403 = vpop.f32.mrf.mxu0
      %v1404 = vadd.f32 0.0, %v1403
      %1405 = vmatmul.f32.gmra.mxu0 %v1302
      %v1406 = vpop.f32.mrf.mxu0
      %v1407 = vadd.f32 0.0, %v1406
      %1408 = vmatmul.f32.gmra.mxu0 %v1303
      %v1409 = vpop.f32.mrf.mxu0
      %v1410 = vadd.f32 0.0, %v1409
      %1411 = vmatmul.f32.gmra.mxu0 %v1304
      %v1412 = vpop.f32.mrf.mxu0
      %v1413 = vadd.f32 0.0, %v1412
      %1414 = vmatmul.f32.gmra.mxu0 %v1305
      %v1415 = vpop.f32.mrf.mxu0
      %v1416 = vadd.f32 0.0, %v1415
      %1417 = vmatmul.f32.gmra.mxu0 %v1306
      %v1418 = vpop.f32.mrf.mxu0
      %v1419 = vadd.f32 0.0, %v1418
      %1420 = vmatmul.f32.gmra.mxu0 %v1307
      %v1421 = vpop.f32.mrf.mxu0
      %v1422 = vadd.f32 0.0, %v1421
      %1423 = vmatmul.f32.gmra.mxu0 %v1308
      %v1424 = vpop.f32.mrf.mxu0
      %v1425 = vadd.f32 0.0, %v1424
      %1426 = vmatmul.f32.gmra.mxu0 %v1309
      %v1427 = vpop.f32.mrf.mxu0
      %v1428 = vadd.f32 0.0, %v1427
      %1429 = vmatmul.f32.gmra.mxu0 %v1310
      %v1430 = vpop.f32.mrf.mxu0
      %v1431 = vadd.f32 0.0, %v1430
      %1432 = vmatmul.f32.gmra.mxu0 %v1311
      %v1433 = vpop.f32.mrf.mxu0
      %v1434 = vadd.f32 0.0, %v1433
      %1435 = vmatmul.f32.gmra.mxu0 %v1312
      %v1436 = vpop.f32.mrf.mxu0
      %v1437 = vadd.f32 0.0, %v1436
      %1438 = vmatmul.f32.gmra.mxu0 %v1313
      %v1439 = vpop.f32.mrf.mxu0
      %v1440 = vadd.f32 0.0, %v1439
      %1441 = vmatmul.f32.gmra.mxu0 %v1314
      %v1442 = vpop.f32.mrf.mxu0
      %v1443 = vadd.f32 0.0, %v1442
      %1444 = vdwg.mxu0
      %v1445 = vadd.f32 %v1250, %v1350
      %v1446 = vadd.f32 %v1251, %v1353
      %v1447 = vadd.f32 %v1252, %v1356
      %v1448 = vadd.f32 %v1253, %v1359
      %v1449 = vadd.f32 %v1254, %v1362
      %v1450 = vadd.f32 %v1255, %v1365
      %v1451 = vadd.f32 %v1256, %v1368
      %v1452 = vadd.f32 %v1257, %v1371
      %v1453 = vadd.f32 %v1258, %v1374
      %v1454 = vadd.f32 %v1259, %v1377
      %v1455 = vadd.f32 %v1260, %v1380
      %v1456 = vadd.f32 %v1261, %v1383
      %v1457 = vadd.f32 %v1262, %v1386
      %v1458 = vadd.f32 %v1263, %v1389
      %v1459 = vadd.f32 %v1264, %v1392
      %v1460 = vadd.f32 %v1265, %v1395
      %v1461 = vadd.f32 %v1266, %v1398
      %v1462 = vadd.f32 %v1267, %v1401
      %v1463 = vadd.f32 %v1268, %v1404
      %v1464 = vadd.f32 %v1269, %v1407
      %v1465 = vadd.f32 %v1270, %v1410
      %v1466 = vadd.f32 %v1271, %v1413
      %v1467 = vadd.f32 %v1272, %v1416
      %v1468 = vadd.f32 %v1273, %v1419
      %v1469 = vadd.f32 %v1274, %v1422
      %v1470 = vadd.f32 %v1275, %v1425
      %v1471 = vadd.f32 %v1276, %v1428
      %v1472 = vadd.f32 %v1277, %v1431
      %v1473 = vadd.f32 %v1278, %v1434
      %v1474 = vadd.f32 %v1279, %v1437
      %v1475 = vadd.f32 %v1280, %v1440
      %v1476 = vadd.f32 %v1281, %v1443
      %v1477 = vld [vmem:[%s1282 + $0x1] sm:$0xff]
      %v1478 = vld [vmem:[%s1282 + $0x9] sm:$0xff]
      %v1479 = vld [vmem:[%s1282 + $0x19] sm:$0xff]
      %v1480 = vld [vmem:[%s1282 + $0x21] sm:$0xff]
      %v1481 = vld [vmem:[%s1282 + $0x31] sm:$0xff]
      %v1482 = vld [vmem:[%s1282 + $0x39] sm:$0xff]
      %v1483 = vld [vmem:[%s1282 + $0x49] sm:$0xff]
      %v1484 = vld [vmem:[%s1282 + $0x51] sm:$0xff]
      %v1485 = vld [vmem:[%s1282 + $0x61] sm:$0xff]
      %v1486 = vld [vmem:[%s1282 + $0x69] sm:$0xff]
      %v1487 = vld [vmem:[%s1282 + $0x79] sm:$0xff]
      %v1488 = vld [vmem:[%s1282 + $0x81] sm:$0xff]
      %v1489 = vld [vmem:[%s1282 + $0x91] sm:$0xff]
      %v1490 = vld [vmem:[%s1282 + $0x99] sm:$0xff]
      %v1491 = vld [vmem:[%s1282 + $0xa9] sm:$0xff]
      %v1492 = vld [vmem:[%s1282 + $0xb1] sm:$0xff]
      %v1493 = vld [vmem:[%s1282 + $0xc1] sm:$0xff]
      %v1494 = vld [vmem:[%s1282 + $0xc9] sm:$0xff]
      %v1495 = vld [vmem:[%s1282 + $0xd9] sm:$0xff]
      %v1496 = vld [vmem:[%s1282 + $0xe1] sm:$0xff]
      %v1497 = vld [vmem:[%s1282 + $0xf1] sm:$0xff]
      %v1498 = vld [vmem:[%s1282 + $0xf9] sm:$0xff]
      %v1499 = vld [vmem:[%s1282 + $0x109] sm:$0xff]
      %v1500 = vld [vmem:[%s1282 + $0x111] sm:$0xff]
      %v1501 = vld [vmem:[%s1282 + $0x121] sm:$0xff]
      %v1502 = vld [vmem:[%s1282 + $0x129] sm:$0xff]
      %v1503 = vld [vmem:[%s1282 + $0x139] sm:$0xff]
      %v1504 = vld [vmem:[%s1282 + $0x141] sm:$0xff]
      %v1505 = vld [vmem:[%s1282 + $0x151] sm:$0xff]
      %v1506 = vld [vmem:[%s1282 + $0x159] sm:$0xff]
      %v1507 = vld [vmem:[%s1282 + $0x169] sm:$0xff]
      %v1508 = vld [vmem:[%s1282 + $0x171] sm:$0xff]
      %s1509 = scalar_lea.vmem %s1, 896
      %v1510 = vld [vmem:[%s1509] sm:$0xff]
      %v1511 = vld [vmem:[%s1509 + $0x8] sm:$0xff]
      %v1512 = vld [vmem:[%s1509 + $0x10] sm:$0xff]
      %v1513 = vld [vmem:[%s1509 + $0x18] sm:$0xff]
      %v1514 = vld [vmem:[%s1509 + $0x20] sm:$0xff]
      %v1515 = vld [vmem:[%s1509 + $0x28] sm:$0xff]
      %v1516 = vld [vmem:[%s1509 + $0x30] sm:$0xff]
      %v1517 = vld [vmem:[%s1509 + $0x38] sm:$0xff]
      %v1518 = vld [vmem:[%s1509 + $0x40] sm:$0xff]
      %v1519 = vld [vmem:[%s1509 + $0x48] sm:$0xff]
      %v1520 = vld [vmem:[%s1509 + $0x50] sm:$0xff]
      %v1521 = vld [vmem:[%s1509 + $0x58] sm:$0xff]
      %v1522 = vld [vmem:[%s1509 + $0x60] sm:$0xff]
      %v1523 = vld [vmem:[%s1509 + $0x68] sm:$0xff]
      %v1524 = vld [vmem:[%s1509 + $0x70] sm:$0xff]
      %v1525 = vld [vmem:[%s1509 + $0x78] sm:$0xff]
      %1526 = vmatpush.msra.mxu0 %v1525
      %1527 = vmatpush.msra.mxu0 %v1524
      %1528 = vmatpush.msra.mxu0 %v1523
      %1529 = vmatpush.msra.mxu0 %v1522
      %1530 = vmatpush.msra.mxu0 %v1521
      %1531 = vmatpush.msra.mxu0 %v1520
      %1532 = vmatpush.msra.mxu0 %v1519
      %1533 = vmatpush.msra.mxu0 %v1518
      %1534 = vmatpush.msra.mxu0 %v1517
      %1535 = vmatpush.msra.mxu0 %v1516
      %1536 = vmatpush.msra.mxu0 %v1515
      %1537 = vmatpush.msra.mxu0 %v1514
      %1538 = vmatpush.msra.mxu0 %v1513
      %1539 = vmatpush.msra.mxu0 %v1512
      %1540 = vmatpush.msra.mxu0 %v1511
      %1541 = vmatpush.msra.mxu0 %v1510
      %1542 = vmatmul.f32.gmra.mxu0 %v1477
      %v1543 = vpop.f32.mrf.mxu0
      %v1544 = vadd.f32 0.0, %v1543
      %1545 = vmatmul.f32.gmra.mxu0 %v1478
      %v1546 = vpop.f32.mrf.mxu0
      %v1547 = vadd.f32 0.0, %v1546
      %1548 = vmatmul.f32.gmra.mxu0 %v1479
      %v1549 = vpop.f32.mrf.mxu0
      %v1550 = vadd.f32 0.0, %v1549
      %1551 = vmatmul.f32.gmra.mxu0 %v1480
      %v1552 = vpop.f32.mrf.mxu0
      %v1553 = vadd.f32 0.0, %v1552
      %1554 = vmatmul.f32.gmra.mxu0 %v1481
      %v1555 = vpop.f32.mrf.mxu0
      %v1556 = vadd.f32 0.0, %v1555
      %1557 = vmatmul.f32.gmra.mxu0 %v1482
      %v1558 = vpop.f32.mrf.mxu0
      %v1559 = vadd.f32 0.0, %v1558
      %1560 = vmatmul.f32.gmra.mxu0 %v1483
      %v1561 = vpop.f32.mrf.mxu0
      %v1562 = vadd.f32 0.0, %v1561
      %1563 = vmatmul.f32.gmra.mxu0 %v1484
      %v1564 = vpop.f32.mrf.mxu0
      %v1565 = vadd.f32 0.0, %v1564
      %1566 = vmatmul.f32.gmra.mxu0 %v1485
      %v1567 = vpop.f32.mrf.mxu0
      %v1568 = vadd.f32 0.0, %v1567
      %1569 = vmatmul.f32.gmra.mxu0 %v1486
      %v1570 = vpop.f32.mrf.mxu0
      %v1571 = vadd.f32 0.0, %v1570
      %1572 = vmatmul.f32.gmra.mxu0 %v1487
      %v1573 = vpop.f32.mrf.mxu0
      %v1574 = vadd.f32 0.0, %v1573
      %1575 = vmatmul.f32.gmra.mxu0 %v1488
      %v1576 = vpop.f32.mrf.mxu0
      %v1577 = vadd.f32 0.0, %v1576
      %1578 = vmatmul.f32.gmra.mxu0 %v1489
      %v1579 = vpop.f32.mrf.mxu0
      %v1580 = vadd.f32 0.0, %v1579
      %1581 = vmatmul.f32.gmra.mxu0 %v1490
      %v1582 = vpop.f32.mrf.mxu0
      %v1583 = vadd.f32 0.0, %v1582
      %1584 = vmatmul.f32.gmra.mxu0 %v1491
      %v1585 = vpop.f32.mrf.mxu0
      %v1586 = vadd.f32 0.0, %v1585
      %1587 = vmatmul.f32.gmra.mxu0 %v1492
      %v1588 = vpop.f32.mrf.mxu0
      %v1589 = vadd.f32 0.0, %v1588
      %1590 = vmatmul.f32.gmra.mxu0 %v1493
      %v1591 = vpop.f32.mrf.mxu0
      %v1592 = vadd.f32 0.0, %v1591
      %1593 = vmatmul.f32.gmra.mxu0 %v1494
      %v1594 = vpop.f32.mrf.mxu0
      %v1595 = vadd.f32 0.0, %v1594
      %1596 = vmatmul.f32.gmra.mxu0 %v1495
      %v1597 = vpop.f32.mrf.mxu0
      %v1598 = vadd.f32 0.0, %v1597
      %1599 = vmatmul.f32.gmra.mxu0 %v1496
      %v1600 = vpop.f32.mrf.mxu0
      %v1601 = vadd.f32 0.0, %v1600
      %1602 = vmatmul.f32.gmra.mxu0 %v1497
      %v1603 = vpop.f32.mrf.mxu0
      %v1604 = vadd.f32 0.0, %v1603
      %1605 = vmatmul.f32.gmra.mxu0 %v1498
      %v1606 = vpop.f32.mrf.mxu0
      %v1607 = vadd.f32 0.0, %v1606
      %1608 = vmatmul.f32.gmra.mxu0 %v1499
      %v1609 = vpop.f32.mrf.mxu0
      %v1610 = vadd.f32 0.0, %v1609
      %1611 = vmatmul.f32.gmra.mxu0 %v1500
      %v1612 = vpop.f32.mrf.mxu0
      %v1613 = vadd.f32 0.0, %v1612
      %1614 = vmatmul.f32.gmra.mxu0 %v1501
      %v1615 = vpop.f32.mrf.mxu0
      %v1616 = vadd.f32 0.0, %v1615
      %1617 = vmatmul.f32.gmra.mxu0 %v1502
      %v1618 = vpop.f32.mrf.mxu0
      %v1619 = vadd.f32 0.0, %v1618
      %1620 = vmatmul.f32.gmra.mxu0 %v1503
      %v1621 = vpop.f32.mrf.mxu0
      %v1622 = vadd.f32 0.0, %v1621
      %1623 = vmatmul.f32.gmra.mxu0 %v1504
      %v1624 = vpop.f32.mrf.mxu0
      %v1625 = vadd.f32 0.0, %v1624
      %1626 = vmatmul.f32.gmra.mxu0 %v1505
      %v1627 = vpop.f32.mrf.mxu0
      %v1628 = vadd.f32 0.0, %v1627
      %1629 = vmatmul.f32.gmra.mxu0 %v1506
      %v1630 = vpop.f32.mrf.mxu0
      %v1631 = vadd.f32 0.0, %v1630
      %1632 = vmatmul.f32.gmra.mxu0 %v1507
      %v1633 = vpop.f32.mrf.mxu0
      %v1634 = vadd.f32 0.0, %v1633
      %1635 = vmatmul.f32.gmra.mxu0 %v1508
      %v1636 = vpop.f32.mrf.mxu0
      %v1637 = vadd.f32 0.0, %v1636
      %1638 = vdwg.mxu0
      %v1639 = vadd.f32 %v1445, %v1544
      %v1640 = vadd.f32 %v1446, %v1547
      %v1641 = vadd.f32 %v1447, %v1550
      %v1642 = vadd.f32 %v1448, %v1553
      %v1643 = vadd.f32 %v1449, %v1556
      %v1644 = vadd.f32 %v1450, %v1559
      %v1645 = vadd.f32 %v1451, %v1562
      %v1646 = vadd.f32 %v1452, %v1565
      %v1647 = vadd.f32 %v1453, %v1568
      %v1648 = vadd.f32 %v1454, %v1571
      %v1649 = vadd.f32 %v1455, %v1574
      %v1650 = vadd.f32 %v1456, %v1577
      %v1651 = vadd.f32 %v1457, %v1580
      %v1652 = vadd.f32 %v1458, %v1583
      %v1653 = vadd.f32 %v1459, %v1586
      %v1654 = vadd.f32 %v1460, %v1589
      %v1655 = vadd.f32 %v1461, %v1592
      %v1656 = vadd.f32 %v1462, %v1595
      %v1657 = vadd.f32 %v1463, %v1598
      %v1658 = vadd.f32 %v1464, %v1601
      %v1659 = vadd.f32 %v1465, %v1604
      %v1660 = vadd.f32 %v1466, %v1607
      %v1661 = vadd.f32 %v1467, %v1610
      %v1662 = vadd.f32 %v1468, %v1613
      %v1663 = vadd.f32 %v1469, %v1616
      %v1664 = vadd.f32 %v1470, %v1619
      %v1665 = vadd.f32 %v1471, %v1622
      %v1666 = vadd.f32 %v1472, %v1625
      %v1667 = vadd.f32 %v1473, %v1628
      %v1668 = vadd.f32 %v1474, %v1631
      %v1669 = vadd.f32 %v1475, %v1634
      %v1670 = vadd.f32 %v1476, %v1637
      %v1671 = vld [vmem:[%s1282 + $0x2] sm:$0xff]
      %v1672 = vld [vmem:[%s1282 + $0xa] sm:$0xff]
      %v1673 = vld [vmem:[%s1282 + $0x1a] sm:$0xff]
      %v1674 = vld [vmem:[%s1282 + $0x22] sm:$0xff]
      %v1675 = vld [vmem:[%s1282 + $0x32] sm:$0xff]
      %v1676 = vld [vmem:[%s1282 + $0x3a] sm:$0xff]
      %v1677 = vld [vmem:[%s1282 + $0x4a] sm:$0xff]
      %v1678 = vld [vmem:[%s1282 + $0x52] sm:$0xff]
      %v1679 = vld [vmem:[%s1282 + $0x62] sm:$0xff]
      %v1680 = vld [vmem:[%s1282 + $0x6a] sm:$0xff]
      %v1681 = vld [vmem:[%s1282 + $0x7a] sm:$0xff]
      %v1682 = vld [vmem:[%s1282 + $0x82] sm:$0xff]
      %v1683 = vld [vmem:[%s1282 + $0x92] sm:$0xff]
      %v1684 = vld [vmem:[%s1282 + $0x9a] sm:$0xff]
      %v1685 = vld [vmem:[%s1282 + $0xaa] sm:$0xff]
      %v1686 = vld [vmem:[%s1282 + $0xb2] sm:$0xff]
      %v1687 = vld [vmem:[%s1282 + $0xc2] sm:$0xff]
      %v1688 = vld [vmem:[%s1282 + $0xca] sm:$0xff]
      %v1689 = vld [vmem:[%s1282 + $0xda] sm:$0xff]
      %v1690 = vld [vmem:[%s1282 + $0xe2] sm:$0xff]
      %v1691 = vld [vmem:[%s1282 + $0xf2] sm:$0xff]
      %v1692 = vld [vmem:[%s1282 + $0xfa] sm:$0xff]
      %v1693 = vld [vmem:[%s1282 + $0x10a] sm:$0xff]
      %v1694 = vld [vmem:[%s1282 + $0x112] sm:$0xff]
      %v1695 = vld [vmem:[%s1282 + $0x122] sm:$0xff]
      %v1696 = vld [vmem:[%s1282 + $0x12a] sm:$0xff]
      %v1697 = vld [vmem:[%s1282 + $0x13a] sm:$0xff]
      %v1698 = vld [vmem:[%s1282 + $0x142] sm:$0xff]
      %v1699 = vld [vmem:[%s1282 + $0x152] sm:$0xff]
      %v1700 = vld [vmem:[%s1282 + $0x15a] sm:$0xff]
      %v1701 = vld [vmem:[%s1282 + $0x16a] sm:$0xff]
      %v1702 = vld [vmem:[%s1282 + $0x172] sm:$0xff]
      %s1703 = scalar_lea.vmem %s1, 1024
      %v1704 = vld [vmem:[%s1703] sm:$0xff]
      %v1705 = vld [vmem:[%s1703 + $0x8] sm:$0xff]
      %v1706 = vld [vmem:[%s1703 + $0x10] sm:$0xff]
      %v1707 = vld [vmem:[%s1703 + $0x18] sm:$0xff]
      %v1708 = vld [vmem:[%s1703 + $0x20] sm:$0xff]
      %v1709 = vld [vmem:[%s1703 + $0x28] sm:$0xff]
      %v1710 = vld [vmem:[%s1703 + $0x30] sm:$0xff]
      %v1711 = vld [vmem:[%s1703 + $0x38] sm:$0xff]
      %v1712 = vld [vmem:[%s1703 + $0x40] sm:$0xff]
      %v1713 = vld [vmem:[%s1703 + $0x48] sm:$0xff]
      %v1714 = vld [vmem:[%s1703 + $0x50] sm:$0xff]
      %v1715 = vld [vmem:[%s1703 + $0x58] sm:$0xff]
      %v1716 = vld [vmem:[%s1703 + $0x60] sm:$0xff]
      %v1717 = vld [vmem:[%s1703 + $0x68] sm:$0xff]
      %v1718 = vld [vmem:[%s1703 + $0x70] sm:$0xff]
      %v1719 = vld [vmem:[%s1703 + $0x78] sm:$0xff]
      %1720 = vmatpush.msra.mxu0 %v1719
      %1721 = vmatpush.msra.mxu0 %v1718
      %1722 = vmatpush.msra.mxu0 %v1717
      %1723 = vmatpush.msra.mxu0 %v1716
      %1724 = vmatpush.msra.mxu0 %v1715
      %1725 = vmatpush.msra.mxu0 %v1714
      %1726 = vmatpush.msra.mxu0 %v1713
      %1727 = vmatpush.msra.mxu0 %v1712
      %1728 = vmatpush.msra.mxu0 %v1711
      %1729 = vmatpush.msra.mxu0 %v1710
      %1730 = vmatpush.msra.mxu0 %v1709
      %1731 = vmatpush.msra.mxu0 %v1708
      %1732 = vmatpush.msra.mxu0 %v1707
      %1733 = vmatpush.msra.mxu0 %v1706
      %1734 = vmatpush.msra.mxu0 %v1705
      %1735 = vmatpush.msra.mxu0 %v1704
      %1736 = vmatmul.f32.gmra.mxu0 %v1671
      %v1737 = vpop.f32.mrf.mxu0
      %v1738 = vadd.f32 0.0, %v1737
      %1739 = vmatmul.f32.gmra.mxu0 %v1672
      %v1740 = vpop.f32.mrf.mxu0
      %v1741 = vadd.f32 0.0, %v1740
      %1742 = vmatmul.f32.gmra.mxu0 %v1673
      %v1743 = vpop.f32.mrf.mxu0
      %v1744 = vadd.f32 0.0, %v1743
      %1745 = vmatmul.f32.gmra.mxu0 %v1674
      %v1746 = vpop.f32.mrf.mxu0
      %v1747 = vadd.f32 0.0, %v1746
      %1748 = vmatmul.f32.gmra.mxu0 %v1675
      %v1749 = vpop.f32.mrf.mxu0
      %v1750 = vadd.f32 0.0, %v1749
      %1751 = vmatmul.f32.gmra.mxu0 %v1676
      %v1752 = vpop.f32.mrf.mxu0
      %v1753 = vadd.f32 0.0, %v1752
      %1754 = vmatmul.f32.gmra.mxu0 %v1677
      %v1755 = vpop.f32.mrf.mxu0
      %v1756 = vadd.f32 0.0, %v1755
      %1757 = vmatmul.f32.gmra.mxu0 %v1678
      %v1758 = vpop.f32.mrf.mxu0
      %v1759 = vadd.f32 0.0, %v1758
      %1760 = vmatmul.f32.gmra.mxu0 %v1679
      %v1761 = vpop.f32.mrf.mxu0
      %v1762 = vadd.f32 0.0, %v1761
      %1763 = vmatmul.f32.gmra.mxu0 %v1680
      %v1764 = vpop.f32.mrf.mxu0
      %v1765 = vadd.f32 0.0, %v1764
      %1766 = vmatmul.f32.gmra.mxu0 %v1681
      %v1767 = vpop.f32.mrf.mxu0
      %v1768 = vadd.f32 0.0, %v1767
      %1769 = vmatmul.f32.gmra.mxu0 %v1682
      %v1770 = vpop.f32.mrf.mxu0
      %v1771 = vadd.f32 0.0, %v1770
      %1772 = vmatmul.f32.gmra.mxu0 %v1683
      %v1773 = vpop.f32.mrf.mxu0
      %v1774 = vadd.f32 0.0, %v1773
      %1775 = vmatmul.f32.gmra.mxu0 %v1684
      %v1776 = vpop.f32.mrf.mxu0
      %v1777 = vadd.f32 0.0, %v1776
      %1778 = vmatmul.f32.gmra.mxu0 %v1685
      %v1779 = vpop.f32.mrf.mxu0
      %v1780 = vadd.f32 0.0, %v1779
      %1781 = vmatmul.f32.gmra.mxu0 %v1686
      %v1782 = vpop.f32.mrf.mxu0
      %v1783 = vadd.f32 0.0, %v1782
      %1784 = vmatmul.f32.gmra.mxu0 %v1687
      %v1785 = vpop.f32.mrf.mxu0
      %v1786 = vadd.f32 0.0, %v1785
      %1787 = vmatmul.f32.gmra.mxu0 %v1688
      %v1788 = vpop.f32.mrf.mxu0
      %v1789 = vadd.f32 0.0, %v1788
      %1790 = vmatmul.f32.gmra.mxu0 %v1689
      %v1791 = vpop.f32.mrf.mxu0
      %v1792 = vadd.f32 0.0, %v1791
      %1793 = vmatmul.f32.gmra.mxu0 %v1690
      %v1794 = vpop.f32.mrf.mxu0
      %v1795 = vadd.f32 0.0, %v1794
      %1796 = vmatmul.f32.gmra.mxu0 %v1691
      %v1797 = vpop.f32.mrf.mxu0
      %v1798 = vadd.f32 0.0, %v1797
      %1799 = vmatmul.f32.gmra.mxu0 %v1692
      %v1800 = vpop.f32.mrf.mxu0
      %v1801 = vadd.f32 0.0, %v1800
      %1802 = vmatmul.f32.gmra.mxu0 %v1693
      %v1803 = vpop.f32.mrf.mxu0
      %v1804 = vadd.f32 0.0, %v1803
      %1805 = vmatmul.f32.gmra.mxu0 %v1694
      %v1806 = vpop.f32.mrf.mxu0
      %v1807 = vadd.f32 0.0, %v1806
      %1808 = vmatmul.f32.gmra.mxu0 %v1695
      %v1809 = vpop.f32.mrf.mxu0
      %v1810 = vadd.f32 0.0, %v1809
      %1811 = vmatmul.f32.gmra.mxu0 %v1696
      %v1812 = vpop.f32.mrf.mxu0
      %v1813 = vadd.f32 0.0, %v1812
      %1814 = vmatmul.f32.gmra.mxu0 %v1697
      %v1815 = vpop.f32.mrf.mxu0
      %v1816 = vadd.f32 0.0, %v1815
      %1817 = vmatmul.f32.gmra.mxu0 %v1698
      %v1818 = vpop.f32.mrf.mxu0
      %v1819 = vadd.f32 0.0, %v1818
      %1820 = vmatmul.f32.gmra.mxu0 %v1699
      %v1821 = vpop.f32.mrf.mxu0
      %v1822 = vadd.f32 0.0, %v1821
      %1823 = vmatmul.f32.gmra.mxu0 %v1700
      %v1824 = vpop.f32.mrf.mxu0
      %v1825 = vadd.f32 0.0, %v1824
      %1826 = vmatmul.f32.gmra.mxu0 %v1701
      %v1827 = vpop.f32.mrf.mxu0
      %v1828 = vadd.f32 0.0, %v1827
      %1829 = vmatmul.f32.gmra.mxu0 %v1702
      %v1830 = vpop.f32.mrf.mxu0
      %v1831 = vadd.f32 0.0, %v1830
      %1832 = vdwg.mxu0
      %v1833 = vadd.f32 %v1639, %v1738
      %v1834 = vadd.f32 %v1640, %v1741
      %v1835 = vadd.f32 %v1641, %v1744
      %v1836 = vadd.f32 %v1642, %v1747
      %v1837 = vadd.f32 %v1643, %v1750
      %v1838 = vadd.f32 %v1644, %v1753
      %v1839 = vadd.f32 %v1645, %v1756
      %v1840 = vadd.f32 %v1646, %v1759
      %v1841 = vadd.f32 %v1647, %v1762
      %v1842 = vadd.f32 %v1648, %v1765
      %v1843 = vadd.f32 %v1649, %v1768
      %v1844 = vadd.f32 %v1650, %v1771
      %v1845 = vadd.f32 %v1651, %v1774
      %v1846 = vadd.f32 %v1652, %v1777
      %v1847 = vadd.f32 %v1653, %v1780
      %v1848 = vadd.f32 %v1654, %v1783
      %v1849 = vadd.f32 %v1655, %v1786
      %v1850 = vadd.f32 %v1656, %v1789
      %v1851 = vadd.f32 %v1657, %v1792
      %v1852 = vadd.f32 %v1658, %v1795
      %v1853 = vadd.f32 %v1659, %v1798
      %v1854 = vadd.f32 %v1660, %v1801
      %v1855 = vadd.f32 %v1661, %v1804
      %v1856 = vadd.f32 %v1662, %v1807
      %v1857 = vadd.f32 %v1663, %v1810
      %v1858 = vadd.f32 %v1664, %v1813
      %v1859 = vadd.f32 %v1665, %v1816
      %v1860 = vadd.f32 %v1666, %v1819
      %v1861 = vadd.f32 %v1667, %v1822
      %v1862 = vadd.f32 %v1668, %v1825
      %v1863 = vadd.f32 %v1669, %v1828
      %v1864 = vadd.f32 %v1670, %v1831
      %1865 = vst [vmem:[%s177] sm:$0xff] %v1833
      %1866 = vst [vmem:[%s177 + $0x8] sm:$0xff] %v1834
      %1867 = vst [vmem:[%s177 + $0x10] sm:$0xff] %v1835
      %1868 = vst [vmem:[%s177 + $0x18] sm:$0xff] %v1836
      %1869 = vst [vmem:[%s177 + $0x20] sm:$0xff] %v1837
      %1870 = vst [vmem:[%s177 + $0x28] sm:$0xff] %v1838
      %1871 = vst [vmem:[%s177 + $0x30] sm:$0xff] %v1839
      %1872 = vst [vmem:[%s177 + $0x38] sm:$0xff] %v1840
      %1873 = vst [vmem:[%s177 + $0x40] sm:$0xff] %v1841
      %1874 = vst [vmem:[%s177 + $0x48] sm:$0xff] %v1842
      %1875 = vst [vmem:[%s177 + $0x50] sm:$0xff] %v1843
      %1876 = vst [vmem:[%s177 + $0x58] sm:$0xff] %v1844
      %1877 = vst [vmem:[%s177 + $0x60] sm:$0xff] %v1845
      %1878 = vst [vmem:[%s177 + $0x68] sm:$0xff] %v1846
      %1879 = vst [vmem:[%s177 + $0x70] sm:$0xff] %v1847
      %1880 = vst [vmem:[%s177 + $0x78] sm:$0xff] %v1848
      %1881 = vst [vmem:[%s177 + $0x80] sm:$0xff] %v1849
      %1882 = vst [vmem:[%s177 + $0x88] sm:$0xff] %v1850
      %1883 = vst [vmem:[%s177 + $0x90] sm:$0xff] %v1851
      %1884 = vst [vmem:[%s177 + $0x98] sm:$0xff] %v1852
      %1885 = vst [vmem:[%s177 + $0xa0] sm:$0xff] %v1853
      %1886 = vst [vmem:[%s177 + $0xa8] sm:$0xff] %v1854
      %1887 = vst [vmem:[%s177 + $0xb0] sm:$0xff] %v1855
      %1888 = vst [vmem:[%s177 + $0xb8] sm:$0xff] %v1856
      %1889 = vst [vmem:[%s177 + $0xc0] sm:$0xff] %v1857
      %1890 = vst [vmem:[%s177 + $0xc8] sm:$0xff] %v1858
      %1891 = vst [vmem:[%s177 + $0xd0] sm:$0xff] %v1859
      %1892 = vst [vmem:[%s177 + $0xd8] sm:$0xff] %v1860
      %1893 = vst [vmem:[%s177 + $0xe0] sm:$0xff] %v1861
      %1894 = vst [vmem:[%s177 + $0xe8] sm:$0xff] %v1862
      %1895 = vst [vmem:[%s177 + $0xf0] sm:$0xff] %v1863
      %1896 = vst [vmem:[%s177 + $0xf8] sm:$0xff] %v1864
      %v1897 = vadd.f32 %v1833, %v1834
      %v1898 = vadd.f32 %v1897, %v1835
      %v1899 = vadd.f32 %v1898, %v1836
      %v1900 = vadd.f32 %v1899, %v1837
      %v1901 = vadd.f32 %v1900, %v1838
      %v1902 = vadd.f32 %v1901, %v1839
      %v1903 = vadd.f32 %v1902, %v1840
      %v1904 = vadd.f32 %v1903, %v1841
      %v1905 = vadd.f32 %v1904, %v1842
      %v1906 = vadd.f32 %v1905, %v1843
      %v1907 = vadd.f32 %v1906, %v1844
      %v1908 = vadd.f32 %v1907, %v1845
      %v1909 = vadd.f32 %v1908, %v1846
      %v1910 = vadd.f32 %v1909, %v1847
      %v1911 = vadd.f32 %v1910, %v1848
      %v1912 = vadd.f32 %v1911, %v1849
      %v1913 = vadd.f32 %v1912, %v1850
      %v1914 = vadd.f32 %v1913, %v1851
      %v1915 = vadd.f32 %v1914, %v1852
      %v1916 = vadd.f32 %v1915, %v1853
      %v1917 = vadd.f32 %v1916, %v1854
      %v1918 = vadd.f32 %v1917, %v1855
      %v1919 = vadd.f32 %v1918, %v1856
      %v1920 = vadd.f32 %v1919, %v1857
      %v1921 = vadd.f32 %v1920, %v1858
      %v1922 = vadd.f32 %v1921, %v1859
      %v1923 = vadd.f32 %v1922, %v1860
      %v1924 = vadd.f32 %v1923, %v1861
      %v1925 = vadd.f32 %v1924, %v1862
      %v1926 = vadd.f32 %v1925, %v1863
      %v1927 = vadd.f32 %v1926, %v1864
      %v1928 = vrot.slane %v1927, 4
      %v1929 = vadd.f32 %v1927, %v1928
      %v1930 = vrot.slane %v1929, 2
      %v1931 = vadd.f32 %v1929, %v1930
      %v1932 = vrot.slane %v1931, 1
      %v1933 = vadd.f32 %v1931, %v1932
      %1934 = vst [vmem:[%s181] sm:$0x1] %v1933
      %v1935 = vmul.f32 %v1833, %v1833
      %v1936 = vmul.f32 %v1834, %v1834
      %v1937 = vmul.f32 %v1835, %v1835
      %v1938 = vmul.f32 %v1836, %v1836
      %v1939 = vmul.f32 %v1837, %v1837
      %v1940 = vmul.f32 %v1838, %v1838
      %v1941 = vmul.f32 %v1839, %v1839
      %v1942 = vmul.f32 %v1840, %v1840
      %v1943 = vmul.f32 %v1841, %v1841
      %v1944 = vmul.f32 %v1842, %v1842
      %v1945 = vmul.f32 %v1843, %v1843
      %v1946 = vmul.f32 %v1844, %v1844
      %v1947 = vmul.f32 %v1845, %v1845
      %v1948 = vmul.f32 %v1846, %v1846
      %v1949 = vmul.f32 %v1847, %v1847
      %v1950 = vmul.f32 %v1848, %v1848
      %v1951 = vmul.f32 %v1849, %v1849
      %v1952 = vmul.f32 %v1850, %v1850
      %v1953 = vmul.f32 %v1851, %v1851
      %v1954 = vmul.f32 %v1852, %v1852
      %v1955 = vmul.f32 %v1853, %v1853
      %v1956 = vmul.f32 %v1854, %v1854
      %v1957 = vmul.f32 %v1855, %v1855
      %v1958 = vmul.f32 %v1856, %v1856
      %v1959 = vmul.f32 %v1857, %v1857
      %v1960 = vmul.f32 %v1858, %v1858
      %v1961 = vmul.f32 %v1859, %v1859
      %v1962 = vmul.f32 %v1860, %v1860
      %v1963 = vmul.f32 %v1861, %v1861
      %v1964 = vmul.f32 %v1862, %v1862
      %v1965 = vmul.f32 %v1863, %v1863
      %v1966 = vmul.f32 %v1864, %v1864
      %v1967 = vadd.f32 %v1935, %v1936
      %v1968 = vadd.f32 %v1967, %v1937
      %v1969 = vadd.f32 %v1968, %v1938
      %v1970 = vadd.f32 %v1969, %v1939
      %v1971 = vadd.f32 %v1970, %v1940
      %v1972 = vadd.f32 %v1971, %v1941
      %v1973 = vadd.f32 %v1972, %v1942
      %v1974 = vadd.f32 %v1973, %v1943
      %v1975 = vadd.f32 %v1974, %v1944
      %v1976 = vadd.f32 %v1975, %v1945
      %v1977 = vadd.f32 %v1976, %v1946
      %v1978 = vadd.f32 %v1977, %v1947
      %v1979 = vadd.f32 %v1978, %v1948
      %v1980 = vadd.f32 %v1979, %v1949
      %v1981 = vadd.f32 %v1980, %v1950
      %v1982 = vadd.f32 %v1981, %v1951
      %v1983 = vadd.f32 %v1982, %v1952
      %v1984 = vadd.f32 %v1983, %v1953
      %v1985 = vadd.f32 %v1984, %v1954
      %v1986 = vadd.f32 %v1985, %v1955
      %v1987 = vadd.f32 %v1986, %v1956
      %v1988 = vadd.f32 %v1987, %v1957
      %v1989 = vadd.f32 %v1988, %v1958
      %v1990 = vadd.f32 %v1989, %v1959
      %v1991 = vadd.f32 %v1990, %v1960
      %v1992 = vadd.f32 %v1991, %v1961
      %v1993 = vadd.f32 %v1992, %v1962
      %v1994 = vadd.f32 %v1993, %v1963
      %v1995 = vadd.f32 %v1994, %v1964
      %v1996 = vadd.f32 %v1995, %v1965
      %v1997 = vadd.f32 %v1996, %v1966
      %v1998 = vrot.slane %v1997, 4
      %v1999 = vadd.f32 %v1997, %v1998
      %v2000 = vrot.slane %v1999, 2
      %v2001 = vadd.f32 %v1999, %v2000
      %v2002 = vrot.slane %v2001, 1
      %v2003 = vadd.f32 %v2001, %v2002
      %2004 = vst [vmem:[%s181 + $0x1] sm:$0x1] %v2003
      %p2005 = scmp.lt.s32.totalorder %s15, 1
      %s2006 = scalar_select %p2005, %s15, 1
      %s2007 = smul.addr %s2006, 32
      %s2008 = smul.addr %s2007, 8
      %s2009 = scalar_lea.vmem %s2, %s2008
      %p2010 = scmp.lt.s32.totalorder %s15, 1
      %s2011 = scalar_select %p2010, %s15, 1
      %s2012 = smul.addr %s2011, 2
      %s2013 = scalar_lea.vmem %s3, %s2012
      // Predicated region
      $region29: #{residual_block_pallas.3} parent=27 // pred_check
        %p2014 = pneg %p80
      $region30: #{residual_block_pallas.3} parent=27 // pred_check_branch
        %2016 = sbr.rel (%p2014) target = $region32
      $region31: #{residual_block_pallas.3} parent=27 // pred_region
        _
      $region32: #{residual_block_pallas.3} parent=27 // pred_fallthru
        _
      // Predicated region
      $region33: #{residual_block_pallas.3} parent=27 // pred_check
        %p2017 = pneg %p106
      $region34: #{residual_block_pallas.3} parent=27 // pred_check_branch
        %2019 = sbr.rel (%p2017) target = $region36
      $region35: #{residual_block_pallas.3} parent=27 // pred_region
        _
      $region36: #{residual_block_pallas.3} parent=27 // pred_fallthru
        _
    $region28: #{residual_block_pallas.3} parent=5 // pred_fallthru
      _
    %p2020 = scmp.le.s32.totalorder 2, %s10
    // Predicated region
    $region37: #{residual_block_pallas.3} parent=5 // pred_check
      %p2021 = pneg %p2020
    $region38: #{residual_block_pallas.3} parent=5 // pred_check_branch
      %2023 = sbr.rel (%p2021) target = $region40
    $region39: #{residual_block_pallas.3} parent=5 // pred_region
      %s2024 = ssub.s32 %s10, 2
      // Predicated region
      $region41: #{residual_block_pallas.3} parent=39 // pred_check
        %p2025 = pneg %p86
      $region42: #{residual_block_pallas.3} parent=39 // pred_check_branch
        %2027 = sbr.rel (%p2025) target = $region44
      $region43: #{residual_block_pallas.3} parent=39 // pred_region
        %p2028 = scmp.lt.s32.totalorder %s16, 1
        %s2029 = scalar_select %p2028, %s16, 1
        %s2030 = smul.addr %s2029, 32
        %s2031 = smul.addr %s2030, 8
        %s2032 = scalar_lea.vmem %s2, %s2031
      $region44: #{residual_block_pallas.3} parent=39 // pred_fallthru
        _
      // Predicated region
      $region45: #{residual_block_pallas.3} parent=39 // pred_check
        %p2033 = pneg %p112
      $region46: #{residual_block_pallas.3} parent=39 // pred_check_branch
        %2035 = sbr.rel (%p2033) target = $region48
      $region47: #{residual_block_pallas.3} parent=39 // pred_region
        %p2036 = scmp.lt.s32.totalorder %s16, 1
        %s2037 = scalar_select %p2036, %s16, 1
        %s2038 = smul.addr %s2037, 2
        %s2039 = scalar_lea.vmem %s3, %s2038
      $region48: #{residual_block_pallas.3} parent=39 // pred_fallthru
        _
    $region40: #{residual_block_pallas.3} parent=5 // pred_fallthru
      _
  $region6: #{residual_block_pallas.3} parent=0 // loop_footer
    %s14 = sadd.s32 1, %s10
  $region7: #{residual_block_pallas.3} parent=0 // loop_footer_branch
    %9 = sbr.rel target = $region3
  $region8: #{residual_block_pallas.3} parent=0 // loop_exit
    _

// kernel: residual_block_pallas.4
$region0: #{residual_block_pallas.4}
  #allocation0 [shape = 'u32[]', space=smem, size = 0x4, offset = 0x4, fixed_abs, tag = 'smem constant byte address 0x4 - core index']
  #allocation1 [shape = 'u32[72,128]{1,0:T(1,128)}', space=vmem, size = 0x9000, scoped, tag = 'internal scratch']
  #allocation2 [shape = 'f32[18,18,128]{2,1,0:T(8,128)}', space=vmem, size = 0x36000, scoped, tag = 'scratch operand']
  %s0 = inlined_call_operand.vmem [shape: f32[2,16,16,128], index: 0, kind: input, shape index: {}]
  %s1 = inlined_call_operand.vmem [shape: f32[1,128], index: 1, kind: input, shape index: {}]
  %s2 = inlined_call_operand.vmem [shape: f32[1,128], index: 2, kind: input, shape index: {}]
  %s3 = inlined_call_operand.vmem [shape: f32[9,128,128], index: 3, kind: input, shape index: {}]
  %s4 = inlined_call_operand.vmem [shape: f32[2,16,16,128], index: 4, kind: output, shape index: {0}]
  %s5 = inlined_call_operand.vmem [shape: f32[2,2,128], index: 5, kind: output, shape index: {1}]
  %6 = xla_tuple %s4, %s5
  %s7 = sld [smem:[#allocation0]]
  $region57: #{residual_block_pallas.4} parent=0
    _
  %s9 = ssub.s32 1, %s7
  %s10 = scalar_select 0, %s9, %s7
  loop: start=0, step=1, limit=4
  $region2: #{residual_block_pallas.4} parent=0 // loop_pre_header
    _
  $region3: #{residual_block_pallas.4} parent=0 // loop_header
    %s12 = sphi 0, %s16
    %p13 = scmp.ge.s32.totalorder %s12, 4
    %s22 = sphi 0, %s24
    %s25 = sphi 0, %s22
    %s26 = sphi 0, %s25
    %s42 = sphi 0, %s26
    %s46 = sphi 0, %s46
    %s48 = sphi 0, %s46
    %s49 = sphi 0, %s48
    %s63 = sphi 0, %s49
    %s67 = sphi 0, %s67
    %s69 = sphi 0, %s67
    %s70 = sphi 0, %s69
    %s84 = sphi 0, %s70
    %s88 = sphi 0, %s88
    %s90 = sphi 0, %s88
    %s91 = sphi 0, %s90
    %s105 = sphi 0, %s91
    %s111 = sphi 0, %s113
    %s114 = sphi 0, %s111
    %s115 = sphi 0, %s114
    %s131 = sphi 0, %s115
    %s137 = sphi 0, %s139
    %s140 = sphi 0, %s137
    %s141 = sphi 0, %s140
    %s157 = sphi 0, %s141
  $region4: #{residual_block_pallas.4} parent=0 // loop_header_branch
    %15 = sbr.rel (%p13) target = $region8
  $region5: #{residual_block_pallas.4} parent=0 // loop_body
    %s17 = ssub.s32 %s12, 1
    %s18 = ssub.s32 %s12, 2
    %s19 = sadd.s32 %s12, 1
    %s20 = ssub.s32 %s12, %s19
    %p21 = scmp.eq.s32.totalorder %s20, 0
    %s23 = sadd.s32 %s22, 1
    %s24 = scalar_select %p21, %s22, %s23
    %p27 = pneg %p21
    %p28 = scmp.eq.s32.totalorder %s12, 1
    %p29 = por %p27, %p28
    %p30 = scmp.ne.s32.totalorder %s22, %s25
    %p31 = scmp.eq.s32.totalorder %s12, 0
    %p32 = por %p30, %p31
    %p33 = scmp.ne.s32.totalorder %s22, %s25
    %p34 = scmp.eq.s32.totalorder %s17, 1
    %p35 = por %p33, %p34
    %p36 = scmp.ne.s32.totalorder %s25, %s26
    %p37 = scmp.eq.s32.totalorder %s17, 0
    %p38 = por %p36, %p37
    %p39 = scmp.ne.s32.totalorder %s25, %s26
    %p40 = scmp.eq.s32.totalorder %s18, 1
    %p41 = por %p39, %p40
    %p43 = scmp.ne.s32.totalorder %s26, %s42
    %p44 = scmp.eq.s32.totalorder %s18, 0
    %p45 = por %p43, %p44
    %s47 = sadd.s32 %s46, 1
    %p50 = scmp.eq.s32.totalorder %s12, 1
    %p51 = scmp.ne.s32.totalorder %s46, %s48
    %p52 = scmp.eq.s32.totalorder %s12, 0
    %p53 = por %p51, %p52
    %p54 = scmp.ne.s32.totalorder %s46, %s48
    %p55 = scmp.eq.s32.totalorder %s17, 1
    %p56 = por %p54, %p55
    %p57 = scmp.ne.s32.totalorder %s48, %s49
    %p58 = scmp.eq.s32.totalorder %s17, 0
    %p59 = por %p57, %p58
    %p60 = scmp.ne.s32.totalorder %s48, %s49
    %p61 = scmp.eq.s32.totalorder %s18, 1
    %p62 = por %p60, %p61
    %p64 = scmp.ne.s32.totalorder %s49, %s63
    %p65 = scmp.eq.s32.totalorder %s18, 0
    %p66 = por %p64, %p65
    %s68 = sadd.s32 %s67, 1
    %p71 = scmp.eq.s32.totalorder %s12, 1
    %p72 = scmp.ne.s32.totalorder %s67, %s69
    %p73 = scmp.eq.s32.totalorder %s12, 0
    %p74 = por %p72, %p73
    %p75 = scmp.ne.s32.totalorder %s67, %s69
    %p76 = scmp.eq.s32.totalorder %s17, 1
    %p77 = por %p75, %p76
    %p78 = scmp.ne.s32.totalorder %s69, %s70
    %p79 = scmp.eq.s32.totalorder %s17, 0
    %p80 = por %p78, %p79
    %p81 = scmp.ne.s32.totalorder %s69, %s70
    %p82 = scmp.eq.s32.totalorder %s18, 1
    %p83 = por %p81, %p82
    %p85 = scmp.ne.s32.totalorder %s70, %s84
    %p86 = scmp.eq.s32.totalorder %s18, 0
    %p87 = por %p85, %p86
    %s89 = sadd.s32 %s88, 1
    %p92 = scmp.eq.s32.totalorder %s12, 1
    %p93 = scmp.ne.s32.totalorder %s88, %s90
    %p94 = scmp.eq.s32.totalorder %s12, 0
    %p95 = por %p93, %p94
    %p96 = scmp.ne.s32.totalorder %s88, %s90
    %p97 = scmp.eq.s32.totalorder %s17, 1
    %p98 = por %p96, %p97
    %p99 = scmp.ne.s32.totalorder %s90, %s91
    %p100 = scmp.eq.s32.totalorder %s17, 0
    %p101 = por %p99, %p100
    %p102 = scmp.ne.s32.totalorder %s90, %s91
    %p103 = scmp.eq.s32.totalorder %s18, 1
    %p104 = por %p102, %p103
    %p106 = scmp.ne.s32.totalorder %s91, %s105
    %p107 = scmp.eq.s32.totalorder %s18, 0
    %p108 = por %p106, %p107
    %s109 = ssub.s32 %s12, %s19
    %p110 = scmp.eq.s32.totalorder %s109, 0
    %s112 = sadd.s32 %s111, 1
    %s113 = scalar_select %p110, %s111, %s112
    %p116 = pneg %p110
    %p117 = scmp.eq.s32.totalorder %s12, 1
    %p118 = por %p116, %p117
    %p119 = scmp.ne.s32.totalorder %s111, %s114
    %p120 = scmp.eq.s32.totalorder %s12, 0
    %p121 = por %p119, %p120
    %p122 = scmp.ne.s32.totalorder %s111, %s114
    %p123 = scmp.eq.s32.totalorder %s17, 1
    %p124 = por %p122, %p123
    %p125 = scmp.ne.s32.totalorder %s114, %s115
    %p126 = scmp.eq.s32.totalorder %s17, 0
    %p127 = por %p125, %p126
    %p128 = scmp.ne.s32.totalorder %s114, %s115
    %p129 = scmp.eq.s32.totalorder %s18, 1
    %p130 = por %p128, %p129
    %p132 = scmp.ne.s32.totalorder %s115, %s131
    %p133 = scmp.eq.s32.totalorder %s18, 0
    %p134 = por %p132, %p133
    %s135 = ssub.s32 %s12, %s19
    %p136 = scmp.eq.s32.totalorder %s135, 0
    %s138 = sadd.s32 %s137, 1
    %s139 = scalar_select %p136, %s137, %s138
    %p142 = pneg %p136
    %p143 = scmp.eq.s32.totalorder %s12, 1
    %p144 = por %p142, %p143
    %p145 = scmp.ne.s32.totalorder %s137, %s140
    %p146 = scmp.eq.s32.totalorder %s12, 0
    %p147 = por %p145, %p146
    %p148 = scmp.ne.s32.totalorder %s137, %s140
    %p149 = scmp.eq.s32.totalorder %s17, 1
    %p150 = por %p148, %p149
    %p151 = scmp.ne.s32.totalorder %s140, %s141
    %p152 = scmp.eq.s32.totalorder %s17, 0
    %p153 = por %p151, %p152
    %p154 = scmp.ne.s32.totalorder %s140, %s141
    %p155 = scmp.eq.s32.totalorder %s18, 1
    %p156 = por %p154, %p155
    %p158 = scmp.ne.s32.totalorder %s141, %s157
    %p159 = scmp.eq.s32.totalorder %s18, 0
    %p160 = por %p158, %p159
    %p161 = scmp.le.s32.totalorder 1, %s12
    %p162 = scmp.lt.s32.totalorder %s12, 3
    %p163 = pnand %p161, %p162
    %p164 = pneg %p163
    // Predicated region
    $region9: #{residual_block_pallas.4} parent=5 // pred_check
      _
    $region10: #{residual_block_pallas.4} parent=5 // pred_check_branch
      %166 = sbr.rel (%p163) target = $region12
    $region11: #{residual_block_pallas.4} parent=5 // pred_region
      %s167 = ssub.s32 %s12, 1
      // Predicated region
      $region13: #{residual_block_pallas.4} parent=11 // pred_check
        %p168 = pneg %p59
      $region14: #{residual_block_pallas.4} parent=11 // pred_check_branch
        %170 = sbr.rel (%p168) target = $region16
      $region15: #{residual_block_pallas.4} parent=11 // pred_region
        _
      $region16: #{residual_block_pallas.4} parent=11 // pred_fallthru
        _
      // Predicated region
      $region17: #{residual_block_pallas.4} parent=11 // pred_check
        %p171 = pneg %p80
      $region18: #{residual_block_pallas.4} parent=11 // pred_check_branch
        %173 = sbr.rel (%p171) target = $region20
      $region19: #{residual_block_pallas.4} parent=11 // pred_region
        _
      $region20: #{residual_block_pallas.4} parent=11 // pred_fallthru
        _
      // Predicated region
      $region21: #{residual_block_pallas.4} parent=11 // pred_check
        %p174 = pneg %p101
      $region22: #{residual_block_pallas.4} parent=11 // pred_check_branch
        %176 = sbr.rel (%p174) target = $region24
      $region23: #{residual_block_pallas.4} parent=11 // pred_region
        _
      $region24: #{residual_block_pallas.4} parent=11 // pred_fallthru
        _
    $region12: #{residual_block_pallas.4} parent=5 // pred_fallthru
      _
    %p177 = scmp.lt.s32.totalorder %s12, 2
    // Predicated region
    $region25: #{residual_block_pallas.4} parent=5 // pred_check
      %p178 = pneg %p177
    $region26: #{residual_block_pallas.4} parent=5 // pred_check_branch
      %180 = sbr.rel (%p178) target = $region28
    $region27: #{residual_block_pallas.4} parent=5 // pred_region
      // Predicated region
      $region29: #{residual_block_pallas.4} parent=27 // pred_check
        %p181 = pneg %p32
      $region30: #{residual_block_pallas.4} parent=27 // pred_check_branch
        %183 = sbr.rel (%p181) target = $region32
      $region31: #{residual_block_pallas.4} parent=27 // pred_region
        %p184 = scmp.lt.s32.totalorder %s12, 1
        %s185 = scalar_select %p184, %s12, 1
        %s186 = smul.addr %s185, 32
        %s187 = smul.addr %s186, 8
        %s188 = scalar_lea.vmem %s0, %s187
      $region32: #{residual_block_pallas.4} parent=27 // pred_fallthru
        _
    $region28: #{residual_block_pallas.4} parent=5 // pred_fallthru
      _
    %p189 = scmp.le.s32.totalorder 1, %s12
    %p190 = scmp.lt.s32.totalorder %s12, 3
    %p191 = pnand %p189, %p190
    %p192 = pneg %p191
    // Predicated region
    $region33: #{residual_block_pallas.4} parent=5 // pred_check
      _
    $region34: #{residual_block_pallas.4} parent=5 // pred_check_branch
      %194 = sbr.rel (%p191) target = $region36
    $region35: #{residual_block_pallas.4} parent=5 // pred_region
      %s195 = ssub.s32 %s12, 1
      %p196 = scmp.lt.s32.totalorder %s17, 1
      %s197 = scalar_select %p196, %s17, 1
      %s198 = smul.addr %s197, 32
      %s199 = smul.addr %s198, 8
      %s200 = scalar_lea.vmem %s0, %s199
      %p201 = pneg %p38
      %p202 = pneg %p35
      %p203 = pneg %p59
      %p204 = pneg %p56
      %p205 = pneg %p80
      %p206 = pneg %p77
      %p207 = pneg %p101
      %p208 = pneg %p98
      %p209 = pneg %p127
      %p210 = pneg %p124
      %p211 = scmp.lt.s32.totalorder %s17, 1
      %s212 = scalar_select %p211, %s17, 1
      %s213 = smul.addr %s212, 32
      %s214 = smul.addr %s213, 8
      %s215 = scalar_lea.vmem %s4, %s214
      %p216 = pneg %p153
      %p217 = pneg %p150
      %p218 = scmp.lt.s32.totalorder %s17, 1
      %s219 = scalar_select %p218, %s17, 1
      %s220 = smul.addr %s219, 2
      %s221 = scalar_lea.vmem %s5, %s220
      %p222 = scmp.lt.s32.totalorder %s17, 1
      %s223 = scalar_select %p222, %s17, 1
      %s224 = smul.addr %s223, 32
      %s225 = smul.addr %s224, 8
      %s226 = scalar_lea.vmem %s0, %s225
      %p227 = scmp.lt.s32.totalorder %s17, 1
      %s228 = scalar_select %p227, %s17, 1
      %s229 = smul.addr %s228, 32
      %s230 = smul.addr %s229, 8
      %s231 = scalar_lea.vmem %s4, %s230
      %p232 = scmp.lt.s32.totalorder %s17, 1
      %s233 = scalar_select %p232, %s17, 1
      %s234 = smul.addr %s233, 2
      %s235 = scalar_lea.vmem %s5, %s234
      %v236 = vld [vmem:[%s226] sm:$0xff]
      %v237 = vld [vmem:[%s226 + $0x8] sm:$0xff]
      %v238 = vld [vmem:[%s226 + $0x10] sm:$0xff]
      %v239 = vld [vmem:[%s226 + $0x18] sm:$0xff]
      %v240 = vld [vmem:[%s226 + $0x20] sm:$0xff]
      %v241 = vld [vmem:[%s226 + $0x28] sm:$0xff]
      %v242 = vld [vmem:[%s226 + $0x30] sm:$0xff]
      %v243 = vld [vmem:[%s226 + $0x38] sm:$0xff]
      %v244 = vld [vmem:[%s226 + $0x40] sm:$0xff]
      %v245 = vld [vmem:[%s226 + $0x48] sm:$0xff]
      %v246 = vld [vmem:[%s226 + $0x50] sm:$0xff]
      %v247 = vld [vmem:[%s226 + $0x58] sm:$0xff]
      %v248 = vld [vmem:[%s226 + $0x60] sm:$0xff]
      %v249 = vld [vmem:[%s226 + $0x68] sm:$0xff]
      %v250 = vld [vmem:[%s226 + $0x70] sm:$0xff]
      %v251 = vld [vmem:[%s226 + $0x78] sm:$0xff]
      %v252 = vld [vmem:[%s226 + $0x80] sm:$0xff]
      %v253 = vld [vmem:[%s226 + $0x88] sm:$0xff]
      %v254 = vld [vmem:[%s226 + $0x90] sm:$0xff]
      %v255 = vld [vmem:[%s226 + $0x98] sm:$0xff]
      %v256 = vld [vmem:[%s226 + $0xa0] sm:$0xff]
      %v257 = vld [vmem:[%s226 + $0xa8] sm:$0xff]
      %v258 = vld [vmem:[%s226 + $0xb0] sm:$0xff]
      %v259 = vld [vmem:[%s226 + $0xb8] sm:$0xff]
      %v260 = vld [vmem:[%s226 + $0xc0] sm:$0xff]
      %v261 = vld [vmem:[%s226 + $0xc8] sm:$0xff]
      %v262 = vld [vmem:[%s226 + $0xd0] sm:$0xff]
      %v263 = vld [vmem:[%s226 + $0xd8] sm:$0xff]
      %v264 = vld [vmem:[%s226 + $0xe0] sm:$0xff]
      %v265 = vld [vmem:[%s226 + $0xe8] sm:$0xff]
      %v266 = vld [vmem:[%s226 + $0xf0] sm:$0xff]
      %v267 = vld [vmem:[%s226 + $0xf8] sm:$0xff]
      %v268 = vld [vmem:[%s1] sm:$0x1]
      %v270 = vperm.slane %v268, 0
      %v272 = vmul.f32 %v236, %v270
      %v273 = vmul.f32 %v237, %v270
      %v274 = vmul.f32 %v238, %v270
      %v275 = vmul.f32 %v239, %v270
      %v276 = vmul.f32 %v240, %v270
      %v277 = vmul.f32 %v241, %v270
      %v278 = vmul.f32 %v242, %v270
      %v279 = vmul.f32 %v243, %v270
      %v280 = vmul.f32 %v244, %v270
      %v281 = vmul.f32 %v245, %v270
      %v282 = vmul.f32 %v246, %v270
      %v283 = vmul.f32 %v247, %v270
      %v284 = vmul.f32 %v248, %v270
      %v285 = vmul.f32 %v249, %v270
      %v286 = vmul.f32 %v250, %v270
      %v287 = vmul.f32 %v251, %v270
      %v288 = vmul.f32 %v252, %v270
      %v289 = vmul.f32 %v253, %v270
      %v290 = vmul.f32 %v254, %v270
      %v291 = vmul.f32 %v255, %v270
      %v292 = vmul.f32 %v256, %v270
      %v293 = vmul.f32 %v257, %v270
      %v294 = vmul.f32 %v258, %v270
      %v295 = vmul.f32 %v259, %v270
      %v296 = vmul.f32 %v260, %v270
      %v297 = vmul.f32 %v261, %v270
      %v298 = vmul.f32 %v262, %v270
      %v299 = vmul.f32 %v263, %v270
      %v300 = vmul.f32 %v264, %v270
      %v301 = vmul.f32 %v265, %v270
      %v302 = vmul.f32 %v266, %v270
      %v303 = vmul.f32 %v267, %v270
      %v304 = vld [vmem:[%s2] sm:$0x1]
      %v306 = vperm.slane %v304, 0
      %v308 = vadd.f32 %v272, %v306
      %v309 = vadd.f32 %v273, %v306
      %v310 = vadd.f32 %v274, %v306
      %v311 = vadd.f32 %v275, %v306
      %v312 = vadd.f32 %v276, %v306
      %v313 = vadd.f32 %v277, %v306
      %v314 = vadd.f32 %v278, %v306
      %v315 = vadd.f32 %v279, %v306
      %v316 = vadd.f32 %v280, %v306
      %v317 = vadd.f32 %v281, %v306
      %v318 = vadd.f32 %v282, %v306
      %v319 = vadd.f32 %v283, %v306
      %v320 = vadd.f32 %v284, %v306
      %v321 = vadd.f32 %v285, %v306
      %v322 = vadd.f32 %v286, %v306
      %v323 = vadd.f32 %v287, %v306
      %v324 = vadd.f32 %v288, %v306
      %v325 = vadd.f32 %v289, %v306
      %v326 = vadd.f32 %v290, %v306
      %v327 = vadd.f32 %v291, %v306
      %v328 = vadd.f32 %v292, %v306
      %v329 = vadd.f32 %v293, %v306
      %v330 = vadd.f32 %v294, %v306
      %v331 = vadd.f32 %v295, %v306
      %v332 = vadd.f32 %v296, %v306
      %v333 = vadd.f32 %v297, %v306
      %v334 = vadd.f32 %v298, %v306
      %v335 = vadd.f32 %v299, %v306
      %v336 = vadd.f32 %v300, %v306
      %v337 = vadd.f32 %v301, %v306
      %v338 = vadd.f32 %v302, %v306
      %v339 = vadd.f32 %v303, %v306
      %v340 = vmax.f32 %v308, 0.0
      %v341 = vmax.f32 %v309, 0.0
      %v342 = vmax.f32 %v310, 0.0
      %v343 = vmax.f32 %v311, 0.0
      %v344 = vmax.f32 %v312, 0.0
      %v345 = vmax.f32 %v313, 0.0
      %v346 = vmax.f32 %v314, 0.0
      %v347 = vmax.f32 %v315, 0.0
      %v348 = vmax.f32 %v316, 0.0
      %v349 = vmax.f32 %v317, 0.0
      %v350 = vmax.f32 %v318, 0.0
      %v351 = vmax.f32 %v319, 0.0
      %v352 = vmax.f32 %v320, 0.0
      %v353 = vmax.f32 %v321, 0.0
      %v354 = vmax.f32 %v322, 0.0
      %v355 = vmax.f32 %v323, 0.0
      %v356 = vmax.f32 %v324, 0.0
      %v357 = vmax.f32 %v325, 0.0
      %v358 = vmax.f32 %v326, 0.0
      %v359 = vmax.f32 %v327, 0.0
      %v360 = vmax.f32 %v328, 0.0
      %v361 = vmax.f32 %v329, 0.0
      %v362 = vmax.f32 %v330, 0.0
      %v363 = vmax.f32 %v331, 0.0
      %v364 = vmax.f32 %v332, 0.0
      %v365 = vmax.f32 %v333, 0.0
      %v366 = vmax.f32 %v334, 0.0
      %v367 = vmax.f32 %v335, 0.0
      %v368 = vmax.f32 %v336, 0.0
      %v369 = vmax.f32 %v337, 0.0
      %v370 = vmax.f32 %v338, 0.0
      %v371 = vmax.f32 %v339, 0.0
      %372 = vst [vmem:[#allocation2] sm:$0xff] 0.0
      %373 = vst [vmem:[#allocation2 + $0x8] sm:$0xff] 0.0
      %374 = vst [vmem:[#allocation2 + $0x10] sm:$0x3] 0.0
      %s375 = scalar_lea.vmem [#allocation2], 408
      %376 = vst [vmem:[%s375] sm:$0xff] 0.0
      %377 = vst [vmem:[%s375 + $0x8] sm:$0xff] 0.0
      %378 = vst [vmem:[%s375 + $0x10] sm:$0x3] 0.0
      %s379 = scalar_lea.vmem [#allocation2], 24
      %380 = vst [vmem:[%s379] sm:$0x1] 0.0
      %381 = vst [vmem:[%s379 + $0x18] sm:$0x1] 0.0
      %382 = vst [vmem:[%s379 + $0x30] sm:$0x1] 0.0
      %383 = vst [vmem:[%s379 + $0x48] sm:$0x1] 0.0
      %384 = vst [vmem:[%s379 + $0x60] sm:$0x1] 0.0
      %385 = vst [vmem:[%s379 + $0x78] sm:$0x1] 0.0
      %386 = vst [vmem:[%s379 + $0x90] sm:$0x1] 0.0
      %387 = vst [vmem:[%s379 + $0xa8] sm:$0x1] 0.0
      %388 = vst [vmem:[%s379 + $0xc0] sm:$0x1] 0.0
      %389 = vst [vmem:[%s379 + $0xd8] sm:$0x1] 0.0
      %390 = vst [vmem:[%s379 + $0xf0] sm:$0x1] 0.0
      %391 = vst [vmem:[%s379 + $0x108] sm:$0x1] 0.0
      %392 = vst [vmem:[%s379 + $0x120] sm:$0x1] 0.0
      %393 = vst [vmem:[%s379 + $0x138] sm:$0x1] 0.0
      %394 = vst [vmem:[%s379 + $0x150] sm:$0x1] 0.0
      %395 = vst [vmem:[%s379 + $0x168] sm:$0x1] 0.0
      %396 = vst [vmem:[%s379 + $0x11] sm:$0x1] 0.0
      %397 = vst [vmem:[%s379 + $0x29] sm:$0x1] 0.0
      %398 = vst [vmem:[%s379 + $0x41] sm:$0x1] 0.0
      %399 = vst [vmem:[%s379 + $0x59] sm:$0x1] 0.0
      %400 = vst [vmem:[%s379 + $0x71] sm:$0x1] 0.0
      %401 = vst [vmem:[%s379 + $0x89] sm:$0x1] 0.0
      %402 = vst [vmem:[%s379 + $0xa1] sm:$0x1] 0.0
      %403 = vst [vmem:[%s379 + $0xb9] sm:$0x1] 0.0
      %404 = vst [vmem:[%s379 + $0xd1] sm:$0x1] 0.0
      %405 = vst [vmem:[%s379 + $0xe9] sm:$0x1] 0.0
      %406 = vst [vmem:[%s379 + $0x101] sm:$0x1] 0.0
      %407 = vst [vmem:[%s379 + $0x119] sm:$0x1] 0.0
      %408 = vst [vmem:[%s379 + $0x131] sm:$0x1] 0.0
      %409 = vst [vmem:[%s379 + $0x149] sm:$0x1] 0.0
      %410 = vst [vmem:[%s379 + $0x161] sm:$0x1] 0.0
      %411 = vst [vmem:[%s379 + $0x179] sm:$0x1] 0.0
      %412 = vst [vmem:[%s379 + $0x1] sm:$0xff] %v340
      %413 = vst [vmem:[%s379 + $0x9] sm:$0xff] %v341
      %414 = vst [vmem:[%s379 + $0x19] sm:$0xff] %v342
      %415 = vst [vmem:[%s379 + $0x21] sm:$0xff] %v343
      %416 = vst [vmem:[%s379 + $0x31] sm:$0xff] %v344
      %417 = vst [vmem:[%s379 + $0x39] sm:$0xff] %v345
      %418 = vst [vmem:[%s379 + $0x49] sm:$0xff] %v346
      %419 = vst [vmem:[%s379 + $0x51] sm:$0xff] %v347
      %420 = vst [vmem:[%s379 + $0x61] sm:$0xff] %v348
      %421 = vst [vmem:[%s379 + $0x69] sm:$0xff] %v349
      %422 = vst [vmem:[%s379 + $0x79] sm:$0xff] %v350
      %423 = vst [vmem:[%s379 + $0x81] sm:$0xff] %v351
      %424 = vst [vmem:[%s379 + $0x91] sm:$0xff] %v352
      %425 = vst [vmem:[%s379 + $0x99] sm:$0xff] %v353
      %426 = vst [vmem:[%s379 + $0xa9] sm:$0xff] %v354
      %427 = vst [vmem:[%s379 + $0xb1] sm:$0xff] %v355
      %428 = vst [vmem:[%s379 + $0xc1] sm:$0xff] %v356
      %429 = vst [vmem:[%s379 + $0xc9] sm:$0xff] %v357
      %430 = vst [vmem:[%s379 + $0xd9] sm:$0xff] %v358
      %431 = vst [vmem:[%s379 + $0xe1] sm:$0xff] %v359
      %432 = vst [vmem:[%s379 + $0xf1] sm:$0xff] %v360
      %433 = vst [vmem:[%s379 + $0xf9] sm:$0xff] %v361
      %434 = vst [vmem:[%s379 + $0x109] sm:$0xff] %v362
      %435 = vst [vmem:[%s379 + $0x111] sm:$0xff] %v363
      %436 = vst [vmem:[%s379 + $0x121] sm:$0xff] %v364
      %437 = vst [vmem:[%s379 + $0x129] sm:$0xff] %v365
      %438 = vst [vmem:[%s379 + $0x139] sm:$0xff] %v366
      %439 = vst [vmem:[%s379 + $0x141] sm:$0xff] %v367
      %440 = vst [vmem:[%s379 + $0x151] sm:$0xff] %v368
      %441 = vst [vmem:[%s379 + $0x159] sm:$0xff] %v369
      %442 = vst [vmem:[%s379 + $0x169] sm:$0xff] %v370
      %443 = vst [vmem:[%s379 + $0x171] sm:$0xff] %v371
      %v444 = vld [vmem:[#allocation2] sm:$0xff]
      %v445 = vld [vmem:[#allocation2 + $0x8] sm:$0xff]
      %v446 = vld [vmem:[#allocation2 + $0x18] sm:$0xff]
      %v447 = vld [vmem:[#allocation2 + $0x20] sm:$0xff]
      %v448 = vld [vmem:[#allocation2 + $0x30] sm:$0xff]
      %v449 = vld [vmem:[#allocation2 + $0x38] sm:$0xff]
      %v450 = vld [vmem:[#allocation2 + $0x48] sm:$0xff]
      %v451 = vld [vmem:[#allocation2 + $0x50] sm:$0xff]
      %v452 = vld [vmem:[#allocation2 + $0x60] sm:$0xff]
      %v453 = vld [vmem:[#allocation2 + $0x68] sm:$0xff]
      %v454 = vld [vmem:[#allocation2 + $0x78] sm:$0xff]
      %v455 = vld [vmem:[#allocation2 + $0x80] sm:$0xff]
      %v456 = vld [vmem:[#allocation2 + $0x90] sm:$0xff]
      %v457 = vld [vmem:[#allocation2 + $0x98] sm:$0xff]
      %v458 = vld [vmem:[#allocation2 + $0xa8] sm:$0xff]
      %v459 = vld [vmem:[#allocation2 + $0xb0] sm:$0xff]
      %v460 = vld [vmem:[#allocation2 + $0xc0] sm:$0xff]
      %v461 = vld [vmem:[#allocation2 + $0xc8] sm:$0xff]
      %v462 = vld [vmem:[#allocation2 + $0xd8] sm:$0xff]
      %v463 = vld [vmem:[#allocation2 + $0xe0] sm:$0xff]
      %v464 = vld [vmem:[#allocation2 + $0xf0] sm:$0xff]
      %v465 = vld [vmem:[#allocation2 + $0xf8] sm:$0xff]
      %v466 = vld [vmem:[#allocation2 + $0x108] sm:$0xff]
      %v467 = vld [vmem:[#allocation2 + $0x110] sm:$0xff]
      %v468 = vld [vmem:[#allocation2 + $0x120] sm:$0xff]
      %v469 = vld [vmem:[#allocation2 + $0x128] sm:$0xff]
      %v470 = vld [vmem:[#allocation2 + $0x138] sm:$0xff]
      %v471 = vld [vmem:[#allocation2 + $0x140] sm:$0xff]
      %v472 = vld [vmem:[#allocation2 + $0x150] sm:$0xff]
      %v473 = vld [vmem:[#allocation2 + $0x158] sm:$0xff]
      %v474 = vld [vmem:[#allocation2 + $0x168] sm:$0xff]
      %v475 = vld [vmem:[#allocation2 + $0x170] sm:$0xff]
      %v476 = vld [vmem:[%s3] sm:$0xff]
      %v477 = vld [vmem:[%s3 + $0x8] sm:$0xff]
      %v478 = vld [vmem:[%s3 + $0x10] sm:$0xff]
      %v479 = vld [vmem:[%s3 + $0x18] sm:$0xff]
      %v480 = vld [vmem:[%s3 + $0x20] sm:$0xff]
      %v481 = vld [vmem:[%s3 + $0x28] sm:$0xff]
      %v482 = vld [vmem:[%s3 + $0x30] sm:$0xff]
      %v483 = vld [vmem:[%s3 + $0x38] sm:$0xff]
      %v484 = vld [vmem:[%s3 + $0x40] sm:$0xff]
      %v485 = vld [vmem:[%s3 + $0x48] sm:$0xff]
      %v486 = vld [vmem:[%s3 + $0x50] sm:$0xff]
      %v487 = vld [vmem:[%s3 + $0x58] sm:$0xff]
      %v488 = vld [vmem:[%s3 + $0x60] sm:$0xff]
      %v489 = vld [vmem:[%s3 + $0x68] sm:$0xff]
      %v490 = vld [vmem:[%s3 + $0x70] sm:$0xff]
      %v491 = vld [vmem:[%s3 + $0x78] sm:$0xff]
      %v492 = vld [vmem:[#allocation2 + $0x1] sm:$0xff]
      %v493 = vld [vmem:[#allocation2 + $0x9] sm:$0xff]
      %v494 = vld [vmem:[#allocation2 + $0x19] sm:$0xff]
      %v495 = vld [vmem:[#allocation2 + $0x21] sm:$0xff]
      %v496 = vld [vmem:[#allocation2 + $0x31] sm:$0xff]
      %v497 = vld [vmem:[#allocation2 + $0x39] sm:$0xff]
      %v498 = vld [vmem:[#allocation2 + $0x49] sm:$0xff]
      %v499 = vld [vmem:[#allocation2 + $0x51] sm:$0xff]
      %v500 = vld [vmem:[#allocation2 + $0x61] sm:$0xff]
      %v501 = vld [vmem:[#allocation2 + $0x69] sm:$0xff]
      %v502 = vld [vmem:[#allocation2 + $0x79] sm:$0xff]
      %v503 = vld [vmem:[#allocation2 + $0x81] sm:$0xff]
      %v504 = vld [vmem:[#allocation2 + $0x91] sm:$0xff]
      %v505 = vld [vmem:[#allocation2 + $0x99] sm:$0xff]
      %v506 = vld [vmem:[#allocation2 + $0xa9] sm:$0xff]
      %v507 = vld [vmem:[#allocation2 + $0xb1] sm:$0xff]
      %v508 = vld [vmem:[#allocation2 + $0xc1] sm:$0xff]
      %v509 = vld [vmem:[#allocation2 + $0xc9] sm:$0xff]
      %v510 = vld [vmem:[#allocation2 + $0xd9] sm:$0xff]
      %v511 = vld [vmem:[#allocation2 + $0xe1] sm:$0xff]
      %v512 = vld [vmem:[#allocation2 + $0xf1] sm:$0xff]
      %v513 = vld [vmem:[#allocation2 + $0xf9] sm:$0xff]
      %v514 = vld [vmem:[#allocation2 + $0x109] sm:$0xff]
      %v515 = vld [vmem:[#allocation2 + $0x111] sm:$0xff]
      %v516 = vld [vmem:[#allocation2 + $0x121] sm:$0xff]
      %v517 = vld [vmem:[#allocation2 + $0x129] sm:$0xff]
      %v518 = vld [vmem:[#allocation2 + $0x139] sm:$0xff]
      %v519 = vld [vmem:[#allocation2 + $0x141] sm:$0xff]
      %v520 = vld [vmem:[#allocation2 + $0x151] sm:$0xff]
      %v521 = vld [vmem:[#allocation2 + $0x159] sm:$0xff]
      %v522 = vld [vmem:[#allocation2 + $0x169] sm:$0xff]
      %v523 = vld [vmem:[#allocation2 + $0x171] sm:$0xff]
      %s524 = scalar_lea.vmem %s3, 128
      %v525 = vld [vmem:[%s524] sm:$0xff]
      %v526 = vld [vmem:[%s524 + $0x8] sm:$0xff]
      %v527 = vld [vmem:[%s524 + $0x10] sm:$0xff]
      %v528 = vld [vmem:[%s524 + $0x18] sm:$0xff]
      %v529 = vld [vmem:[%s524 + $0x20] sm:$0xff]
      %v530 = vld [vmem:[%s524 + $0x28] sm:$0xff]
      %v531 = vld [vmem:[%s524 + $0x30] sm:$0xff]
      %v532 = vld [vmem:[%s524 + $0x38] sm:$0xff]
      %v533 = vld [vmem:[%s524 + $0x40] sm:$0xff]
      %v534 = vld [vmem:[%s524 + $0x48] sm:$0xff]
      %v535 = vld [vmem:[%s524 + $0x50] sm:$0xff]
      %v536 = vld [vmem:[%s524 + $0x58] sm:$0xff]
      %v537 = vld [vmem:[%s524 + $0x60] sm:$0xff]
      %v538 = vld [vmem:[%s524 + $0x68] sm:$0xff]
      %v539 = vld [vmem:[%s524 + $0x70] sm:$0xff]
      %v540 = vld [vmem:[%s524 + $0x78] sm:$0xff]
      %541 = vmatpush.msra.mxu0 %v540
      %542 = vmatpush.msra.mxu0 %v539
      %543 = vmatpush.msra.mxu0 %v538
      %544 = vmatpush.msra.mxu0 %v537
      %545 = vmatpush.msra.mxu0 %v536
      %546 = vmatpush.msra.mxu0 %v535
      %547 = vmatpush.msra.mxu0 %v534
      %548 = vmatpush.msra.mxu0 %v533
      %549 = vmatpush.msra.mxu0 %v532
      %550 = vmatpush.msra.mxu0 %v531
      %551 = vmatpush.msra.mxu0 %v530
      %552 = vmatpush.msra.mxu0 %v529
      %553 = vmatpush.msra.mxu0 %v528
      %554 = vmatpush.msra.mxu0 %v527
      %555 = vmatpush.msra.mxu0 %v526
      %556 = vmatpush.msra.mxu0 %v525
      %557 = vmatmul.f32.gmra.mxu0 %v492
      %v558 = vpop.f32.mrf.mxu0
      %v559 = vadd.f32 0.0, %v558
      %560 = vmatmul.f32.gmra.mxu0 %v493
      %v561 = vpop.f32.mrf.mxu0
      %v562 = vadd.f32 0.0, %v561
      %563 = vmatmul.f32.gmra.mxu0 %v494
      %v564 = vpop.f32.mrf.mxu0
      %v565 = vadd.f32 0.0, %v564
      %566 = vmatmul.f32.gmra.mxu0 %v495
      %v567 = vpop.f32.mrf.mxu0
      %v568 = vadd.f32 0.0, %v567
      %569 = vmatmul.f32.gmra.mxu0 %v496
      %v570 = vpop.f32.mrf.mxu0
      %v571 = vadd.f32 0.0, %v570
      %572 = vmatmul.f32.gmra.mxu0 %v497
      %v573 = vpop.f32.mrf.mxu0
      %v574 = vadd.f32 0.0, %v573
      %575 = vmatmul.f32.gmra.mxu0 %v498
      %v576 = vpop.f32.mrf.mxu0
      %v577 = vadd.f32 0.0, %v576
      %578 = vmatmul.f32.gmra.mxu0 %v499
      %v579 = vpop.f32.mrf.mxu0
      %v580 = vadd.f32 0.0, %v579
      %581 = vmatmul.f32.gmra.mxu0 %v500
      %v582 = vpop.f32.mrf.mxu0
      %v583 = vadd.f32 0.0, %v582
      %584 = vmatmul.f32.gmra.mxu0 %v501
      %v585 = vpop.f32.mrf.mxu0
      %v586 = vadd.f32 0.0, %v585
      %587 = vmatmul.f32.gmra.mxu0 %v502
      %v588 = vpop.f32.mrf.mxu0
      %v589 = vadd.f32 0.0, %v588
      %590 = vmatmul.f32.gmra.mxu0 %v503
      %v591 = vpop.f32.mrf.mxu0
      %v592 = vadd.f32 0.0, %v591
      %593 = vmatmul.f32.gmra.mxu0 %v504
      %v594 = vpop.f32.mrf.mxu0
      %v595 = vadd.f32 0.0, %v594
      %596 = vmatmul.f32.gmra.mxu0 %v505
      %v597 = vpop.f32.mrf.mxu0
      %v598 = vadd.f32 0.0, %v597
      %599 = vmatmul.f32.gmra.mxu0 %v506
      %v600 = vpop.f32.mrf.mxu0
      %v601 = vadd.f32 0.0, %v600
      %602 = vmatmul.f32.gmra.mxu0 %v507
      %v603 = vpop.f32.mrf.mxu0
      %v604 = vadd.f32 0.0, %v603
      %605 = vmatmul.f32.gmra.mxu0 %v508
      %v606 = vpop.f32.mrf.mxu0
      %v607 = vadd.f32 0.0, %v606
      %608 = vmatmul.f32.gmra.mxu0 %v509
      %v609 = vpop.f32.mrf.mxu0
      %v610 = vadd.f32 0.0, %v609
      %611 = vmatmul.f32.gmra.mxu0 %v510
      %v612 = vpop.f32.mrf.mxu0
      %v613 = vadd.f32 0.0, %v612
      %614 = vmatmul.f32.gmra.mxu0 %v511
      %v615 = vpop.f32.mrf.mxu0
      %v616 = vadd.f32 0.0, %v615
      %617 = vmatmul.f32.gmra.mxu0 %v512
      %v618 = vpop.f32.mrf.mxu0
      %v619 = vadd.f32 0.0, %v618
      %620 = vmatmul.f32.gmra.mxu0 %v513
      %v621 = vpop.f32.mrf.mxu0
      %v622 = vadd.f32 0.0, %v621
      %623 = vmatmul.f32.gmra.mxu0 %v514
      %v624 = vpop.f32.mrf.mxu0
      %v625 = vadd.f32 0.0, %v624
      %626 = vmatmul.f32.gmra.mxu0 %v515
      %v627 = vpop.f32.mrf.mxu0
      %v628 = vadd.f32 0.0, %v627
      %629 = vmatmul.f32.gmra.mxu0 %v516
      %v630 = vpop.f32.mrf.mxu0
      %v631 = vadd.f32 0.0, %v630
      %632 = vmatmul.f32.gmra.mxu0 %v517
      %v633 = vpop.f32.mrf.mxu0
      %v634 = vadd.f32 0.0, %v633
      %635 = vmatmul.f32.gmra.mxu0 %v518
      %v636 = vpop.f32.mrf.mxu0
      %v637 = vadd.f32 0.0, %v636
      %638 = vmatmul.f32.gmra.mxu0 %v519
      %v639 = vpop.f32.mrf.mxu0
      %v640 = vadd.f32 0.0, %v639
      %641 = vmatmul.f32.gmra.mxu0 %v520
      %v642 = vpop.f32.mrf.mxu0
      %v643 = vadd.f32 0.0, %v642
      %644 = vmatmul.f32.gmra.mxu0 %v521
      %v645 = vpop.f32.mrf.mxu0
      %v646 = vadd.f32 0.0, %v645
      %647 = vmatmul.f32.gmra.mxu0 %v522
      %v648 = vpop.f32.mrf.mxu0
      %v649 = vadd.f32 0.0, %v648
      %650 = vmatmul.f32.gmra.mxu0 %v523
      %v651 = vpop.f32.mrf.mxu0
      %v652 = vadd.f32 0.0, %v651
      %653 = vdwg.mxu0
      %654 = vmatpush.msra.mxu0 %v491
      %655 = vmatpush.msra.mxu0 %v490
      %656 = vmatpush.msra.mxu0 %v489
      %657 = vmatpush.msra.mxu0 %v488
      %658 = vmatpush.msra.mxu0 %v487
      %659 = vmatpush.msra.mxu0 %v486
      %660 = vmatpush.msra.mxu0 %v485
      %661 = vmatpush.msra.mxu0 %v484
      %662 = vmatpush.msra.mxu0 %v483
      %663 = vmatpush.msra.mxu0 %v482
      %664 = vmatpush.msra.mxu0 %v481
      %665 = vmatpush.msra.mxu0 %v480
      %666 = vmatpush.msra.mxu0 %v479
      %667 = vmatpush.msra.mxu0 %v478
      %668 = vmatpush.msra.mxu0 %v477
      %669 = vmatpush.msra.mxu0 %v476
      %670 = vmatmul.f32.gmra.mxu0 %v444
      %v671 = vpop.f32.mrf.mxu0
      %v672 = vadd.f32 %v559, %v671
      %673 = vmatmul.f32.gmra.mxu0 %v445
      %v674 = vpop.f32.mrf.mxu0
      %v675 = vadd.f32 %v562, %v674
      %676 = vmatmul.f32.gmra.mxu0 %v446
      %v677 = vpop.f32.mrf.mxu0
      %v678 = vadd.f32 %v565, %v677
      %679 = vmatmul.f32.gmra.mxu0 %v447
      %v680 = vpop.f32.mrf.mxu0
      %v681 = vadd.f32 %v568, %v680
      %682 = vmatmul.f32.gmra.mxu0 %v448
      %v683 = vpop.f32.mrf.mxu0
      %v684 = vadd.f32 %v571, %v683
      %685 = vmatmul.f32.gmra.mxu0 %v449
      %v686 = vpop.f32.mrf.mxu0
      %v687 = vadd.f32 %v574, %v686
      %688 = vmatmul.f32.gmra.mxu0 %v450
      %v689 = vpop.f32.mrf.mxu0
      %v690 = vadd.f32 %v577, %v689
      %691 = vmatmul.f32.gmra.mxu0 %v451
      %v692 = vpop.f32.mrf.mxu0
      %v693 = vadd.f32 %v580, %v692
      %694 = vmatmul.f32.gmra.mxu0 %v452
      %v695 = vpop.f32.mrf.mxu0
      %v696 = vadd.f32 %v583, %v695
      %697 = vmatmul.f32.gmra.mxu0 %v453
      %v698 = vpop.f32.mrf.mxu0
      %v699 = vadd.f32 %v586, %v698
      %700 = vmatmul.f32.gmra.mxu0 %v454
      %v701 = vpop.f32.mrf.mxu0
      %v702 = vadd.f32 %v589, %v701
      %703 = vmatmul.f32.gmra.mxu0 %v455
      %v704 = vpop.f32.mrf.mxu0
      %v705 = vadd.f32 %v592, %v704
      %706 = vmatmul.f32.gmra.mxu0 %v456
      %v707 = vpop.f32.mrf.mxu0
      %v708 = vadd.f32 %v595, %v707
      %709 = vmatmul.f32.gmra.mxu0 %v457
      %v710 = vpop.f32.mrf.mxu0
      %v711 = vadd.f32 %v598, %v710
      %712 = vmatmul.f32.gmra.mxu0 %v458
      %v713 = vpop.f32.mrf.mxu0
      %v714 = vadd.f32 %v601, %v713
      %715 = vmatmul.f32.gmra.mxu0 %v459
      %v716 = vpop.f32.mrf.mxu0
      %v717 = vadd.f32 %v604, %v716
      %718 = vmatmul.f32.gmra.mxu0 %v460
      %v719 = vpop.f32.mrf.mxu0
      %v720 = vadd.f32 %v607, %v719
      %721 = vmatmul.f32.gmra.mxu0 %v461
      %v722 = vpop.f32.mrf.mxu0
      %v723 = vadd.f32 %v610, %v722
      %724 = vmatmul.f32.gmra.mxu0 %v462
      %v725 = vpop.f32.mrf.mxu0
      %v726 = vadd.f32 %v613, %v725
      %727 = vmatmul.f32.gmra.mxu0 %v463
      %v728 = vpop.f32.mrf.mxu0
      %v729 = vadd.f32 %v616, %v728
      %730 = vmatmul.f32.gmra.mxu0 %v464
      %v731 = vpop.f32.mrf.mxu0
      %v732 = vadd.f32 %v619, %v731
      %733 = vmatmul.f32.gmra.mxu0 %v465
      %v734 = vpop.f32.mrf.mxu0
      %v735 = vadd.f32 %v622, %v734
      %736 = vmatmul.f32.gmra.mxu0 %v466
      %v737 = vpop.f32.mrf.mxu0
      %v738 = vadd.f32 %v625, %v737
      %739 = vmatmul.f32.gmra.mxu0 %v467
      %v740 = vpop.f32.mrf.mxu0
      %v741 = vadd.f32 %v628, %v740
      %742 = vmatmul.f32.gmra.mxu0 %v468
      %v743 = vpop.f32.mrf.mxu0
      %v744 = vadd.f32 %v631, %v743
      %745 = vmatmul.f32.gmra.mxu0 %v469
      %v746 = vpop.f32.mrf.mxu0
      %v747 = vadd.f32 %v634, %v746
      %748 = vmatmul.f32.gmra.mxu0 %v470
      %v749 = vpop.f32.mrf.mxu0
      %v750 = vadd.f32 %v637, %v749
      %751 = vmatmul.f32.gmra.mxu0 %v471
      %v752 = vpop.f32.mrf.mxu0
      %v753 = vadd.f32 %v640, %v752
      %754 = vmatmul.f32.gmra.mxu0 %v472
      %v755 = vpop.f32.mrf.mxu0
      %v756 = vadd.f32 %v643, %v755
      %757 = vmatmul.f32.gmra.mxu0 %v473
      %v758 = vpop.f32.mrf.mxu0
      %v759 = vadd.f32 %v646, %v758
      %760 = vmatmul.f32.gmra.mxu0 %v474
      %v761 = vpop.f32.mrf.mxu0
      %v762 = vadd.f32 %v649, %v761
      %763 = vmatmul.f32.gmra.mxu0 %v475
      %v764 = vpop.f32.mrf.mxu0
      %v765 = vadd.f32 %v652, %v764
      %766 = vdwg.mxu0
      %v767 = vld [vmem:[#allocation2 + $0x2] sm:$0xff]
      %v768 = vld [vmem:[#allocation2 + $0xa] sm:$0xff]
      %v769 = vld [vmem:[#allocation2 + $0x1a] sm:$0xff]
      %v770 = vld [vmem:[#allocation2 + $0x22] sm:$0xff]
      %v771 = vld [vmem:[#allocation2 + $0x32] sm:$0xff]
      %v772 = vld [vmem:[#allocation2 + $0x3a] sm:$0xff]
      %v773 = vld [vmem:[#allocation2 + $0x4a] sm:$0xff]
      %v774 = vld [vmem:[#allocation2 + $0x52] sm:$0xff]
      %v775 = vld [vmem:[#allocation2 + $0x62] sm:$0xff]
      %v776 = vld [vmem:[#allocation2 + $0x6a] sm:$0xff]
      %v777 = vld [vmem:[#allocation2 + $0x7a] sm:$0xff]
      %v778 = vld [vmem:[#allocation2 + $0x82] sm:$0xff]
      %v779 = vld [vmem:[#allocation2 + $0x92] sm:$0xff]
      %v780 = vld [vmem:[#allocation2 + $0x9a] sm:$0xff]
      %v781 = vld [vmem:[#allocation2 + $0xaa] sm:$0xff]
      %v782 = vld [vmem:[#allocation2 + $0xb2] sm:$0xff]
      %v783 = vld [vmem:[#allocation2 + $0xc2] sm:$0xff]
      %v784 = vld [vmem:[#allocation2 + $0xca] sm:$0xff]
      %v785 = vld [vmem:[#allocation2 + $0xda] sm:$0xff]
      %v786 = vld [vmem:[#allocation2 + $0xe2] sm:$0xff]
      %v787 = vld [vmem:[#allocation2 + $0xf2] sm:$0xff]
      %v788 = vld [vmem:[#allocation2 + $0xfa] sm:$0xff]
      %v789 = vld [vmem:[#allocation2 + $0x10a] sm:$0xff]
      %v790 = vld [vmem:[#allocation2 + $0x112] sm:$0xff]
      %v791 = vld [vmem:[#allocation2 + $0x122] sm:$0xff]
      %v792 = vld [vmem:[#allocation2 + $0x12a] sm:$0xff]
      %v793 = vld [vmem:[#allocation2 + $0x13a] sm:$0xff]
      %v794 = vld [vmem:[#allocation2 + $0x142] sm:$0xff]
      %v795 = vld [vmem:[#allocation2 + $0x152] sm:$0xff]
      %v796 = vld [vmem:[#allocation2 + $0x15a] sm:$0xff]
      %v797 = vld [vmem:[#allocation2 + $0x16a] sm:$0xff]
      %v798 = vld [vmem:[#allocation2 + $0x172] sm:$0xff]
      %s799 = scalar_lea.vmem %s3, 256
      %v800 = vld [vmem:[%s799] sm:$0xff]
      %v801 = vld [vmem:[%s799 + $0x8] sm:$0xff]
      %v802 = vld [vmem:[%s799 + $0x10] sm:$0xff]
      %v803 = vld [vmem:[%s799 + $0x18] sm:$0xff]
      %v804 = vld [vmem:[%s799 + $0x20] sm:$0xff]
      %v805 = vld [vmem:[%s799 + $0x28] sm:$0xff]
      %v806 = vld [vmem:[%s799 + $0x30] sm:$0xff]
      %v807 = vld [vmem:[%s799 + $0x38] sm:$0xff]
      %v808 = vld [vmem:[%s799 + $0x40] sm:$0xff]
      %v809 = vld [vmem:[%s799 + $0x48] sm:$0xff]
      %v810 = vld [vmem:[%s799 + $0x50] sm:$0xff]
      %v811 = vld [vmem:[%s799 + $0x58] sm:$0xff]
      %v812 = vld [vmem:[%s799 + $0x60] sm:$0xff]
      %v813 = vld [vmem:[%s799 + $0x68] sm:$0xff]
      %v814 = vld [vmem:[%s799 + $0x70] sm:$0xff]
      %v815 = vld [vmem:[%s799 + $0x78] sm:$0xff]
      %816 = vmatpush.msra.mxu0 %v815
      %817 = vmatpush.msra.mxu0 %v814
      %818 = vmatpush.msra.mxu0 %v813
      %819 = vmatpush.msra.mxu0 %v812
      %820 = vmatpush.msra.mxu0 %v811
      %821 = vmatpush.msra.mxu0 %v810
      %822 = vmatpush.msra.mxu0 %v809
      %823 = vmatpush.msra.mxu0 %v808
      %824 = vmatpush.msra.mxu0 %v807
      %825 = vmatpush.msra.mxu0 %v806
      %826 = vmatpush.msra.mxu0 %v805
      %827 = vmatpush.msra.mxu0 %v804
      %828 = vmatpush.msra.mxu0 %v803
      %829 = vmatpush.msra.mxu0 %v802
      %830 = vmatpush.msra.mxu0 %v801
      %831 = vmatpush.msra.mxu0 %v800
      %832 = vmatmul.f32.gmra.mxu0 %v767
      %v833 = vpop.f32.mrf.mxu0
      %v834 = vadd.f32 0.0, %v833
      %835 = vmatmul.f32.gmra.mxu0 %v768
      %v836 = vpop.f32.mrf.mxu0
      %v837 = vadd.f32 0.0, %v836
      %838 = vmatmul.f32.gmra.mxu0 %v769
      %v839 = vpop.f32.mrf.mxu0
      %v840 = vadd.f32 0.0, %v839
      %841 = vmatmul.f32.gmra.mxu0 %v770
      %v842 = vpop.f32.mrf.mxu0
      %v843 = vadd.f32 0.0, %v842
      %844 = vmatmul.f32.gmra.mxu0 %v771
      %v845 = vpop.f32.mrf.mxu0
      %v846 = vadd.f32 0.0, %v845
      %847 = vmatmul.f32.gmra.mxu0 %v772
      %v848 = vpop.f32.mrf.mxu0
      %v849 = vadd.f32 0.0, %v848
      %850 = vmatmul.f32.gmra.mxu0 %v773
      %v851 = vpop.f32.mrf.mxu0
      %v852 = vadd.f32 0.0, %v851
      %853 = vmatmul.f32.gmra.mxu0 %v774
      %v854 = vpop.f32.mrf.mxu0
      %v855 = vadd.f32 0.0, %v854
      %856 = vmatmul.f32.gmra.mxu0 %v775
      %v857 = vpop.f32.mrf.mxu0
      %v858 = vadd.f32 0.0, %v857
      %859 = vmatmul.f32.gmra.mxu0 %v776
      %v860 = vpop.f32.mrf.mxu0
      %v861 = vadd.f32 0.0, %v860
      %862 = vmatmul.f32.gmra.mxu0 %v777
      %v863 = vpop.f32.mrf.mxu0
      %v864 = vadd.f32 0.0, %v863
      %865 = vmatmul.f32.gmra.mxu0 %v778
      %v866 = vpop.f32.mrf.mxu0
      %v867 = vadd.f32 0.0, %v866
      %868 = vmatmul.f32.gmra.mxu0 %v779
      %v869 = vpop.f32.mrf.mxu0
      %v870 = vadd.f32 0.0, %v869
      %871 = vmatmul.f32.gmra.mxu0 %v780
      %v872 = vpop.f32.mrf.mxu0
      %v873 = vadd.f32 0.0, %v872
      %874 = vmatmul.f32.gmra.mxu0 %v781
      %v875 = vpop.f32.mrf.mxu0
      %v876 = vadd.f32 0.0, %v875
      %877 = vmatmul.f32.gmra.mxu0 %v782
      %v878 = vpop.f32.mrf.mxu0
      %v879 = vadd.f32 0.0, %v878
      %880 = vmatmul.f32.gmra.mxu0 %v783
      %v881 = vpop.f32.mrf.mxu0
      %v882 = vadd.f32 0.0, %v881
      %883 = vmatmul.f32.gmra.mxu0 %v784
      %v884 = vpop.f32.mrf.mxu0
      %v885 = vadd.f32 0.0, %v884
      %886 = vmatmul.f32.gmra.mxu0 %v785
      %v887 = vpop.f32.mrf.mxu0
      %v888 = vadd.f32 0.0, %v887
      %889 = vmatmul.f32.gmra.mxu0 %v786
      %v890 = vpop.f32.mrf.mxu0
      %v891 = vadd.f32 0.0, %v890
      %892 = vmatmul.f32.gmra.mxu0 %v787
      %v893 = vpop.f32.mrf.mxu0
      %v894 = vadd.f32 0.0, %v893
      %895 = vmatmul.f32.gmra.mxu0 %v788
      %v896 = vpop.f32.mrf.mxu0
      %v897 = vadd.f32 0.0, %v896
      %898 = vmatmul.f32.gmra.mxu0 %v789
      %v899 = vpop.f32.mrf.mxu0
      %v900 = vadd.f32 0.0, %v899
      %901 = vmatmul.f32.gmra.mxu0 %v790
      %v902 = vpop.f32.mrf.mxu0
      %v903 = vadd.f32 0.0, %v902
      %904 = vmatmul.f32.gmra.mxu0 %v791
      %v905 = vpop.f32.mrf.mxu0
      %v906 = vadd.f32 0.0, %v905
      %907 = vmatmul.f32.gmra.mxu0 %v792
      %v908 = vpop.f32.mrf.mxu0
      %v909 = vadd.f32 0.0, %v908
      %910 = vmatmul.f32.gmra.mxu0 %v793
      %v911 = vpop.f32.mrf.mxu0
      %v912 = vadd.f32 0.0, %v911
      %913 = vmatmul.f32.gmra.mxu0 %v794
      %v914 = vpop.f32.mrf.mxu0
      %v915 = vadd.f32 0.0, %v914
      %916 = vmatmul.f32.gmra.mxu0 %v795
      %v917 = vpop.f32.mrf.mxu0
      %v918 = vadd.f32 0.0, %v917
      %919 = vmatmul.f32.gmra.mxu0 %v796
      %v920 = vpop.f32.mrf.mxu0
      %v921 = vadd.f32 0.0, %v920
      %922 = vmatmul.f32.gmra.mxu0 %v797
      %v923 = vpop.f32.mrf.mxu0
      %v924 = vadd.f32 0.0, %v923
      %925 = vmatmul.f32.gmra.mxu0 %v798
      %v926 = vpop.f32.mrf.mxu0
      %v927 = vadd.f32 0.0, %v926
      %928 = vdwg.mxu0
      %v929 = vadd.f32 %v672, %v834
      %v930 = vadd.f32 %v675, %v837
      %v931 = vadd.f32 %v678, %v840
      %v932 = vadd.f32 %v681, %v843
      %v933 = vadd.f32 %v684, %v846
      %v934 = vadd.f32 %v687, %v849
      %v935 = vadd.f32 %v690, %v852
      %v936 = vadd.f32 %v693, %v855
      %v937 = vadd.f32 %v696, %v858
      %v938 = vadd.f32 %v699, %v861
      %v939 = vadd.f32 %v702, %v864
      %v940 = vadd.f32 %v705, %v867
      %v941 = vadd.f32 %v708, %v870
      %v942 = vadd.f32 %v711, %v873
      %v943 = vadd.f32 %v714, %v876
      %v944 = vadd.f32 %v717, %v879
      %v945 = vadd.f32 %v720, %v882
      %v946 = vadd.f32 %v723, %v885
      %v947 = vadd.f32 %v726, %v888
      %v948 = vadd.f32 %v729, %v891
      %v949 = vadd.f32 %v732, %v894
      %v950 = vadd.f32 %v735, %v897
      %v951 = vadd.f32 %v738, %v900
      %v952 = vadd.f32 %v741, %v903
      %v953 = vadd.f32 %v744, %v906
      %v954 = vadd.f32 %v747, %v909
      %v955 = vadd.f32 %v750, %v912
      %v956 = vadd.f32 %v753, %v915
      %v957 = vadd.f32 %v756, %v918
      %v958 = vadd.f32 %v759, %v921
      %v959 = vadd.f32 %v762, %v924
      %v960 = vadd.f32 %v765, %v927
      %v961 = vld [vmem:[%s379] sm:$0xff]
      %v962 = vld [vmem:[%s379 + $0x8] sm:$0xff]
      %v963 = vld [vmem:[%s379 + $0x18] sm:$0xff]
      %v964 = vld [vmem:[%s379 + $0x20] sm:$0xff]
      %v965 = vld [vmem:[%s379 + $0x30] sm:$0xff]
      %v966 = vld [vmem:[%s379 + $0x38] sm:$0xff]
      %v967 = vld [vmem:[%s379 + $0x48] sm:$0xff]
      %v968 = vld [vmem:[%s379 + $0x50] sm:$0xff]
      %v969 = vld [vmem:[%s379 + $0x60] sm:$0xff]
      %v970 = vld [vmem:[%s379 + $0x68] sm:$0xff]
      %v971 = vld [vmem:[%s379 + $0x78] sm:$0xff]
      %v972 = vld [vmem:[%s379 + $0x80] sm:$0xff]
      %v973 = vld [vmem:[%s379 + $0x90] sm:$0xff]
      %v974 = vld [vmem:[%s379 + $0x98] sm:$0xff]
      %v975 = vld [vmem:[%s379 + $0xa8] sm:$0xff]
      %v976 = vld [vmem:[%s379 + $0xb0] sm:$0xff]
      %v977 = vld [vmem:[%s379 + $0xc0] sm:$0xff]
      %v978 = vld [vmem:[%s379 + $0xc8] sm:$0xff]
      %v979 = vld [vmem:[%s379 + $0xd8] sm:$0xff]
      %v980 = vld [vmem:[%s379 + $0xe0] sm:$0xff]
      %v981 = vld [vmem:[%s379 + $0xf0] sm:$0xff]
      %v982 = vld [vmem:[%s379 + $0xf8] sm:$0xff]
      %v983 = vld [vmem:[%s379 + $0x108] sm:$0xff]
      %v984 = vld [vmem:[%s379 + $0x110] sm:$0xff]
      %v985 = vld [vmem:[%s379 + $0x120] sm:$0xff]
      %v986 = vld [vmem:[%s379 + $0x128] sm:$0xff]
      %v987 = vld [vmem:[%s379 + $0x138] sm:$0xff]
      %v988 = vld [vmem:[%s379 + $0x140] sm:$0xff]
      %v989 = vld [vmem:[%s379 + $0x150] sm:$0xff]
      %v990 = vld [vmem:[%s379 + $0x158] sm:$0xff]
      %v991 = vld [vmem:[%s379 + $0x168] sm:$0xff]
      %v992 = vld [vmem:[%s379 + $0x170] sm:$0xff]
      %s993 = scalar_lea.vmem %s3, 384
      %v994 = vld [vmem:[%s993] sm:$0xff]
      %v995 = vld [vmem:[%s993 + $0x8] sm:$0xff]
      %v996 = vld [vmem:[%s993 + $0x10] sm:$0xff]
      %v997 = vld [vmem:[%s993 + $0x18] sm:$0xff]
      %v998 = vld [vmem:[%s993 + $0x20] sm:$0xff]
      %v999 = vld [vmem:[%s993 + $0x28] sm:$0xff]
      %v1000 = vld [vmem:[%s993 + $0x30] sm:$0xff]
      %v1001 = vld [vmem:[%s993 + $0x38] sm:$0xff]
      %v1002 = vld [vmem:[%s993 + $0x40] sm:$0xff]
      %v1003 = vld [vmem:[%s993 + $0x48] sm:$0xff]
      %v1004 = vld [vmem:[%s993 + $0x50] sm:$0xff]
      %v1005 = vld [vmem:[%s993 + $0x58] sm:$0xff]
      %v1006 = vld [vmem:[%s993 + $0x60] sm:$0xff]
      %v1007 = vld [vmem:[%s993 + $0x68] sm:$0xff]
      %v1008 = vld [vmem:[%s993 + $0x70] sm:$0xff]
      %v1009 = vld [vmem:[%s993 + $0x78] sm:$0xff]
      %1010 = vmatpush.msra.mxu0 %v1009
      %1011 = vmatpush.msra.mxu0 %v1008
      %1012 = vmatpush.msra.mxu0 %v1007
      %1013 = vmatpush.msra.mxu0 %v1006
      %1014 = vmatpush.msra.mxu0 %v1005
      %1015 = vmatpush.msra.mxu0 %v1004
      %1016 = vmatpush.msra.mxu0 %v1003
      %1017 = vmatpush.msra.mxu0 %v1002
      %1018 = vmatpush.msra.mxu0 %v1001
      %1019 = vmatpush.msra.mxu0 %v1000
      %1020 = vmatpush.msra.mxu0 %v999
      %1021 = vmatpush.msra.mxu0 %v998
      %1022 = vmatpush.msra.mxu0 %v997
      %1023 = vmatpush.msra.mxu0 %v996
      %1024 = vmatpush.msra.mxu0 %v995
      %1025 = vmatpush.msra.mxu0 %v994
      %1026 = vmatmul.f32.gmra.mxu0 %v961
      %v1027 = vpop.f32.mrf.mxu0
      %v1028 = vadd.f32 0.0, %v1027
      %1029 = vmatmul.f32.gmra.mxu0 %v962
      %v1030 = vpop.f32.mrf.mxu0
      %v1031 = vadd.f32 0.0, %v1030
      %1032 = vmatmul.f32.gmra.mxu0 %v963
      %v1033 = vpop.f32.mrf.mxu0
      %v1034 = vadd.f32 0.0, %v1033
      %1035 = vmatmul.f32.gmra.mxu0 %v964
      %v1036 = vpop.f32.mrf.mxu0
      %v1037 = vadd.f32 0.0, %v1036
      %1038 = vmatmul.f32.gmra.mxu0 %v965
      %v1039 = vpop.f32.mrf.mxu0
      %v1040 = vadd.f32 0.0, %v1039
      %1041 = vmatmul.f32.gmra.mxu0 %v966
      %v1042 = vpop.f32.mrf.mxu0
      %v1043 = vadd.f32 0.0, %v1042
      %1044 = vmatmul.f32.gmra.mxu0 %v967
      %v1045 = vpop.f32.mrf.mxu0
      %v1046 = vadd.f32 0.0, %v1045
      %1047 = vmatmul.f32.gmra.mxu0 %v968
      %v1048 = vpop.f32.mrf.mxu0
      %v1049 = vadd.f32 0.0, %v1048
      %1050 = vmatmul.f32.gmra.mxu0 %v969
      %v1051 = vpop.f32.mrf.mxu0
      %v1052 = vadd.f32 0.0, %v1051
      %1053 = vmatmul.f32.gmra.mxu0 %v970
      %v1054 = vpop.f32.mrf.mxu0
      %v1055 = vadd.f32 0.0, %v1054
      %1056 = vmatmul.f32.gmra.mxu0 %v971
      %v1057 = vpop.f32.mrf.mxu0
      %v1058 = vadd.f32 0.0, %v1057
      %1059 = vmatmul.f32.gmra.mxu0 %v972
      %v1060 = vpop.f32.mrf.mxu0
      %v1061 = vadd.f32 0.0, %v1060
      %1062 = vmatmul.f32.gmra.mxu0 %v973
      %v1063 = vpop.f32.mrf.mxu0
      %v1064 = vadd.f32 0.0, %v1063
      %1065 = vmatmul.f32.gmra.mxu0 %v974
      %v1066 = vpop.f32.mrf.mxu0
      %v1067 = vadd.f32 0.0, %v1066
      %1068 = vmatmul.f32.gmra.mxu0 %v975
      %v1069 = vpop.f32.mrf.mxu0
      %v1070 = vadd.f32 0.0, %v1069
      %1071 = vmatmul.f32.gmra.mxu0 %v976
      %v1072 = vpop.f32.mrf.mxu0
      %v1073 = vadd.f32 0.0, %v1072
      %1074 = vmatmul.f32.gmra.mxu0 %v977
      %v1075 = vpop.f32.mrf.mxu0
      %v1076 = vadd.f32 0.0, %v1075
      %1077 = vmatmul.f32.gmra.mxu0 %v978
      %v1078 = vpop.f32.mrf.mxu0
      %v1079 = vadd.f32 0.0, %v1078
      %1080 = vmatmul.f32.gmra.mxu0 %v979
      %v1081 = vpop.f32.mrf.mxu0
      %v1082 = vadd.f32 0.0, %v1081
      %1083 = vmatmul.f32.gmra.mxu0 %v980
      %v1084 = vpop.f32.mrf.mxu0
      %v1085 = vadd.f32 0.0, %v1084
      %1086 = vmatmul.f32.gmra.mxu0 %v981
      %v1087 = vpop.f32.mrf.mxu0
      %v1088 = vadd.f32 0.0, %v1087
      %1089 = vmatmul.f32.gmra.mxu0 %v982
      %v1090 = vpop.f32.mrf.mxu0
      %v1091 = vadd.f32 0.0, %v1090
      %1092 = vmatmul.f32.gmra.mxu0 %v983
      %v1093 = vpop.f32.mrf.mxu0
      %v1094 = vadd.f32 0.0, %v1093
      %1095 = vmatmul.f32.gmra.mxu0 %v984
      %v1096 = vpop.f32.mrf.mxu0
      %v1097 = vadd.f32 0.0, %v1096
      %1098 = vmatmul.f32.gmra.mxu0 %v985
      %v1099 = vpop.f32.mrf.mxu0
      %v1100 = vadd.f32 0.0, %v1099
      %1101 = vmatmul.f32.gmra.mxu0 %v986
      %v1102 = vpop.f32.mrf.mxu0
      %v1103 = vadd.f32 0.0, %v1102
      %1104 = vmatmul.f32.gmra.mxu0 %v987
      %v1105 = vpop.f32.mrf.mxu0
      %v1106 = vadd.f32 0.0, %v1105
      %1107 = vmatmul.f32.gmra.mxu0 %v988
      %v1108 = vpop.f32.mrf.mxu0
      %v1109 = vadd.f32 0.0, %v1108
      %1110 = vmatmul.f32.gmra.mxu0 %v989
      %v1111 = vpop.f32.mrf.mxu0
      %v1112 = vadd.f32 0.0, %v1111
      %1113 = vmatmul.f32.gmra.mxu0 %v990
      %v1114 = vpop.f32.mrf.mxu0
      %v1115 = vadd.f32 0.0, %v1114
      %1116 = vmatmul.f32.gmra.mxu0 %v991
      %v1117 = vpop.f32.mrf.mxu0
      %v1118 = vadd.f32 0.0, %v1117
      %1119 = vmatmul.f32.gmra.mxu0 %v992
      %v1120 = vpop.f32.mrf.mxu0
      %v1121 = vadd.f32 0.0, %v1120
      %1122 = vdwg.mxu0
      %v1123 = vadd.f32 %v929, %v1028
      %v1124 = vadd.f32 %v930, %v1031
      %v1125 = vadd.f32 %v931, %v1034
      %v1126 = vadd.f32 %v932, %v1037
      %v1127 = vadd.f32 %v933, %v1040
      %v1128 = vadd.f32 %v934, %v1043
      %v1129 = vadd.f32 %v935, %v1046
      %v1130 = vadd.f32 %v936, %v1049
      %v1131 = vadd.f32 %v937, %v1052
      %v1132 = vadd.f32 %v938, %v1055
      %v1133 = vadd.f32 %v939, %v1058
      %v1134 = vadd.f32 %v940, %v1061
      %v1135 = vadd.f32 %v941, %v1064
      %v1136 = vadd.f32 %v942, %v1067
      %v1137 = vadd.f32 %v943, %v1070
      %v1138 = vadd.f32 %v944, %v1073
      %v1139 = vadd.f32 %v945, %v1076
      %v1140 = vadd.f32 %v946, %v1079
      %v1141 = vadd.f32 %v947, %v1082
      %v1142 = vadd.f32 %v948, %v1085
      %v1143 = vadd.f32 %v949, %v1088
      %v1144 = vadd.f32 %v950, %v1091
      %v1145 = vadd.f32 %v951, %v1094
      %v1146 = vadd.f32 %v952, %v1097
      %v1147 = vadd.f32 %v953, %v1100
      %v1148 = vadd.f32 %v954, %v1103
      %v1149 = vadd.f32 %v955, %v1106
      %v1150 = vadd.f32 %v956, %v1109
      %v1151 = vadd.f32 %v957, %v1112
      %v1152 = vadd.f32 %v958, %v1115
      %v1153 = vadd.f32 %v959, %v1118
      %v1154 = vadd.f32 %v960, %v1121
      %v1155 = vld [vmem:[%s379 + $0x1] sm:$0xff]
      %v1156 = vld [vmem:[%s379 + $0x9] sm:$0xff]
      %v1157 = vld [vmem:[%s379 + $0x19] sm:$0xff]
      %v1158 = vld [vmem:[%s379 + $0x21] sm:$0xff]
      %v1159 = vld [vmem:[%s379 + $0x31] sm:$0xff]
      %v1160 = vld [vmem:[%s379 + $0x39] sm:$0xff]
      %v1161 = vld [vmem:[%s379 + $0x49] sm:$0xff]
      %v1162 = vld [vmem:[%s379 + $0x51] sm:$0xff]
      %v1163 = vld [vmem:[%s379 + $0x61] sm:$0xff]
      %v1164 = vld [vmem:[%s379 + $0x69] sm:$0xff]
      %v1165 = vld [vmem:[%s379 + $0x79] sm:$0xff]
      %v1166 = vld [vmem:[%s379 + $0x81] sm:$0xff]
      %v1167 = vld [vmem:[%s379 + $0x91] sm:$0xff]
      %v1168 = vld [vmem:[%s379 + $0x99] sm:$0xff]
      %v1169 = vld [vmem:[%s379 + $0xa9] sm:$0xff]
      %v1170 = vld [vmem:[%s379 + $0xb1] sm:$0xff]
      %v1171 = vld [vmem:[%s379 + $0xc1] sm:$0xff]
      %v1172 = vld [vmem:[%s379 + $0xc9] sm:$0xff]
      %v1173 = vld [vmem:[%s379 + $0xd9] sm:$0xff]
      %v1174 = vld [vmem:[%s379 + $0xe1] sm:$0xff]
      %v1175 = vld [vmem:[%s379 + $0xf1] sm:$0xff]
      %v1176 = vld [vmem:[%s379 + $0xf9] sm:$0xff]
      %v1177 = vld [vmem:[%s379 + $0x109] sm:$0xff]
      %v1178 = vld [vmem:[%s379 + $0x111] sm:$0xff]
      %v1179 = vld [vmem:[%s379 + $0x121] sm:$0xff]
      %v1180 = vld [vmem:[%s379 + $0x129] sm:$0xff]
      %v1181 = vld [vmem:[%s379 + $0x139] sm:$0xff]
      %v1182 = vld [vmem:[%s379 + $0x141] sm:$0xff]
      %v1183 = vld [vmem:[%s379 + $0x151] sm:$0xff]
      %v1184 = vld [vmem:[%s379 + $0x159] sm:$0xff]
      %v1185 = vld [vmem:[%s379 + $0x169] sm:$0xff]
      %v1186 = vld [vmem:[%s379 + $0x171] sm:$0xff]
      %s1187 = scalar_lea.vmem %s3, 512
      %v1188 = vld [vmem:[%s1187] sm:$0xff]
      %v1189 = vld [vmem:[%s1187 + $0x8] sm:$0xff]
      %v1190 = vld [vmem:[%s1187 + $0x10] sm:$0xff]
      %v1191 = vld [vmem:[%s1187 + $0x18] sm:$0xff]
      %v1192 = vld [vmem:[%s1187 + $0x20] sm:$0xff]
      %v1193 = vld [vmem:[%s1187 + $0x28] sm:$0xff]
      %v1194 = vld [vmem:[%s1187 + $0x30] sm:$0xff]
      %v1195 = vld [vmem:[%s1187 + $0x38] sm:$0xff]
      %v1196 = vld [vmem:[%s1187 + $0x40] sm:$0xff]
      %v1197 = vld [vmem:[%s1187 + $0x48] sm:$0xff]
      %v1198 = vld [vmem:[%s1187 + $0x50] sm:$0xff]
      %v1199 = vld [vmem:[%s1187 + $0x58] sm:$0xff]
      %v1200 = vld [vmem:[%s1187 + $0x60] sm:$0xff]
      %v1201 = vld [vmem:[%s1187 + $0x68] sm:$0xff]
      %v1202 = vld [vmem:[%s1187 + $0x70] sm:$0xff]
      %v1203 = vld [vmem:[%s1187 + $0x78] sm:$0xff]
      %1204 = vmatpush.msra.mxu0 %v1203
      %1205 = vmatpush.msra.mxu0 %v1202
      %1206 = vmatpush.msra.mxu0 %v1201
      %1207 = vmatpush.msra.mxu0 %v1200
      %1208 = vmatpush.msra.mxu0 %v1199
      %1209 = vmatpush.msra.mxu0 %v1198
      %1210 = vmatpush.msra.mxu0 %v1197
      %1211 = vmatpush.msra.mxu0 %v1196
      %1212 = vmatpush.msra.mxu0 %v1195
      %1213 = vmatpush.msra.mxu0 %v1194
      %1214 = vmatpush.msra.mxu0 %v1193
      %1215 = vmatpush.msra.mxu0 %v1192
      %1216 = vmatpush.msra.mxu0 %v1191
      %1217 = vmatpush.msra.mxu0 %v1190
      %1218 = vmatpush.msra.mxu0 %v1189
      %1219 = vmatpush.msra.mxu0 %v1188
      %1220 = vmatmul.f32.gmra.mxu0 %v1155
      %v1221 = vpop.f32.mrf.mxu0
      %v1222 = vadd.f32 0.0, %v1221
      %1223 = vmatmul.f32.gmra.mxu0 %v1156
      %v1224 = vpop.f32.mrf.mxu0
      %v1225 = vadd.f32 0.0, %v1224
      %1226 = vmatmul.f32.gmra.mxu0 %v1157
      %v1227 = vpop.f32.mrf.mxu0
      %v1228 = vadd.f32 0.0, %v1227
      %1229 = vmatmul.f32.gmra.mxu0 %v1158
      %v1230 = vpop.f32.mrf.mxu0
      %v1231 = vadd.f32 0.0, %v1230
      %1232 = vmatmul.f32.gmra.mxu0 %v1159
      %v1233 = vpop.f32.mrf.mxu0
      %v1234 = vadd.f32 0.0, %v1233
      %1235 = vmatmul.f32.gmra.mxu0 %v1160
      %v1236 = vpop.f32.mrf.mxu0
      %v1237 = vadd.f32 0.0, %v1236
      %1238 = vmatmul.f32.gmra.mxu0 %v1161
      %v1239 = vpop.f32.mrf.mxu0
      %v1240 = vadd.f32 0.0, %v1239
      %1241 = vmatmul.f32.gmra.mxu0 %v1162
      %v1242 = vpop.f32.mrf.mxu0
      %v1243 = vadd.f32 0.0, %v1242
      %1244 = vmatmul.f32.gmra.mxu0 %v1163
      %v1245 = vpop.f32.mrf.mxu0
      %v1246 = vadd.f32 0.0, %v1245
      %1247 = vmatmul.f32.gmra.mxu0 %v1164
      %v1248 = vpop.f32.mrf.mxu0
      %v1249 = vadd.f32 0.0, %v1248
      %1250 = vmatmul.f32.gmra.mxu0 %v1165
      %v1251 = vpop.f32.mrf.mxu0
      %v1252 = vadd.f32 0.0, %v1251
      %1253 = vmatmul.f32.gmra.mxu0 %v1166
      %v1254 = vpop.f32.mrf.mxu0
      %v1255 = vadd.f32 0.0, %v1254
      %1256 = vmatmul.f32.gmra.mxu0 %v1167
      %v1257 = vpop.f32.mrf.mxu0
      %v1258 = vadd.f32 0.0, %v1257
      %1259 = vmatmul.f32.gmra.mxu0 %v1168
      %v1260 = vpop.f32.mrf.mxu0
      %v1261 = vadd.f32 0.0, %v1260
      %1262 = vmatmul.f32.gmra.mxu0 %v1169
      %v1263 = vpop.f32.mrf.mxu0
      %v1264 = vadd.f32 0.0, %v1263
      %1265 = vmatmul.f32.gmra.mxu0 %v1170
      %v1266 = vpop.f32.mrf.mxu0
      %v1267 = vadd.f32 0.0, %v1266
      %1268 = vmatmul.f32.gmra.mxu0 %v1171
      %v1269 = vpop.f32.mrf.mxu0
      %v1270 = vadd.f32 0.0, %v1269
      %1271 = vmatmul.f32.gmra.mxu0 %v1172
      %v1272 = vpop.f32.mrf.mxu0
      %v1273 = vadd.f32 0.0, %v1272
      %1274 = vmatmul.f32.gmra.mxu0 %v1173
      %v1275 = vpop.f32.mrf.mxu0
      %v1276 = vadd.f32 0.0, %v1275
      %1277 = vmatmul.f32.gmra.mxu0 %v1174
      %v1278 = vpop.f32.mrf.mxu0
      %v1279 = vadd.f32 0.0, %v1278
      %1280 = vmatmul.f32.gmra.mxu0 %v1175
      %v1281 = vpop.f32.mrf.mxu0
      %v1282 = vadd.f32 0.0, %v1281
      %1283 = vmatmul.f32.gmra.mxu0 %v1176
      %v1284 = vpop.f32.mrf.mxu0
      %v1285 = vadd.f32 0.0, %v1284
      %1286 = vmatmul.f32.gmra.mxu0 %v1177
      %v1287 = vpop.f32.mrf.mxu0
      %v1288 = vadd.f32 0.0, %v1287
      %1289 = vmatmul.f32.gmra.mxu0 %v1178
      %v1290 = vpop.f32.mrf.mxu0
      %v1291 = vadd.f32 0.0, %v1290
      %1292 = vmatmul.f32.gmra.mxu0 %v1179
      %v1293 = vpop.f32.mrf.mxu0
      %v1294 = vadd.f32 0.0, %v1293
      %1295 = vmatmul.f32.gmra.mxu0 %v1180
      %v1296 = vpop.f32.mrf.mxu0
      %v1297 = vadd.f32 0.0, %v1296
      %1298 = vmatmul.f32.gmra.mxu0 %v1181
      %v1299 = vpop.f32.mrf.mxu0
      %v1300 = vadd.f32 0.0, %v1299
      %1301 = vmatmul.f32.gmra.mxu0 %v1182
      %v1302 = vpop.f32.mrf.mxu0
      %v1303 = vadd.f32 0.0, %v1302
      %1304 = vmatmul.f32.gmra.mxu0 %v1183
      %v1305 = vpop.f32.mrf.mxu0
      %v1306 = vadd.f32 0.0, %v1305
      %1307 = vmatmul.f32.gmra.mxu0 %v1184
      %v1308 = vpop.f32.mrf.mxu0
      %v1309 = vadd.f32 0.0, %v1308
      %1310 = vmatmul.f32.gmra.mxu0 %v1185
      %v1311 = vpop.f32.mrf.mxu0
      %v1312 = vadd.f32 0.0, %v1311
      %1313 = vmatmul.f32.gmra.mxu0 %v1186
      %v1314 = vpop.f32.mrf.mxu0
      %v1315 = vadd.f32 0.0, %v1314
      %1316 = vdwg.mxu0
      %v1317 = vadd.f32 %v1123, %v1222
      %v1318 = vadd.f32 %v1124, %v1225
      %v1319 = vadd.f32 %v1125, %v1228
      %v1320 = vadd.f32 %v1126, %v1231
      %v1321 = vadd.f32 %v1127, %v1234
      %v1322 = vadd.f32 %v1128, %v1237
      %v1323 = vadd.f32 %v1129, %v1240
      %v1324 = vadd.f32 %v1130, %v1243
      %v1325 = vadd.f32 %v1131, %v1246
      %v1326 = vadd.f32 %v1132, %v1249
      %v1327 = vadd.f32 %v1133, %v1252
      %v1328 = vadd.f32 %v1134, %v1255
      %v1329 = vadd.f32 %v1135, %v1258
      %v1330 = vadd.f32 %v1136, %v1261
      %v1331 = vadd.f32 %v1137, %v1264
      %v1332 = vadd.f32 %v1138, %v1267
      %v1333 = vadd.f32 %v1139, %v1270
      %v1334 = vadd.f32 %v1140, %v1273
      %v1335 = vadd.f32 %v1141, %v1276
      %v1336 = vadd.f32 %v1142, %v1279
      %v1337 = vadd.f32 %v1143, %v1282
      %v1338 = vadd.f32 %v1144, %v1285
      %v1339 = vadd.f32 %v1145, %v1288
      %v1340 = vadd.f32 %v1146, %v1291
      %v1341 = vadd.f32 %v1147, %v1294
      %v1342 = vadd.f32 %v1148, %v1297
      %v1343 = vadd.f32 %v1149, %v1300
      %v1344 = vadd.f32 %v1150, %v1303
      %v1345 = vadd.f32 %v1151, %v1306
      %v1346 = vadd.f32 %v1152, %v1309
      %v1347 = vadd.f32 %v1153, %v1312
      %v1348 = vadd.f32 %v1154, %v1315
      %v1349 = vld [vmem:[%s379 + $0x2] sm:$0xff]
      %v1350 = vld [vmem:[%s379 + $0xa] sm:$0xff]
      %v1351 = vld [vmem:[%s379 + $0x1a] sm:$0xff]
      %v1352 = vld [vmem:[%s379 + $0x22] sm:$0xff]
      %v1353 = vld [vmem:[%s379 + $0x32] sm:$0xff]
      %v1354 = vld [vmem:[%s379 + $0x3a] sm:$0xff]
      %v1355 = vld [vmem:[%s379 + $0x4a] sm:$0xff]
      %v1356 = vld [vmem:[%s379 + $0x52] sm:$0xff]
      %v1357 = vld [vmem:[%s379 + $0x62] sm:$0xff]
      %v1358 = vld [vmem:[%s379 + $0x6a] sm:$0xff]
      %v1359 = vld [vmem:[%s379 + $0x7a] sm:$0xff]
      %v1360 = vld [vmem:[%s379 + $0x82] sm:$0xff]
      %v1361 = vld [vmem:[%s379 + $0x92] sm:$0xff]
      %v1362 = vld [vmem:[%s379 + $0x9a] sm:$0xff]
      %v1363 = vld [vmem:[%s379 + $0xaa] sm:$0xff]
      %v1364 = vld [vmem:[%s379 + $0xb2] sm:$0xff]
      %v1365 = vld [vmem:[%s379 + $0xc2] sm:$0xff]
      %v1366 = vld [vmem:[%s379 + $0xca] sm:$0xff]
      %v1367 = vld [vmem:[%s379 + $0xda] sm:$0xff]
      %v1368 = vld [vmem:[%s379 + $0xe2] sm:$0xff]
      %v1369 = vld [vmem:[%s379 + $0xf2] sm:$0xff]
      %v1370 = vld [vmem:[%s379 + $0xfa] sm:$0xff]
      %v1371 = vld [vmem:[%s379 + $0x10a] sm:$0xff]
      %v1372 = vld [vmem:[%s379 + $0x112] sm:$0xff]
      %v1373 = vld [vmem:[%s379 + $0x122] sm:$0xff]
      %v1374 = vld [vmem:[%s379 + $0x12a] sm:$0xff]
      %v1375 = vld [vmem:[%s379 + $0x13a] sm:$0xff]
      %v1376 = vld [vmem:[%s379 + $0x142] sm:$0xff]
      %v1377 = vld [vmem:[%s379 + $0x152] sm:$0xff]
      %v1378 = vld [vmem:[%s379 + $0x15a] sm:$0xff]
      %v1379 = vld [vmem:[%s379 + $0x16a] sm:$0xff]
      %v1380 = vld [vmem:[%s379 + $0x172] sm:$0xff]
      %s1381 = scalar_lea.vmem %s3, 640
      %v1382 = vld [vmem:[%s1381] sm:$0xff]
      %v1383 = vld [vmem:[%s1381 + $0x8] sm:$0xff]
      %v1384 = vld [vmem:[%s1381 + $0x10] sm:$0xff]
      %v1385 = vld [vmem:[%s1381 + $0x18] sm:$0xff]
      %v1386 = vld [vmem:[%s1381 + $0x20] sm:$0xff]
      %v1387 = vld [vmem:[%s1381 + $0x28] sm:$0xff]
      %v1388 = vld [vmem:[%s1381 + $0x30] sm:$0xff]
      %v1389 = vld [vmem:[%s1381 + $0x38] sm:$0xff]
      %v1390 = vld [vmem:[%s1381 + $0x40] sm:$0xff]
      %v1391 = vld [vmem:[%s1381 + $0x48] sm:$0xff]
      %v1392 = vld [vmem:[%s1381 + $0x50] sm:$0xff]
      %v1393 = vld [vmem:[%s1381 + $0x58] sm:$0xff]
      %v1394 = vld [vmem:[%s1381 + $0x60] sm:$0xff]
      %v1395 = vld [vmem:[%s1381 + $0x68] sm:$0xff]
      %v1396 = vld [vmem:[%s1381 + $0x70] sm:$0xff]
      %v1397 = vld [vmem:[%s1381 + $0x78] sm:$0xff]
      %1398 = vmatpush.msra.mxu0 %v1397
      %1399 = vmatpush.msra.mxu0 %v1396
      %1400 = vmatpush.msra.mxu0 %v1395
      %1401 = vmatpush.msra.mxu0 %v1394
      %1402 = vmatpush.msra.mxu0 %v1393
      %1403 = vmatpush.msra.mxu0 %v1392
      %1404 = vmatpush.msra.mxu0 %v1391
      %1405 = vmatpush.msra.mxu0 %v1390
      %1406 = vmatpush.msra.mxu0 %v1389
      %1407 = vmatpush.msra.mxu0 %v1388
      %1408 = vmatpush.msra.mxu0 %v1387
      %1409 = vmatpush.msra.mxu0 %v1386
      %1410 = vmatpush.msra.mxu0 %v1385
      %1411 = vmatpush.msra.mxu0 %v1384
      %1412 = vmatpush.msra.mxu0 %v1383
      %1413 = vmatpush.msra.mxu0 %v1382
      %1414 = vmatmul.f32.gmra.mxu0 %v1349
      %v1415 = vpop.f32.mrf.mxu0
      %v1416 = vadd.f32 0.0, %v1415
      %1417 = vmatmul.f32.gmra.mxu0 %v1350
      %v1418 = vpop.f32.mrf.mxu0
      %v1419 = vadd.f32 0.0, %v1418
      %1420 = vmatmul.f32.gmra.mxu0 %v1351
      %v1421 = vpop.f32.mrf.mxu0
      %v1422 = vadd.f32 0.0, %v1421
      %1423 = vmatmul.f32.gmra.mxu0 %v1352
      %v1424 = vpop.f32.mrf.mxu0
      %v1425 = vadd.f32 0.0, %v1424
      %1426 = vmatmul.f32.gmra.mxu0 %v1353
      %v1427 = vpop.f32.mrf.mxu0
      %v1428 = vadd.f32 0.0, %v1427
      %1429 = vmatmul.f32.gmra.mxu0 %v1354
      %v1430 = vpop.f32.mrf.mxu0
      %v1431 = vadd.f32 0.0, %v1430
      %1432 = vmatmul.f32.gmra.mxu0 %v1355
      %v1433 = vpop.f32.mrf.mxu0
      %v1434 = vadd.f32 0.0, %v1433
      %1435 = vmatmul.f32.gmra.mxu0 %v1356
      %v1436 = vpop.f32.mrf.mxu0
      %v1437 = vadd.f32 0.0, %v1436
      %1438 = vmatmul.f32.gmra.mxu0 %v1357
      %v1439 = vpop.f32.mrf.mxu0
      %v1440 = vadd.f32 0.0, %v1439
      %1441 = vmatmul.f32.gmra.mxu0 %v1358
      %v1442 = vpop.f32.mrf.mxu0
      %v1443 = vadd.f32 0.0, %v1442
      %1444 = vmatmul.f32.gmra.mxu0 %v1359
      %v1445 = vpop.f32.mrf.mxu0
      %v1446 = vadd.f32 0.0, %v1445
      %1447 = vmatmul.f32.gmra.mxu0 %v1360
      %v1448 = vpop.f32.mrf.mxu0
      %v1449 = vadd.f32 0.0, %v1448
      %1450 = vmatmul.f32.gmra.mxu0 %v1361
      %v1451 = vpop.f32.mrf.mxu0
      %v1452 = vadd.f32 0.0, %v1451
      %1453 = vmatmul.f32.gmra.mxu0 %v1362
      %v1454 = vpop.f32.mrf.mxu0
      %v1455 = vadd.f32 0.0, %v1454
      %1456 = vmatmul.f32.gmra.mxu0 %v1363
      %v1457 = vpop.f32.mrf.mxu0
      %v1458 = vadd.f32 0.0, %v1457
      %1459 = vmatmul.f32.gmra.mxu0 %v1364
      %v1460 = vpop.f32.mrf.mxu0
      %v1461 = vadd.f32 0.0, %v1460
      %1462 = vmatmul.f32.gmra.mxu0 %v1365
      %v1463 = vpop.f32.mrf.mxu0
      %v1464 = vadd.f32 0.0, %v1463
      %1465 = vmatmul.f32.gmra.mxu0 %v1366
      %v1466 = vpop.f32.mrf.mxu0
      %v1467 = vadd.f32 0.0, %v1466
      %1468 = vmatmul.f32.gmra.mxu0 %v1367
      %v1469 = vpop.f32.mrf.mxu0
      %v1470 = vadd.f32 0.0, %v1469
      %1471 = vmatmul.f32.gmra.mxu0 %v1368
      %v1472 = vpop.f32.mrf.mxu0
      %v1473 = vadd.f32 0.0, %v1472
      %1474 = vmatmul.f32.gmra.mxu0 %v1369
      %v1475 = vpop.f32.mrf.mxu0
      %v1476 = vadd.f32 0.0, %v1475
      %1477 = vmatmul.f32.gmra.mxu0 %v1370
      %v1478 = vpop.f32.mrf.mxu0
      %v1479 = vadd.f32 0.0, %v1478
      %1480 = vmatmul.f32.gmra.mxu0 %v1371
      %v1481 = vpop.f32.mrf.mxu0
      %v1482 = vadd.f32 0.0, %v1481
      %1483 = vmatmul.f32.gmra.mxu0 %v1372
      %v1484 = vpop.f32.mrf.mxu0
      %v1485 = vadd.f32 0.0, %v1484
      %1486 = vmatmul.f32.gmra.mxu0 %v1373
      %v1487 = vpop.f32.mrf.mxu0
      %v1488 = vadd.f32 0.0, %v1487
      %1489 = vmatmul.f32.gmra.mxu0 %v1374
      %v1490 = vpop.f32.mrf.mxu0
      %v1491 = vadd.f32 0.0, %v1490
      %1492 = vmatmul.f32.gmra.mxu0 %v1375
      %v1493 = vpop.f32.mrf.mxu0
      %v1494 = vadd.f32 0.0, %v1493
      %1495 = vmatmul.f32.gmra.mxu0 %v1376
      %v1496 = vpop.f32.mrf.mxu0
      %v1497 = vadd.f32 0.0, %v1496
      %1498 = vmatmul.f32.gmra.mxu0 %v1377
      %v1499 = vpop.f32.mrf.mxu0
      %v1500 = vadd.f32 0.0, %v1499
      %1501 = vmatmul.f32.gmra.mxu0 %v1378
      %v1502 = vpop.f32.mrf.mxu0
      %v1503 = vadd.f32 0.0, %v1502
      %1504 = vmatmul.f32.gmra.mxu0 %v1379
      %v1505 = vpop.f32.mrf.mxu0
      %v1506 = vadd.f32 0.0, %v1505
      %1507 = vmatmul.f32.gmra.mxu0 %v1380
      %v1508 = vpop.f32.mrf.mxu0
      %v1509 = vadd.f32 0.0, %v1508
      %1510 = vdwg.mxu0
      %v1511 = vadd.f32 %v1317, %v1416
      %v1512 = vadd.f32 %v1318, %v1419
      %v1513 = vadd.f32 %v1319, %v1422
      %v1514 = vadd.f32 %v1320, %v1425
      %v1515 = vadd.f32 %v1321, %v1428
      %v1516 = vadd.f32 %v1322, %v1431
      %v1517 = vadd.f32 %v1323, %v1434
      %v1518 = vadd.f32 %v1324, %v1437
      %v1519 = vadd.f32 %v1325, %v1440
      %v1520 = vadd.f32 %v1326, %v1443
      %v1521 = vadd.f32 %v1327, %v1446
      %v1522 = vadd.f32 %v1328, %v1449
      %v1523 = vadd.f32 %v1329, %v1452
      %v1524 = vadd.f32 %v1330, %v1455
      %v1525 = vadd.f32 %v1331, %v1458
      %v1526 = vadd.f32 %v1332, %v1461
      %v1527 = vadd.f32 %v1333, %v1464
      %v1528 = vadd.f32 %v1334, %v1467
      %v1529 = vadd.f32 %v1335, %v1470
      %v1530 = vadd.f32 %v1336, %v1473
      %v1531 = vadd.f32 %v1337, %v1476
      %v1532 = vadd.f32 %v1338, %v1479
      %v1533 = vadd.f32 %v1339, %v1482
      %v1534 = vadd.f32 %v1340, %v1485
      %v1535 = vadd.f32 %v1341, %v1488
      %v1536 = vadd.f32 %v1342, %v1491
      %v1537 = vadd.f32 %v1343, %v1494
      %v1538 = vadd.f32 %v1344, %v1497
      %v1539 = vadd.f32 %v1345, %v1500
      %v1540 = vadd.f32 %v1346, %v1503
      %v1541 = vadd.f32 %v1347, %v1506
      %v1542 = vadd.f32 %v1348, %v1509
      %s1543 = scalar_lea.vmem [#allocation2], 48
      %v1544 = vld [vmem:[%s1543] sm:$0xff]
      %v1545 = vld [vmem:[%s1543 + $0x8] sm:$0xff]
      %v1546 = vld [vmem:[%s1543 + $0x18] sm:$0xff]
      %v1547 = vld [vmem:[%s1543 + $0x20] sm:$0xff]
      %v1548 = vld [vmem:[%s1543 + $0x30] sm:$0xff]
      %v1549 = vld [vmem:[%s1543 + $0x38] sm:$0xff]
      %v1550 = vld [vmem:[%s1543 + $0x48] sm:$0xff]
      %v1551 = vld [vmem:[%s1543 + $0x50] sm:$0xff]
      %v1552 = vld [vmem:[%s1543 + $0x60] sm:$0xff]
      %v1553 = vld [vmem:[%s1543 + $0x68] sm:$0xff]
      %v1554 = vld [vmem:[%s1543 + $0x78] sm:$0xff]
      %v1555 = vld [vmem:[%s1543 + $0x80] sm:$0xff]
      %v1556 = vld [vmem:[%s1543 + $0x90] sm:$0xff]
      %v1557 = vld [vmem:[%s1543 + $0x98] sm:$0xff]
      %v1558 = vld [vmem:[%s1543 + $0xa8] sm:$0xff]
      %v1559 = vld [vmem:[%s1543 + $0xb0] sm:$0xff]
      %v1560 = vld [vmem:[%s1543 + $0xc0] sm:$0xff]
      %v1561 = vld [vmem:[%s1543 + $0xc8] sm:$0xff]
      %v1562 = vld [vmem:[%s1543 + $0xd8] sm:$0xff]
      %v1563 = vld [vmem:[%s1543 + $0xe0] sm:$0xff]
      %v1564 = vld [vmem:[%s1543 + $0xf0] sm:$0xff]
      %v1565 = vld [vmem:[%s1543 + $0xf8] sm:$0xff]
      %v1566 = vld [vmem:[%s1543 + $0x108] sm:$0xff]
      %v1567 = vld [vmem:[%s1543 + $0x110] sm:$0xff]
      %v1568 = vld [vmem:[%s1543 + $0x120] sm:$0xff]
      %v1569 = vld [vmem:[%s1543 + $0x128] sm:$0xff]
      %v1570 = vld [vmem:[%s1543 + $0x138] sm:$0xff]
      %v1571 = vld [vmem:[%s1543 + $0x140] sm:$0xff]
      %v1572 = vld [vmem:[%s1543 + $0x150] sm:$0xff]
      %v1573 = vld [vmem:[%s1543 + $0x158] sm:$0xff]
      %v1574 = vld [vmem:[%s1543 + $0x168] sm:$0xff]
      %v1575 = vld [vmem:[%s1543 + $0x170] sm:$0xff]
      %s1576 = scalar_lea.vmem %s3, 768
      %v1577 = vld [vmem:[%s1576] sm:$0xff]
      %v1578 = vld [vmem:[%s1576 + $0x8] sm:$0xff]
      %v1579 = vld [vmem:[%s1576 + $0x10] sm:$0xff]
      %v1580 = vld [vmem:[%s1576 + $0x18] sm:$0xff]
      %v1581 = vld [vmem:[%s1576 + $0x20] sm:$0xff]
      %v1582 = vld [vmem:[%s1576 + $0x28] sm:$0xff]
      %v1583 = vld [vmem:[%s1576 + $0x30] sm:$0xff]
      %v1584 = vld [vmem:[%s1576 + $0x38] sm:$0xff]
      %v1585 = vld [vmem:[%s1576 + $0x40] sm:$0xff]
      %v1586 = vld [vmem:[%s1576 + $0x48] sm:$0xff]
      %v1587 = vld [vmem:[%s1576 + $0x50] sm:$0xff]
      %v1588 = vld [vmem:[%s1576 + $0x58] sm:$0xff]
      %v1589 = vld [vmem:[%s1576 + $0x60] sm:$0xff]
      %v1590 = vld [vmem:[%s1576 + $0x68] sm:$0xff]
      %v1591 = vld [vmem:[%s1576 + $0x70] sm:$0xff]
      %v1592 = vld [vmem:[%s1576 + $0x78] sm:$0xff]
      %1593 = vmatpush.msra.mxu0 %v1592
      %1594 = vmatpush.msra.mxu0 %v1591
      %1595 = vmatpush.msra.mxu0 %v1590
      %1596 = vmatpush.msra.mxu0 %v1589
      %1597 = vmatpush.msra.mxu0 %v1588
      %1598 = vmatpush.msra.mxu0 %v1587
      %1599 = vmatpush.msra.mxu0 %v1586
      %1600 = vmatpush.msra.mxu0 %v1585
      %1601 = vmatpush.msra.mxu0 %v1584
      %1602 = vmatpush.msra.mxu0 %v1583
      %1603 = vmatpush.msra.mxu0 %v1582
      %1604 = vmatpush.msra.mxu0 %v1581
      %1605 = vmatpush.msra.mxu0 %v1580
      %1606 = vmatpush.msra.mxu0 %v1579
      %1607 = vmatpush.msra.mxu0 %v1578
      %1608 = vmatpush.msra.mxu0 %v1577
      %1609 = vmatmul.f32.gmra.mxu0 %v1544
      %v1610 = vpop.f32.mrf.mxu0
      %v1611 = vadd.f32 0.0, %v1610
      %1612 = vmatmul.f32.gmra.mxu0 %v1545
      %v1613 = vpop.f32.mrf.mxu0
      %v1614 = vadd.f32 0.0, %v1613
      %1615 = vmatmul.f32.gmra.mxu0 %v1546
      %v1616 = vpop.f32.mrf.mxu0
      %v1617 = vadd.f32 0.0, %v1616
      %1618 = vmatmul.f32.gmra.mxu0 %v1547
      %v1619 = vpop.f32.mrf.mxu0
      %v1620 = vadd.f32 0.0, %v1619
      %1621 = vmatmul.f32.gmra.mxu0 %v1548
      %v1622 = vpop.f32.mrf.mxu0
      %v1623 = vadd.f32 0.0, %v1622
      %1624 = vmatmul.f32.gmra.mxu0 %v1549
      %v1625 = vpop.f32.mrf.mxu0
      %v1626 = vadd.f32 0.0, %v1625
      %1627 = vmatmul.f32.gmra.mxu0 %v1550
      %v1628 = vpop.f32.mrf.mxu0
      %v1629 = vadd.f32 0.0, %v1628
      %1630 = vmatmul.f32.gmra.mxu0 %v1551
      %v1631 = vpop.f32.mrf.mxu0
      %v1632 = vadd.f32 0.0, %v1631
      %1633 = vmatmul.f32.gmra.mxu0 %v1552
      %v1634 = vpop.f32.mrf.mxu0
      %v1635 = vadd.f32 0.0, %v1634
      %1636 = vmatmul.f32.gmra.mxu0 %v1553
      %v1637 = vpop.f32.mrf.mxu0
      %v1638 = vadd.f32 0.0, %v1637
      %1639 = vmatmul.f32.gmra.mxu0 %v1554
      %v1640 = vpop.f32.mrf.mxu0
      %v1641 = vadd.f32 0.0, %v1640
      %1642 = vmatmul.f32.gmra.mxu0 %v1555
      %v1643 = vpop.f32.mrf.mxu0
      %v1644 = vadd.f32 0.0, %v1643
      %1645 = vmatmul.f32.gmra.mxu0 %v1556
      %v1646 = vpop.f32.mrf.mxu0
      %v1647 = vadd.f32 0.0, %v1646
      %1648 = vmatmul.f32.gmra.mxu0 %v1557
      %v1649 = vpop.f32.mrf.mxu0
      %v1650 = vadd.f32 0.0, %v1649
      %1651 = vmatmul.f32.gmra.mxu0 %v1558
      %v1652 = vpop.f32.mrf.mxu0
      %v1653 = vadd.f32 0.0, %v1652
      %1654 = vmatmul.f32.gmra.mxu0 %v1559
      %v1655 = vpop.f32.mrf.mxu0
      %v1656 = vadd.f32 0.0, %v1655
      %1657 = vmatmul.f32.gmra.mxu0 %v1560
      %v1658 = vpop.f32.mrf.mxu0
      %v1659 = vadd.f32 0.0, %v1658
      %1660 = vmatmul.f32.gmra.mxu0 %v1561
      %v1661 = vpop.f32.mrf.mxu0
      %v1662 = vadd.f32 0.0, %v1661
      %1663 = vmatmul.f32.gmra.mxu0 %v1562
      %v1664 = vpop.f32.mrf.mxu0
      %v1665 = vadd.f32 0.0, %v1664
      %1666 = vmatmul.f32.gmra.mxu0 %v1563
      %v1667 = vpop.f32.mrf.mxu0
      %v1668 = vadd.f32 0.0, %v1667
      %1669 = vmatmul.f32.gmra.mxu0 %v1564
      %v1670 = vpop.f32.mrf.mxu0
      %v1671 = vadd.f32 0.0, %v1670
      %1672 = vmatmul.f32.gmra.mxu0 %v1565
      %v1673 = vpop.f32.mrf.mxu0
      %v1674 = vadd.f32 0.0, %v1673
      %1675 = vmatmul.f32.gmra.mxu0 %v1566
      %v1676 = vpop.f32.mrf.mxu0
      %v1677 = vadd.f32 0.0, %v1676
      %1678 = vmatmul.f32.gmra.mxu0 %v1567
      %v1679 = vpop.f32.mrf.mxu0
      %v1680 = vadd.f32 0.0, %v1679
      %1681 = vmatmul.f32.gmra.mxu0 %v1568
      %v1682 = vpop.f32.mrf.mxu0
      %v1683 = vadd.f32 0.0, %v1682
      %1684 = vmatmul.f32.gmra.mxu0 %v1569
      %v1685 = vpop.f32.mrf.mxu0
      %v1686 = vadd.f32 0.0, %v1685
      %1687 = vmatmul.f32.gmra.mxu0 %v1570
      %v1688 = vpop.f32.mrf.mxu0
      %v1689 = vadd.f32 0.0, %v1688
      %1690 = vmatmul.f32.gmra.mxu0 %v1571
      %v1691 = vpop.f32.mrf.mxu0
      %v1692 = vadd.f32 0.0, %v1691
      %1693 = vmatmul.f32.gmra.mxu0 %v1572
      %v1694 = vpop.f32.mrf.mxu0
      %v1695 = vadd.f32 0.0, %v1694
      %1696 = vmatmul.f32.gmra.mxu0 %v1573
      %v1697 = vpop.f32.mrf.mxu0
      %v1698 = vadd.f32 0.0, %v1697
      %1699 = vmatmul.f32.gmra.mxu0 %v1574
      %v1700 = vpop.f32.mrf.mxu0
      %v1701 = vadd.f32 0.0, %v1700
      %1702 = vmatmul.f32.gmra.mxu0 %v1575
      %v1703 = vpop.f32.mrf.mxu0
      %v1704 = vadd.f32 0.0, %v1703
      %1705 = vdwg.mxu0
      %v1706 = vadd.f32 %v1511, %v1611
      %v1707 = vadd.f32 %v1512, %v1614
      %v1708 = vadd.f32 %v1513, %v1617
      %v1709 = vadd.f32 %v1514, %v1620
      %v1710 = vadd.f32 %v1515, %v1623
      %v1711 = vadd.f32 %v1516, %v1626
      %v1712 = vadd.f32 %v1517, %v1629
      %v1713 = vadd.f32 %v1518, %v1632
      %v1714 = vadd.f32 %v1519, %v1635
      %v1715 = vadd.f32 %v1520, %v1638
      %v1716 = vadd.f32 %v1521, %v1641
      %v1717 = vadd.f32 %v1522, %v1644
      %v1718 = vadd.f32 %v1523, %v1647
      %v1719 = vadd.f32 %v1524, %v1650
      %v1720 = vadd.f32 %v1525, %v1653
      %v1721 = vadd.f32 %v1526, %v1656
      %v1722 = vadd.f32 %v1527, %v1659
      %v1723 = vadd.f32 %v1528, %v1662
      %v1724 = vadd.f32 %v1529, %v1665
      %v1725 = vadd.f32 %v1530, %v1668
      %v1726 = vadd.f32 %v1531, %v1671
      %v1727 = vadd.f32 %v1532, %v1674
      %v1728 = vadd.f32 %v1533, %v1677
      %v1729 = vadd.f32 %v1534, %v1680
      %v1730 = vadd.f32 %v1535, %v1683
      %v1731 = vadd.f32 %v1536, %v1686
      %v1732 = vadd.f32 %v1537, %v1689
      %v1733 = vadd.f32 %v1538, %v1692
      %v1734 = vadd.f32 %v1539, %v1695
      %v1735 = vadd.f32 %v1540, %v1698
      %v1736 = vadd.f32 %v1541, %v1701
      %v1737 = vadd.f32 %v1542, %v1704
      %v1738 = vld [vmem:[%s1543 + $0x1] sm:$0xff]
      %v1739 = vld [vmem:[%s1543 + $0x9] sm:$0xff]
      %v1740 = vld [vmem:[%s1543 + $0x19] sm:$0xff]
      %v1741 = vld [vmem:[%s1543 + $0x21] sm:$0xff]
      %v1742 = vld [vmem:[%s1543 + $0x31] sm:$0xff]
      %v1743 = vld [vmem:[%s1543 + $0x39] sm:$0xff]
      %v1744 = vld [vmem:[%s1543 + $0x49] sm:$0xff]
      %v1745 = vld [vmem:[%s1543 + $0x51] sm:$0xff]
      %v1746 = vld [vmem:[%s1543 + $0x61] sm:$0xff]
      %v1747 = vld [vmem:[%s1543 + $0x69] sm:$0xff]
      %v1748 = vld [vmem:[%s1543 + $0x79] sm:$0xff]
      %v1749 = vld [vmem:[%s1543 + $0x81] sm:$0xff]
      %v1750 = vld [vmem:[%s1543 + $0x91] sm:$0xff]
      %v1751 = vld [vmem:[%s1543 + $0x99] sm:$0xff]
      %v1752 = vld [vmem:[%s1543 + $0xa9] sm:$0xff]
      %v1753 = vld [vmem:[%s1543 + $0xb1] sm:$0xff]
      %v1754 = vld [vmem:[%s1543 + $0xc1] sm:$0xff]
      %v1755 = vld [vmem:[%s1543 + $0xc9] sm:$0xff]
      %v1756 = vld [vmem:[%s1543 + $0xd9] sm:$0xff]
      %v1757 = vld [vmem:[%s1543 + $0xe1] sm:$0xff]
      %v1758 = vld [vmem:[%s1543 + $0xf1] sm:$0xff]
      %v1759 = vld [vmem:[%s1543 + $0xf9] sm:$0xff]
      %v1760 = vld [vmem:[%s1543 + $0x109] sm:$0xff]
      %v1761 = vld [vmem:[%s1543 + $0x111] sm:$0xff]
      %v1762 = vld [vmem:[%s1543 + $0x121] sm:$0xff]
      %v1763 = vld [vmem:[%s1543 + $0x129] sm:$0xff]
      %v1764 = vld [vmem:[%s1543 + $0x139] sm:$0xff]
      %v1765 = vld [vmem:[%s1543 + $0x141] sm:$0xff]
      %v1766 = vld [vmem:[%s1543 + $0x151] sm:$0xff]
      %v1767 = vld [vmem:[%s1543 + $0x159] sm:$0xff]
      %v1768 = vld [vmem:[%s1543 + $0x169] sm:$0xff]
      %v1769 = vld [vmem:[%s1543 + $0x171] sm:$0xff]
      %s1770 = scalar_lea.vmem %s3, 896
      %v1771 = vld [vmem:[%s1770] sm:$0xff]
      %v1772 = vld [vmem:[%s1770 + $0x8] sm:$0xff]
      %v1773 = vld [vmem:[%s1770 + $0x10] sm:$0xff]
      %v1774 = vld [vmem:[%s1770 + $0x18] sm:$0xff]
      %v1775 = vld [vmem:[%s1770 + $0x20] sm:$0xff]
      %v1776 = vld [vmem:[%s1770 + $0x28] sm:$0xff]
      %v1777 = vld [vmem:[%s1770 + $0x30] sm:$0xff]
      %v1778 = vld [vmem:[%s1770 + $0x38] sm:$0xff]
      %v1779 = vld [vmem:[%s1770 + $0x40] sm:$0xff]
      %v1780 = vld [vmem:[%s1770 + $0x48] sm:$0xff]
      %v1781 = vld [vmem:[%s1770 + $0x50] sm:$0xff]
      %v1782 = vld [vmem:[%s1770 + $0x58] sm:$0xff]
      %v1783 = vld [vmem:[%s1770 + $0x60] sm:$0xff]
      %v1784 = vld [vmem:[%s1770 + $0x68] sm:$0xff]
      %v1785 = vld [vmem:[%s1770 + $0x70] sm:$0xff]
      %v1786 = vld [vmem:[%s1770 + $0x78] sm:$0xff]
      %1787 = vmatpush.msra.mxu0 %v1786
      %1788 = vmatpush.msra.mxu0 %v1785
      %1789 = vmatpush.msra.mxu0 %v1784
      %1790 = vmatpush.msra.mxu0 %v1783
      %1791 = vmatpush.msra.mxu0 %v1782
      %1792 = vmatpush.msra.mxu0 %v1781
      %1793 = vmatpush.msra.mxu0 %v1780
      %1794 = vmatpush.msra.mxu0 %v1779
      %1795 = vmatpush.msra.mxu0 %v1778
      %1796 = vmatpush.msra.mxu0 %v1777
      %1797 = vmatpush.msra.mxu0 %v1776
      %1798 = vmatpush.msra.mxu0 %v1775
      %1799 = vmatpush.msra.mxu0 %v1774
      %1800 = vmatpush.msra.mxu0 %v1773
      %1801 = vmatpush.msra.mxu0 %v1772
      %1802 = vmatpush.msra.mxu0 %v1771
      %1803 = vmatmul.f32.gmra.mxu0 %v1738
      %v1804 = vpop.f32.mrf.mxu0
      %v1805 = vadd.f32 0.0, %v1804
      %1806 = vmatmul.f32.gmra.mxu0 %v1739
      %v1807 = vpop.f32.mrf.mxu0
      %v1808 = vadd.f32 0.0, %v1807
      %1809 = vmatmul.f32.gmra.mxu0 %v1740
      %v1810 = vpop.f32.mrf.mxu0
      %v1811 = vadd.f32 0.0, %v1810
      %1812 = vmatmul.f32.gmra.mxu0 %v1741
      %v1813 = vpop.f32.mrf.mxu0
      %v1814 = vadd.f32 0.0, %v1813
      %1815 = vmatmul.f32.gmra.mxu0 %v1742
      %v1816 = vpop.f32.mrf.mxu0
      %v1817 = vadd.f32 0.0, %v1816
      %1818 = vmatmul.f32.gmra.mxu0 %v1743
      %v1819 = vpop.f32.mrf.mxu0
      %v1820 = vadd.f32 0.0, %v1819
      %1821 = vmatmul.f32.gmra.mxu0 %v1744
      %v1822 = vpop.f32.mrf.mxu0
      %v1823 = vadd.f32 0.0, %v1822
      %1824 = vmatmul.f32.gmra.mxu0 %v1745
      %v1825 = vpop.f32.mrf.mxu0
      %v1826 = vadd.f32 0.0, %v1825
      %1827 = vmatmul.f32.gmra.mxu0 %v1746
      %v1828 = vpop.f32.mrf.mxu0
      %v1829 = vadd.f32 0.0, %v1828
      %1830 = vmatmul.f32.gmra.mxu0 %v1747
      %v1831 = vpop.f32.mrf.mxu0
      %v1832 = vadd.f32 0.0, %v1831
      %1833 = vmatmul.f32.gmra.mxu0 %v1748
      %v1834 = vpop.f32.mrf.mxu0
      %v1835 = vadd.f32 0.0, %v1834
      %1836 = vmatmul.f32.gmra.mxu0 %v1749
      %v1837 = vpop.f32.mrf.mxu0
      %v1838 = vadd.f32 0.0, %v1837
      %1839 = vmatmul.f32.gmra.mxu0 %v1750
      %v1840 = vpop.f32.mrf.mxu0
      %v1841 = vadd.f32 0.0, %v1840
      %1842 = vmatmul.f32.gmra.mxu0 %v1751
      %v1843 = vpop.f32.mrf.mxu0
      %v1844 = vadd.f32 0.0, %v1843
      %1845 = vmatmul.f32.gmra.mxu0 %v1752
      %v1846 = vpop.f32.mrf.mxu0
      %v1847 = vadd.f32 0.0, %v1846
      %1848 = vmatmul.f32.gmra.mxu0 %v1753
      %v1849 = vpop.f32.mrf.mxu0
      %v1850 = vadd.f32 0.0, %v1849
      %1851 = vmatmul.f32.gmra.mxu0 %v1754
      %v1852 = vpop.f32.mrf.mxu0
      %v1853 = vadd.f32 0.0, %v1852
      %1854 = vmatmul.f32.gmra.mxu0 %v1755
      %v1855 = vpop.f32.mrf.mxu0
      %v1856 = vadd.f32 0.0, %v1855
      %1857 = vmatmul.f32.gmra.mxu0 %v1756
      %v1858 = vpop.f32.mrf.mxu0
      %v1859 = vadd.f32 0.0, %v1858
      %1860 = vmatmul.f32.gmra.mxu0 %v1757
      %v1861 = vpop.f32.mrf.mxu0
      %v1862 = vadd.f32 0.0, %v1861
      %1863 = vmatmul.f32.gmra.mxu0 %v1758
      %v1864 = vpop.f32.mrf.mxu0
      %v1865 = vadd.f32 0.0, %v1864
      %1866 = vmatmul.f32.gmra.mxu0 %v1759
      %v1867 = vpop.f32.mrf.mxu0
      %v1868 = vadd.f32 0.0, %v1867
      %1869 = vmatmul.f32.gmra.mxu0 %v1760
      %v1870 = vpop.f32.mrf.mxu0
      %v1871 = vadd.f32 0.0, %v1870
      %1872 = vmatmul.f32.gmra.mxu0 %v1761
      %v1873 = vpop.f32.mrf.mxu0
      %v1874 = vadd.f32 0.0, %v1873
      %1875 = vmatmul.f32.gmra.mxu0 %v1762
      %v1876 = vpop.f32.mrf.mxu0
      %v1877 = vadd.f32 0.0, %v1876
      %1878 = vmatmul.f32.gmra.mxu0 %v1763
      %v1879 = vpop.f32.mrf.mxu0
      %v1880 = vadd.f32 0.0, %v1879
      %1881 = vmatmul.f32.gmra.mxu0 %v1764
      %v1882 = vpop.f32.mrf.mxu0
      %v1883 = vadd.f32 0.0, %v1882
      %1884 = vmatmul.f32.gmra.mxu0 %v1765
      %v1885 = vpop.f32.mrf.mxu0
      %v1886 = vadd.f32 0.0, %v1885
      %1887 = vmatmul.f32.gmra.mxu0 %v1766
      %v1888 = vpop.f32.mrf.mxu0
      %v1889 = vadd.f32 0.0, %v1888
      %1890 = vmatmul.f32.gmra.mxu0 %v1767
      %v1891 = vpop.f32.mrf.mxu0
      %v1892 = vadd.f32 0.0, %v1891
      %1893 = vmatmul.f32.gmra.mxu0 %v1768
      %v1894 = vpop.f32.mrf.mxu0
      %v1895 = vadd.f32 0.0, %v1894
      %1896 = vmatmul.f32.gmra.mxu0 %v1769
      %v1897 = vpop.f32.mrf.mxu0
      %v1898 = vadd.f32 0.0, %v1897
      %1899 = vdwg.mxu0
      %v1900 = vadd.f32 %v1706, %v1805
      %v1901 = vadd.f32 %v1707, %v1808
      %v1902 = vadd.f32 %v1708, %v1811
      %v1903 = vadd.f32 %v1709, %v1814
      %v1904 = vadd.f32 %v1710, %v1817
      %v1905 = vadd.f32 %v1711, %v1820
      %v1906 = vadd.f32 %v1712, %v1823
      %v1907 = vadd.f32 %v1713, %v1826
      %v1908 = vadd.f32 %v1714, %v1829
      %v1909 = vadd.f32 %v1715, %v1832
      %v1910 = vadd.f32 %v1716, %v1835
      %v1911 = vadd.f32 %v1717, %v1838
      %v1912 = vadd.f32 %v1718, %v1841
      %v1913 = vadd.f32 %v1719, %v1844
      %v1914 = vadd.f32 %v1720, %v1847
      %v1915 = vadd.f32 %v1721, %v1850
      %v1916 = vadd.f32 %v1722, %v1853
      %v1917 = vadd.f32 %v1723, %v1856
      %v1918 = vadd.f32 %v1724, %v1859
      %v1919 = vadd.f32 %v1725, %v1862
      %v1920 = vadd.f32 %v1726, %v1865
      %v1921 = vadd.f32 %v1727, %v1868
      %v1922 = vadd.f32 %v1728, %v1871
      %v1923 = vadd.f32 %v1729, %v1874
      %v1924 = vadd.f32 %v1730, %v1877
      %v1925 = vadd.f32 %v1731, %v1880
      %v1926 = vadd.f32 %v1732, %v1883
      %v1927 = vadd.f32 %v1733, %v1886
      %v1928 = vadd.f32 %v1734, %v1889
      %v1929 = vadd.f32 %v1735, %v1892
      %v1930 = vadd.f32 %v1736, %v1895
      %v1931 = vadd.f32 %v1737, %v1898
      %v1932 = vld [vmem:[%s1543 + $0x2] sm:$0xff]
      %v1933 = vld [vmem:[%s1543 + $0xa] sm:$0xff]
      %v1934 = vld [vmem:[%s1543 + $0x1a] sm:$0xff]
      %v1935 = vld [vmem:[%s1543 + $0x22] sm:$0xff]
      %v1936 = vld [vmem:[%s1543 + $0x32] sm:$0xff]
      %v1937 = vld [vmem:[%s1543 + $0x3a] sm:$0xff]
      %v1938 = vld [vmem:[%s1543 + $0x4a] sm:$0xff]
      %v1939 = vld [vmem:[%s1543 + $0x52] sm:$0xff]
      %v1940 = vld [vmem:[%s1543 + $0x62] sm:$0xff]
      %v1941 = vld [vmem:[%s1543 + $0x6a] sm:$0xff]
      %v1942 = vld [vmem:[%s1543 + $0x7a] sm:$0xff]
      %v1943 = vld [vmem:[%s1543 + $0x82] sm:$0xff]
      %v1944 = vld [vmem:[%s1543 + $0x92] sm:$0xff]
      %v1945 = vld [vmem:[%s1543 + $0x9a] sm:$0xff]
      %v1946 = vld [vmem:[%s1543 + $0xaa] sm:$0xff]
      %v1947 = vld [vmem:[%s1543 + $0xb2] sm:$0xff]
      %v1948 = vld [vmem:[%s1543 + $0xc2] sm:$0xff]
      %v1949 = vld [vmem:[%s1543 + $0xca] sm:$0xff]
      %v1950 = vld [vmem:[%s1543 + $0xda] sm:$0xff]
      %v1951 = vld [vmem:[%s1543 + $0xe2] sm:$0xff]
      %v1952 = vld [vmem:[%s1543 + $0xf2] sm:$0xff]
      %v1953 = vld [vmem:[%s1543 + $0xfa] sm:$0xff]
      %v1954 = vld [vmem:[%s1543 + $0x10a] sm:$0xff]
      %v1955 = vld [vmem:[%s1543 + $0x112] sm:$0xff]
      %v1956 = vld [vmem:[%s1543 + $0x122] sm:$0xff]
      %v1957 = vld [vmem:[%s1543 + $0x12a] sm:$0xff]
      %v1958 = vld [vmem:[%s1543 + $0x13a] sm:$0xff]
      %v1959 = vld [vmem:[%s1543 + $0x142] sm:$0xff]
      %v1960 = vld [vmem:[%s1543 + $0x152] sm:$0xff]
      %v1961 = vld [vmem:[%s1543 + $0x15a] sm:$0xff]
      %v1962 = vld [vmem:[%s1543 + $0x16a] sm:$0xff]
      %v1963 = vld [vmem:[%s1543 + $0x172] sm:$0xff]
      %s1964 = scalar_lea.vmem %s3, 1024
      %v1965 = vld [vmem:[%s1964] sm:$0xff]
      %v1966 = vld [vmem:[%s1964 + $0x8] sm:$0xff]
      %v1967 = vld [vmem:[%s1964 + $0x10] sm:$0xff]
      %v1968 = vld [vmem:[%s1964 + $0x18] sm:$0xff]
      %v1969 = vld [vmem:[%s1964 + $0x20] sm:$0xff]
      %v1970 = vld [vmem:[%s1964 + $0x28] sm:$0xff]
      %v1971 = vld [vmem:[%s1964 + $0x30] sm:$0xff]
      %v1972 = vld [vmem:[%s1964 + $0x38] sm:$0xff]
      %v1973 = vld [vmem:[%s1964 + $0x40] sm:$0xff]
      %v1974 = vld [vmem:[%s1964 + $0x48] sm:$0xff]
      %v1975 = vld [vmem:[%s1964 + $0x50] sm:$0xff]
      %v1976 = vld [vmem:[%s1964 + $0x58] sm:$0xff]
      %v1977 = vld [vmem:[%s1964 + $0x60] sm:$0xff]
      %v1978 = vld [vmem:[%s1964 + $0x68] sm:$0xff]
      %v1979 = vld [vmem:[%s1964 + $0x70] sm:$0xff]
      %v1980 = vld [vmem:[%s1964 + $0x78] sm:$0xff]
      %1981 = vmatpush.msra.mxu0 %v1980
      %1982 = vmatpush.msra.mxu0 %v1979
      %1983 = vmatpush.msra.mxu0 %v1978
      %1984 = vmatpush.msra.mxu0 %v1977
      %1985 = vmatpush.msra.mxu0 %v1976
      %1986 = vmatpush.msra.mxu0 %v1975
      %1987 = vmatpush.msra.mxu0 %v1974
      %1988 = vmatpush.msra.mxu0 %v1973
      %1989 = vmatpush.msra.mxu0 %v1972
      %1990 = vmatpush.msra.mxu0 %v1971
      %1991 = vmatpush.msra.mxu0 %v1970
      %1992 = vmatpush.msra.mxu0 %v1969
      %1993 = vmatpush.msra.mxu0 %v1968
      %1994 = vmatpush.msra.mxu0 %v1967
      %1995 = vmatpush.msra.mxu0 %v1966
      %1996 = vmatpush.msra.mxu0 %v1965
      %1997 = vmatmul.f32.gmra.mxu0 %v1932
      %v1998 = vpop.f32.mrf.mxu0
      %v1999 = vadd.f32 0.0, %v1998
      %2000 = vmatmul.f32.gmra.mxu0 %v1933
      %v2001 = vpop.f32.mrf.mxu0
      %v2002 = vadd.f32 0.0, %v2001
      %2003 = vmatmul.f32.gmra.mxu0 %v1934
      %v2004 = vpop.f32.mrf.mxu0
      %v2005 = vadd.f32 0.0, %v2004
      %2006 = vmatmul.f32.gmra.mxu0 %v1935
      %v2007 = vpop.f32.mrf.mxu0
      %v2008 = vadd.f32 0.0, %v2007
      %2009 = vmatmul.f32.gmra.mxu0 %v1936
      %v2010 = vpop.f32.mrf.mxu0
      %v2011 = vadd.f32 0.0, %v2010
      %2012 = vmatmul.f32.gmra.mxu0 %v1937
      %v2013 = vpop.f32.mrf.mxu0
      %v2014 = vadd.f32 0.0, %v2013
      %2015 = vmatmul.f32.gmra.mxu0 %v1938
      %v2016 = vpop.f32.mrf.mxu0
      %v2017 = vadd.f32 0.0, %v2016
      %2018 = vmatmul.f32.gmra.mxu0 %v1939
      %v2019 = vpop.f32.mrf.mxu0
      %v2020 = vadd.f32 0.0, %v2019
      %2021 = vmatmul.f32.gmra.mxu0 %v1940
      %v2022 = vpop.f32.mrf.mxu0
      %v2023 = vadd.f32 0.0, %v2022
      %2024 = vmatmul.f32.gmra.mxu0 %v1941
      %v2025 = vpop.f32.mrf.mxu0
      %v2026 = vadd.f32 0.0, %v2025
      %2027 = vmatmul.f32.gmra.mxu0 %v1942
      %v2028 = vpop.f32.mrf.mxu0
      %v2029 = vadd.f32 0.0, %v2028
      %2030 = vmatmul.f32.gmra.mxu0 %v1943
      %v2031 = vpop.f32.mrf.mxu0
      %v2032 = vadd.f32 0.0, %v2031
      %2033 = vmatmul.f32.gmra.mxu0 %v1944
      %v2034 = vpop.f32.mrf.mxu0
      %v2035 = vadd.f32 0.0, %v2034
      %2036 = vmatmul.f32.gmra.mxu0 %v1945
      %v2037 = vpop.f32.mrf.mxu0
      %v2038 = vadd.f32 0.0, %v2037
      %2039 = vmatmul.f32.gmra.mxu0 %v1946
      %v2040 = vpop.f32.mrf.mxu0
      %v2041 = vadd.f32 0.0, %v2040
      %2042 = vmatmul.f32.gmra.mxu0 %v1947
      %v2043 = vpop.f32.mrf.mxu0
      %v2044 = vadd.f32 0.0, %v2043
      %2045 = vmatmul.f32.gmra.mxu0 %v1948
      %v2046 = vpop.f32.mrf.mxu0
      %v2047 = vadd.f32 0.0, %v2046
      %2048 = vmatmul.f32.gmra.mxu0 %v1949
      %v2049 = vpop.f32.mrf.mxu0
      %v2050 = vadd.f32 0.0, %v2049
      %2051 = vmatmul.f32.gmra.mxu0 %v1950
      %v2052 = vpop.f32.mrf.mxu0
      %v2053 = vadd.f32 0.0, %v2052
      %2054 = vmatmul.f32.gmra.mxu0 %v1951
      %v2055 = vpop.f32.mrf.mxu0
      %v2056 = vadd.f32 0.0, %v2055
      %2057 = vmatmul.f32.gmra.mxu0 %v1952
      %v2058 = vpop.f32.mrf.mxu0
      %v2059 = vadd.f32 0.0, %v2058
      %2060 = vmatmul.f32.gmra.mxu0 %v1953
      %v2061 = vpop.f32.mrf.mxu0
      %v2062 = vadd.f32 0.0, %v2061
      %2063 = vmatmul.f32.gmra.mxu0 %v1954
      %v2064 = vpop.f32.mrf.mxu0
      %v2065 = vadd.f32 0.0, %v2064
      %2066 = vmatmul.f32.gmra.mxu0 %v1955
      %v2067 = vpop.f32.mrf.mxu0
      %v2068 = vadd.f32 0.0, %v2067
      %2069 = vmatmul.f32.gmra.mxu0 %v1956
      %v2070 = vpop.f32.mrf.mxu0
      %v2071 = vadd.f32 0.0, %v2070
      %2072 = vmatmul.f32.gmra.mxu0 %v1957
      %v2073 = vpop.f32.mrf.mxu0
      %v2074 = vadd.f32 0.0, %v2073
      %2075 = vmatmul.f32.gmra.mxu0 %v1958
      %v2076 = vpop.f32.mrf.mxu0
      %v2077 = vadd.f32 0.0, %v2076
      %2078 = vmatmul.f32.gmra.mxu0 %v1959
      %v2079 = vpop.f32.mrf.mxu0
      %v2080 = vadd.f32 0.0, %v2079
      %2081 = vmatmul.f32.gmra.mxu0 %v1960
      %v2082 = vpop.f32.mrf.mxu0
      %v2083 = vadd.f32 0.0, %v2082
      %2084 = vmatmul.f32.gmra.mxu0 %v1961
      %v2085 = vpop.f32.mrf.mxu0
      %v2086 = vadd.f32 0.0, %v2085
      %2087 = vmatmul.f32.gmra.mxu0 %v1962
      %v2088 = vpop.f32.mrf.mxu0
      %v2089 = vadd.f32 0.0, %v2088
      %2090 = vmatmul.f32.gmra.mxu0 %v1963
      %v2091 = vpop.f32.mrf.mxu0
      %v2092 = vadd.f32 0.0, %v2091
      %2093 = vdwg.mxu0
      %v2094 = vadd.f32 %v1900, %v1999
      %v2095 = vadd.f32 %v1901, %v2002
      %v2096 = vadd.f32 %v1902, %v2005
      %v2097 = vadd.f32 %v1903, %v2008
      %v2098 = vadd.f32 %v1904, %v2011
      %v2099 = vadd.f32 %v1905, %v2014
      %v2100 = vadd.f32 %v1906, %v2017
      %v2101 = vadd.f32 %v1907, %v2020
      %v2102 = vadd.f32 %v1908, %v2023
      %v2103 = vadd.f32 %v1909, %v2026
      %v2104 = vadd.f32 %v1910, %v2029
      %v2105 = vadd.f32 %v1911, %v2032
      %v2106 = vadd.f32 %v1912, %v2035
      %v2107 = vadd.f32 %v1913, %v2038
      %v2108 = vadd.f32 %v1914, %v2041
      %v2109 = vadd.f32 %v1915, %v2044
      %v2110 = vadd.f32 %v1916, %v2047
      %v2111 = vadd.f32 %v1917, %v2050
      %v2112 = vadd.f32 %v1918, %v2053
      %v2113 = vadd.f32 %v1919, %v2056
      %v2114 = vadd.f32 %v1920, %v2059
      %v2115 = vadd.f32 %v1921, %v2062
      %v2116 = vadd.f32 %v1922, %v2065
      %v2117 = vadd.f32 %v1923, %v2068
      %v2118 = vadd.f32 %v1924, %v2071
      %v2119 = vadd.f32 %v1925, %v2074
      %v2120 = vadd.f32 %v1926, %v2077
      %v2121 = vadd.f32 %v1927, %v2080
      %v2122 = vadd.f32 %v1928, %v2083
      %v2123 = vadd.f32 %v1929, %v2086
      %v2124 = vadd.f32 %v1930, %v2089
      %v2125 = vadd.f32 %v1931, %v2092
      %2126 = vst [vmem:[%s231] sm:$0xff] %v2094
      %2127 = vst [vmem:[%s231 + $0x8] sm:$0xff] %v2095
      %2128 = vst [vmem:[%s231 + $0x10] sm:$0xff] %v2096
      %2129 = vst [vmem:[%s231 + $0x18] sm:$0xff] %v2097
      %2130 = vst [vmem:[%s231 + $0x20] sm:$0xff] %v2098
      %2131 = vst [vmem:[%s231 + $0x28] sm:$0xff] %v2099
      %2132 = vst [vmem:[%s231 + $0x30] sm:$0xff] %v2100
      %2133 = vst [vmem:[%s231 + $0x38] sm:$0xff] %v2101
      %2134 = vst [vmem:[%s231 + $0x40] sm:$0xff] %v2102
      %2135 = vst [vmem:[%s231 + $0x48] sm:$0xff] %v2103
      %2136 = vst [vmem:[%s231 + $0x50] sm:$0xff] %v2104
      %2137 = vst [vmem:[%s231 + $0x58] sm:$0xff] %v2105
      %2138 = vst [vmem:[%s231 + $0x60] sm:$0xff] %v2106
      %2139 = vst [vmem:[%s231 + $0x68] sm:$0xff] %v2107
      %2140 = vst [vmem:[%s231 + $0x70] sm:$0xff] %v2108
      %2141 = vst [vmem:[%s231 + $0x78] sm:$0xff] %v2109
      %2142 = vst [vmem:[%s231 + $0x80] sm:$0xff] %v2110
      %2143 = vst [vmem:[%s231 + $0x88] sm:$0xff] %v2111
      %2144 = vst [vmem:[%s231 + $0x90] sm:$0xff] %v2112
      %2145 = vst [vmem:[%s231 + $0x98] sm:$0xff] %v2113
      %2146 = vst [vmem:[%s231 + $0xa0] sm:$0xff] %v2114
      %2147 = vst [vmem:[%s231 + $0xa8] sm:$0xff] %v2115
      %2148 = vst [vmem:[%s231 + $0xb0] sm:$0xff] %v2116
      %2149 = vst [vmem:[%s231 + $0xb8] sm:$0xff] %v2117
      %2150 = vst [vmem:[%s231 + $0xc0] sm:$0xff] %v2118
      %2151 = vst [vmem:[%s231 + $0xc8] sm:$0xff] %v2119
      %2152 = vst [vmem:[%s231 + $0xd0] sm:$0xff] %v2120
      %2153 = vst [vmem:[%s231 + $0xd8] sm:$0xff] %v2121
      %2154 = vst [vmem:[%s231 + $0xe0] sm:$0xff] %v2122
      %2155 = vst [vmem:[%s231 + $0xe8] sm:$0xff] %v2123
      %2156 = vst [vmem:[%s231 + $0xf0] sm:$0xff] %v2124
      %2157 = vst [vmem:[%s231 + $0xf8] sm:$0xff] %v2125
      %v2158 = vadd.f32 %v2094, %v2095
      %v2159 = vadd.f32 %v2158, %v2096
      %v2160 = vadd.f32 %v2159, %v2097
      %v2161 = vadd.f32 %v2160, %v2098
      %v2162 = vadd.f32 %v2161, %v2099
      %v2163 = vadd.f32 %v2162, %v2100
      %v2164 = vadd.f32 %v2163, %v2101
      %v2165 = vadd.f32 %v2164, %v2102
      %v2166 = vadd.f32 %v2165, %v2103
      %v2167 = vadd.f32 %v2166, %v2104
      %v2168 = vadd.f32 %v2167, %v2105
      %v2169 = vadd.f32 %v2168, %v2106
      %v2170 = vadd.f32 %v2169, %v2107
      %v2171 = vadd.f32 %v2170, %v2108
      %v2172 = vadd.f32 %v2171, %v2109
      %v2173 = vadd.f32 %v2172, %v2110
      %v2174 = vadd.f32 %v2173, %v2111
      %v2175 = vadd.f32 %v2174, %v2112
      %v2176 = vadd.f32 %v2175, %v2113
      %v2177 = vadd.f32 %v2176, %v2114
      %v2178 = vadd.f32 %v2177, %v2115
      %v2179 = vadd.f32 %v2178, %v2116
      %v2180 = vadd.f32 %v2179, %v2117
      %v2181 = vadd.f32 %v2180, %v2118
      %v2182 = vadd.f32 %v2181, %v2119
      %v2183 = vadd.f32 %v2182, %v2120
      %v2184 = vadd.f32 %v2183, %v2121
      %v2185 = vadd.f32 %v2184, %v2122
      %v2186 = vadd.f32 %v2185, %v2123
      %v2187 = vadd.f32 %v2186, %v2124
      %v2188 = vadd.f32 %v2187, %v2125
      %v2189 = vrot.slane %v2188, 4
      %v2190 = vadd.f32 %v2188, %v2189
      %v2191 = vrot.slane %v2190, 2
      %v2192 = vadd.f32 %v2190, %v2191
      %v2193 = vrot.slane %v2192, 1
      %v2194 = vadd.f32 %v2192, %v2193
      %2195 = vst [vmem:[%s235] sm:$0x1] %v2194
      %v2196 = vmul.f32 %v2094, %v2094
      %v2197 = vmul.f32 %v2095, %v2095
      %v2198 = vmul.f32 %v2096, %v2096
      %v2199 = vmul.f32 %v2097, %v2097
      %v2200 = vmul.f32 %v2098, %v2098
      %v2201 = vmul.f32 %v2099, %v2099
      %v2202 = vmul.f32 %v2100, %v2100
      %v2203 = vmul.f32 %v2101, %v2101
      %v2204 = vmul.f32 %v2102, %v2102
      %v2205 = vmul.f32 %v2103, %v2103
      %v2206 = vmul.f32 %v2104, %v2104
      %v2207 = vmul.f32 %v2105, %v2105
      %v2208 = vmul.f32 %v2106, %v2106
      %v2209 = vmul.f32 %v2107, %v2107
      %v2210 = vmul.f32 %v2108, %v2108
      %v2211 = vmul.f32 %v2109, %v2109
      %v2212 = vmul.f32 %v2110, %v2110
      %v2213 = vmul.f32 %v2111, %v2111
      %v2214 = vmul.f32 %v2112, %v2112
      %v2215 = vmul.f32 %v2113, %v2113
      %v2216 = vmul.f32 %v2114, %v2114
      %v2217 = vmul.f32 %v2115, %v2115
      %v2218 = vmul.f32 %v2116, %v2116
      %v2219 = vmul.f32 %v2117, %v2117
      %v2220 = vmul.f32 %v2118, %v2118
      %v2221 = vmul.f32 %v2119, %v2119
      %v2222 = vmul.f32 %v2120, %v2120
      %v2223 = vmul.f32 %v2121, %v2121
      %v2224 = vmul.f32 %v2122, %v2122
      %v2225 = vmul.f32 %v2123, %v2123
      %v2226 = vmul.f32 %v2124, %v2124
      %v2227 = vmul.f32 %v2125, %v2125
      %v2228 = vadd.f32 %v2196, %v2197
      %v2229 = vadd.f32 %v2228, %v2198
      %v2230 = vadd.f32 %v2229, %v2199
      %v2231 = vadd.f32 %v2230, %v2200
      %v2232 = vadd.f32 %v2231, %v2201
      %v2233 = vadd.f32 %v2232, %v2202
      %v2234 = vadd.f32 %v2233, %v2203
      %v2235 = vadd.f32 %v2234, %v2204
      %v2236 = vadd.f32 %v2235, %v2205
      %v2237 = vadd.f32 %v2236, %v2206
      %v2238 = vadd.f32 %v2237, %v2207
      %v2239 = vadd.f32 %v2238, %v2208
      %v2240 = vadd.f32 %v2239, %v2209
      %v2241 = vadd.f32 %v2240, %v2210
      %v2242 = vadd.f32 %v2241, %v2211
      %v2243 = vadd.f32 %v2242, %v2212
      %v2244 = vadd.f32 %v2243, %v2213
      %v2245 = vadd.f32 %v2244, %v2214
      %v2246 = vadd.f32 %v2245, %v2215
      %v2247 = vadd.f32 %v2246, %v2216
      %v2248 = vadd.f32 %v2247, %v2217
      %v2249 = vadd.f32 %v2248, %v2218
      %v2250 = vadd.f32 %v2249, %v2219
      %v2251 = vadd.f32 %v2250, %v2220
      %v2252 = vadd.f32 %v2251, %v2221
      %v2253 = vadd.f32 %v2252, %v2222
      %v2254 = vadd.f32 %v2253, %v2223
      %v2255 = vadd.f32 %v2254, %v2224
      %v2256 = vadd.f32 %v2255, %v2225
      %v2257 = vadd.f32 %v2256, %v2226
      %v2258 = vadd.f32 %v2257, %v2227
      %v2259 = vrot.slane %v2258, 4
      %v2260 = vadd.f32 %v2258, %v2259
      %v2261 = vrot.slane %v2260, 2
      %v2262 = vadd.f32 %v2260, %v2261
      %v2263 = vrot.slane %v2262, 1
      %v2264 = vadd.f32 %v2262, %v2263
      %2265 = vst [vmem:[%s235 + $0x1] sm:$0x1] %v2264
      %p2266 = scmp.lt.s32.totalorder %s17, 1
      %s2267 = scalar_select %p2266, %s17, 1
      %s2268 = smul.addr %s2267, 32
      %s2269 = smul.addr %s2268, 8
      %s2270 = scalar_lea.vmem %s4, %s2269
      %p2271 = scmp.lt.s32.totalorder %s17, 1
      %s2272 = scalar_select %p2271, %s17, 1
      %s2273 = smul.addr %s2272, 2
      %s2274 = scalar_lea.vmem %s5, %s2273
      // Predicated region
      $region37: #{residual_block_pallas.4} parent=35 // pred_check
        %p2275 = pneg %p124
      $region38: #{residual_block_pallas.4} parent=35 // pred_check_branch
        %2277 = sbr.rel (%p2275) target = $region40
      $region39: #{residual_block_pallas.4} parent=35 // pred_region
        _
      $region40: #{residual_block_pallas.4} parent=35 // pred_fallthru
        _
      // Predicated region
      $region41: #{residual_block_pallas.4} parent=35 // pred_check
        %p2278 = pneg %p150
      $region42: #{residual_block_pallas.4} parent=35 // pred_check_branch
        %2280 = sbr.rel (%p2278) target = $region44
      $region43: #{residual_block_pallas.4} parent=35 // pred_region
        _
      $region44: #{residual_block_pallas.4} parent=35 // pred_fallthru
        _
    $region36: #{residual_block_pallas.4} parent=5 // pred_fallthru
      _
    %p2281 = scmp.le.s32.totalorder 2, %s12
    // Predicated region
    $region45: #{residual_block_pallas.4} parent=5 // pred_check
      %p2282 = pneg %p2281
    $region46: #{residual_block_pallas.4} parent=5 // pred_check_branch
      %2284 = sbr.rel (%p2282) target = $region48
    $region47: #{residual_block_pallas.4} parent=5 // pred_region
      %s2285 = ssub.s32 %s12, 2
      // Predicated region
      $region49: #{residual_block_pallas.4} parent=47 // pred_check
        %p2286 = pneg %p130
      $region50: #{residual_block_pallas.4} parent=47 // pred_check_branch
        %2288 = sbr.rel (%p2286) target = $region52
      $region51: #{residual_block_pallas.4} parent=47 // pred_region
        %p2289 = scmp.lt.s32.totalorder %s18, 1
        %s2290 = scalar_select %p2289, %s18, 1
        %s2291 = smul.addr %s2290, 32
        %s2292 = smul.addr %s2291, 8
        %s2293 = scalar_lea.vmem %s4, %s2292
      $region52: #{residual_block_pallas.4} parent=47 // pred_fallthru
        _
      // Predicated region
      $region53: #{residual_block_pallas.4} parent=47 // pred_check
        %p2294 = pneg %p156
      $region54: #{residual_block_pallas.4} parent=47 // pred_check_branch
        %2296 = sbr.rel (%p2294) target = $region56
      $region55: #{residual_block_pallas.4} parent=47 // pred_region
        %p2297 = scmp.lt.s32.totalorder %s18, 1
        %s2298 = scalar_select %p2297, %s18, 1
        %s2299 = smul.addr %s2298, 2
        %s2300 = scalar_lea.vmem %s5, %s2299
      $region56: #{residual_block_pallas.4} parent=47 // pred_fallthru
        _
    $region48: #{residual_block_pallas.4} parent=5 // pred_fallthru
      _
  $region6: #{residual_block_pallas.4} parent=0 // loop_footer
    %s16 = sadd.s32 1, %s12
  $region7: #{residual_block_pallas.4} parent=0 // loop_footer_branch
    %11 = sbr.rel target = $region3
  $region8: #{residual_block_pallas.4} parent=0 // loop_exit
    _

</llo_original>
